<compile_context>
chip_gen: v5e
topology: v5e:2x2
jax: 0.10.0
libtpu: 0.0.40
codegen_flags: <defaults>
</compile_context>

<pallas_src>
import jax
import jax.numpy as jnp
import numpy as np
from jax import lax
from jax.experimental import pallas as pl
from jax.experimental.pallas import tpu as pltpu


def _leaky(t, slope=0.01):
    return jnp.where(t >= 0, t, slope * t)


def build_forward(params, *, batch, hw, num_classes):
    """Returns forward(x_nchw) -> (batch, num_classes) via one fused Pallas kernel."""
    p = params
    inter = int(p["l1_w"].shape[0])
    msize = int(p["l4_w"].shape[0])
    cq = int(p["l5"]["sa1"]["wq"].shape[0])
    L = batch * hw
    qkv_rows = 2 * cq + msize

    # ------------------- pack parameters into a few slabs -------------------
    def _rup8(n):
        return ((n + 7) // 8) * 8

    SLOT = _rup8(max(inter, msize, qkv_rows, msize + 1))  # rows per weight slot
    WCOLS = max(inter, msize, num_classes)                # weight-slab lane width

    w_slots, S = [], {}

    def add_w(name, mat):
        m = np.zeros((SLOT, WCOLS), np.float32)
        a = np.asarray(mat, np.float32)
        m[:a.shape[0], :a.shape[1]] = a
        S[name] = len(w_slots)
        w_slots.append(m)

    add_w("l2_w0", p["l2"]["w0"]); add_w("l2_w2", p["l2"]["w2"])
    add_w("l3_w0", p["l3"]["w0"]); add_w("l3_w2", p["l3"]["w2"])
    add_w("l4_w", p["l4_w"])
    for blk in ("l5", "l6"):
        for sa in ("sa1", "sa2"):
            sp = p[blk][sa]
            add_w(f"{blk}_{sa}_qkv",
                  np.concatenate([np.asarray(sp["wq"]), np.asarray(sp["wk"]),
                                  np.asarray(sp["wv"])], axis=0))
    add_w("fc", np.concatenate([np.asarray(p["fc_wt"]), np.asarray(p["fc_b"])], axis=0))
    w_slab = np.concatenate(w_slots, axis=0)              # (n_slots*SLOT, WCOLS)

    vec_cols, V = [], {}

    def add_v(name, vec):
        v = np.zeros((SLOT,), np.float32)
        a = np.asarray(vec, np.float32).reshape(-1)
        v[:a.shape[0]] = a
        V[name] = len(vec_cols)
        vec_cols.append(v)

    add_v("l1_bn_w", p["l1_bn_w"]); add_v("l1_bn_b", p["l1_bn_b"])
    for blk in ("l2", "l3"):
        pp = p[blk]
        add_v(f"{blk}_b0", pp["b0"])
        add_v(f"{blk}_bn1_w", pp["bn1_w"]); add_v(f"{blk}_bn1_b", pp["bn1_b"])
        add_v(f"{blk}_b2", pp["b2"])
        add_v(f"{blk}_bn2_w", pp["bn2_w"]); add_v(f"{blk}_bn2_b", pp["bn2_b"])
    add_v("l4_b", p["l4_b"]); add_v("bn4_w", p["bn4_w"]); add_v("bn4_b", p["bn4_b"])
    for blk in ("l5", "l6"):
        for sa in ("sa1", "sa2"):
            sp = p[blk][sa]
            add_v(f"{blk}_{sa}_qkv_b",
                  np.concatenate([np.asarray(sp["bq"]).reshape(-1),
                                  np.asarray(sp["bk"]).reshape(-1),
                                  np.asarray(sp["bv"]).reshape(-1)]))
            add_v(f"{blk}_{sa}_bn_w", sp["bn_w"]); add_v(f"{blk}_{sa}_bn_b", sp["bn_b"])
    vec_slab = np.stack(vec_cols, axis=1)                 # (SLOT, n_vecs)

    GAMMA_IDX = {f"{b}_{s}": i for i, (b, s) in
                 enumerate([(b, s) for b in ("l5", "l6") for s in ("sa1", "sa2")])}
    gammas = np.array([float(np.asarray(p[b][s]["gamma"]).reshape(()))
                       for b in ("l5", "l6") for s in ("sa1", "sa2")], np.float32)

    # Lane-dense per-batch bookkeeping constants (precomputed once).
    seg = np.repeat(np.arange(batch), hw)                                     # (L,)
    seg_ind = (seg[:, None] == np.arange(batch)[None, :]).astype(np.float32)  # (L, B)
    seg_ind_t = np.ascontiguousarray(seg_ind.T)                               # (B, L)
    attn_mask = np.where(seg[:, None] == seg[None, :], 0.0, -1e30).astype(np.float32)

    w_l1_j = jnp.asarray(p["l1_w"], jnp.float32)
    w_slab_j = jnp.asarray(w_slab)
    vec_slab_j = jnp.asarray(vec_slab)
    attn_mask_j = jnp.asarray(attn_mask)
    seg_ind_j = jnp.asarray(seg_ind)
    seg_ind_t_j = jnp.asarray(seg_ind_t)
    gammas_j = jnp.asarray(gammas)

    # ------------------------------- kernel ---------------------------------
    def kernel(x_ref, wl1_ref, wsl_ref, vec_ref, amask_ref, segi_ref, segit_ref,
               gam_ref, out_ref):
        f32 = jnp.float32
        seg_i = segi_ref[...]                       # (L, B) lane -> batch indicator
        seg_it = segit_ref[...]                     # (B, L)
        mean_col = jnp.full((L, 1), 1.0 / L, f32)   # hoisted once; reused by every BN
        ones_col = jnp.ones((L, 1), f32)            # MXU row-sum for attention softmax

        def wmat(name, rows, cols):
            r0 = S[name] * SLOT
            return wsl_ref[r0:r0 + rows, :cols]

        def vcol(name, rows):
            c = V[name]
            return vec_ref[:rows, c:c + 1]

        def proj(w, t, b=None):
            y = jnp.dot(w, t, preferred_element_type=f32)
            return y if b is None else y + b

        def bn(t, w_name, b_name, eps=1e-5):
            # Training-mode BatchNorm2d: stats over (N,H,W) == the full lane row.
            # Sx and Sx^2 via one MXU matmul; var = E[x^2] - mu^2.
            c = t.shape[0]
            s = jnp.dot(jnp.concatenate([t, t * t], axis=0), mean_col,
                        preferred_element_type=f32)                 # (2C, 1)
            mu = s[:c]
            var = s[c:] - mu * mu
            return (t - mu) * lax.rsqrt(var + eps) * vcol(w_name, c) + vcol(b_name, c)

        # ------------------------------ SPC32 -------------------------------
        def seg_softmax(z):
            # Per-batch-segment softmax over lanes. Whole-row max is a valid
            # per-segment stabilizer; only the denominator is segment-dependent.
            e = jnp.exp(z - jnp.max(z, axis=-1, keepdims=True))              # (D, L)
            denom = jnp.dot(jnp.dot(e, seg_i, preferred_element_type=f32),
                            seg_it, preferred_element_type=f32)              # (D, L)
            return e * pl.reciprocal(denom, approx=False)

        def spc_core(xin, m):
            # fk genuinely differs per batch -> lane-masked accumulate (no
            # slicing / concatenation).  sum_d leaky(fk*m) == leaky(fk) @ m
            # because m = softmax output >= 0.
            out = jnp.zeros_like(xin)
            for b in range(batch):
                mb = m * seg_it[b:b + 1, :]                                   # (D, L)
                fk = lax.dot_general(xin, mb, (((1,), (1,)), ((), ())),
                                     preferred_element_type=f32)              # (C, D)
                out = out + jnp.dot(_leaky(fk), mb, preferred_element_type=f32)
            return out

        def spc32(xin, blk):
            mask0 = seg_softmax(proj(wmat(f"{blk}_w0", msize, inter), xin,
                                     vcol(f"{blk}_b0", msize)))
            out0 = bn(spc_core(xin, mask0), f"{blk}_bn1_w", f"{blk}_bn1_b")
            mask2 = seg_softmax(proj(wmat(f"{blk}_w2", msize, inter), out0,
                                     vcol(f"{blk}_b2", msize)))
            # second pass + residual both use the original x, per the reference
            return bn(spc_core(xin, mask2) + xin, f"{blk}_bn2_w", f"{blk}_bn2_b")

        # -------------------- position attention (SpatAttn_) ----------------
        def spat_attn(xin, name):
            qkv = proj(wmat(f"{name}_qkv", qkv_rows, msize), xin,
                       vcol(f"{name}_qkv_b", qkv_rows))                       # (2cq+C, L)
            q = qkv[:cq]
            k = qkv[cq:2 * cq]
            v = qkv[2 * cq:]
            # Lane-dense (L, L) energy; cross-batch pairs masked with -1e30.
            energy = lax.dot_general(q, k, (((0,), (0,)), ((), ())),
                                     preferred_element_type=f32) + amask_ref[...]
            e = jnp.exp(energy - jnp.max(energy, axis=-1, keepdims=True))
            denom = jnp.dot(e, ones_col, preferred_element_type=f32)          # (L, 1)
            a = e * pl.reciprocal(denom, approx=False)
            out = lax.dot_general(v, a, (((1,), (1,)), ((), ())),
                                  preferred_element_type=f32)                 # (C, L)
            out = gam_ref[GAMMA_IDX[name]] * out
            out = jnp.maximum(out, 0.0)                 # bn = Sequential(ReLU, BN)
            return bn(out, f"{name}_bn_w", f"{name}_bn_b")

        def sares(xin, blk):
            h1 = spat_attn(xin, f"{blk}_sa1")
            h2 = spat_attn(h1, f"{blk}_sa2")
            return jnp.maximum(h2 + xin, 0.0)

        # ------------------------------ forward ------------------------------
        x = x_ref[...]                                                        # (103, L)
        h = bn(_leaky(proj(wl1_ref[...], x)), "l1_bn_w", "l1_bn_b")           # layer1
        h = spc32(h, "l2")
        h = spc32(h, "l3")
        h = bn(_leaky(proj(wmat("l4_w", msize, inter), h, vcol("l4_b", msize))),
               "bn4_w", "bn4_b")
        h = sares(h, "l5")
        h = sares(h, "l6")

        # global average pool (per batch) + fc, all on the MXU
        pooled = jnp.dot(h, seg_i, preferred_element_type=f32) * (1.0 / hw)   # (C, B)
        fc_r0 = S["fc"] * SLOT
        fc_w = wsl_ref[fc_r0:fc_r0 + msize, :num_classes]                     # (C, NC)
        fc_b = wsl_ref[fc_r0 + msize:fc_r0 + msize + 1, :num_classes]         # (1, NC)
        out_ref[...] = lax.dot_general(pooled, fc_w, (((0,), (0,)), ((), ())),
                                       preferred_element_type=f32) + fc_b

    vmem = pltpu.MemorySpace.VMEM
    smem = pltpu.MemorySpace.SMEM
    fused = pl.pallas_call(
        kernel,
        out_shape=jax.ShapeDtypeStruct((batch, num_classes), jnp.float32),
        in_specs=[pl.BlockSpec(memory_space=vmem)] * 7
        + [pl.BlockSpec(memory_space=smem)],
        out_specs=pl.BlockSpec(memory_space=vmem),
    )
    # TODO(synk): stays single-TensorCore (grid=()); BatchNorm batch statistics
    # couple the two batch elements, so a v7x 2-TC split would need a CMEM
    # cross-core reduction of the per-BN (C,1) sums — not worth it at B=2.

    @jax.jit
    def forward(x):
        b, c, ht, wd = x.shape
        # NCHW -> (C, B*HW): channels on sublanes, batch*spatial on lanes.
        xf = jnp.transpose(jnp.reshape(x, (b, c, ht * wd)), (1, 0, 2))
        xf = jnp.reshape(xf, (c, b * ht * wd)).astype(jnp.float32)
        return fused(xf, w_l1_j, w_slab_j, vec_slab_j, attn_mask_j,
                     seg_ind_j, seg_ind_t_j, gammas_j)

    return forward


# ------------------------------ parameter init ------------------------------

def init_params(key, *, cin, inter, msize, num_classes, ratio=8):
    keys = iter(jax.random.split(key, 64))

    def nrm(shape, scale=0.1):
        return scale * jax.random.normal(next(keys), shape, dtype=jnp.float32)

    def ones(shape):
        return jnp.ones(shape, jnp.float32)

    def zeros(shape):
        return jnp.zeros(shape, jnp.float32)

    def spc_params():
        # Conv3d(1, msize, (inter,1,1)) == channel matmul (msize, inter) + bias
        return {
            "w0": nrm((msize, inter)), "b0": nrm((msize, 1)),
            "bn1_w": ones((inter, 1)), "bn1_b": zeros((inter, 1)),
            "w2": nrm((msize, inter)), "b2": nrm((msize, 1)),
            "bn2_w": ones((inter, 1)), "bn2_b": zeros((inter, 1)),
        }

    cq = msize // ratio

    def sa_params():
        return {
            "wq": nrm((cq, msize)), "bq": nrm((cq, 1)),
            "wk": nrm((cq, msize)), "bk": nrm((cq, 1)),
            "wv": nrm((msize, msize)), "bv": nrm((msize, 1)),
            # Intentional deviation: PyTorch inits gamma to 0 (zeroing the
            # attention branch at init); use 0.1 so the attention path is
            # actually exercised by this test.
            "gamma": jnp.full((1, 1), 0.1, jnp.float32),
            "bn_w": ones((msize, 1)), "bn_b": zeros((msize, 1)),
        }

    return {
        "l1_w": nrm((inter, cin)),
        "l1_bn_w": ones((inter, 1)), "l1_bn_b": zeros((inter, 1)),
        "l2": spc_params(), "l3": spc_params(),
        "l4_w": nrm((msize, inter)), "l4_b": nrm((msize, 1)),
        "bn4_w": ones((msize, 1)), "bn4_b": zeros((msize, 1)),
        "l5": {"sa1": sa_params(), "sa2": sa_params()},
        "l6": {"sa1": sa_params(), "sa2": sa_params()},
        # fc weight stored pre-transposed: (in_features, num_classes)
        "fc_wt": nrm((msize, num_classes)),
        "fc_b": nrm((1, num_classes)),
    }


# ----------------------------------- main ------------------------------------

if __name__ == "__main__":
    B, H, W = 2, 8, 8                 # B*H*W = 128 -> fully lane-dense rows
    Cin = 103                         # fixed by the module: Conv2d(103, inter, 1)
    inter_size, msize, num_classes = 16, 16, 6

    key = jax.random.PRNGKey(0)
    kx, kp = jax.random.split(key)
    x = jax.random.normal(kx, (B, Cin, H, W), dtype=jnp.float32)
    params = init_params(kp, cin=Cin, inter=inter_size, msize=msize,
                         num_classes=num_classes)

    forward = build_forward(params, batch=B, hw=H * W, num_classes=num_classes)
    out = jax.block_until_ready(forward(x))
    assert out.shape == (B, num_classes), out.shape
    assert bool(jnp.all(jnp.isfinite(out)))
    print("KERNEL_OK")
</pallas_src>

<mosaic_0001>
module attributes {stable_mosaic.version = 11 : i64} {
  func.func @kernel(%arg0: memref<103x128xf32, #tpu.memory_space<vmem>>, %arg1: memref<16x103xf32, #tpu.memory_space<vmem>>, %arg2: memref<240x16xf32, #tpu.memory_space<vmem>>, %arg3: memref<24x29xf32, #tpu.memory_space<vmem>>, %arg4: memref<128x128xf32, #tpu.memory_space<vmem>>, %arg5: memref<128x2xf32, #tpu.memory_space<vmem>>, %arg6: memref<2x128xf32, #tpu.memory_space<vmem>>, %arg7: memref<4xf32, #tpu.memory_space<smem>>, %arg8: memref<2x6xf32, #tpu.memory_space<vmem>>) attributes {dimension_semantics = [], scalar_prefetch = 0 : i64, scratch_operands = 0 : i64, tpu.core_type = #tpu.core_type<tc>} {
    %c0 = arith.constant 0 : index
    %c0_0 = arith.constant 0 : index
    %0 = vector.load %arg5[%c0, %c0_0] : memref<128x2xf32, #tpu.memory_space<vmem>>, vector<128x2xf32>
    %c0_1 = arith.constant 0 : index
    %c0_2 = arith.constant 0 : index
    %1 = vector.load %arg6[%c0_1, %c0_2] : memref<2x128xf32, #tpu.memory_space<vmem>>, vector<2x128xf32>
    %cst = arith.constant 7.812500e-03 : f32
    %2 = vector.broadcast %cst : f32 to vector<128x1xf32>
    %cst_3 = arith.constant 1.000000e+00 : f32
    %3 = vector.broadcast %cst_3 : f32 to vector<128x1xf32>
    %c0_4 = arith.constant 0 : index
    %c0_5 = arith.constant 0 : index
    %4 = vector.load %arg0[%c0_4, %c0_5] : memref<103x128xf32, #tpu.memory_space<vmem>>, vector<103x128xf32>
    %c0_6 = arith.constant 0 : index
    %c0_7 = arith.constant 0 : index
    %5 = vector.load %arg1[%c0_6, %c0_7] : memref<16x103xf32, #tpu.memory_space<vmem>>, vector<16x103xf32>
    %cst_8 = arith.constant dense<0.000000e+00> : vector<16x128xf32>
    %6 = tpu.matmul %5, %4, %cst_8 {dimension_numbers = #tpu.dot_dimension_numbers<[1], [0], [0], [1], [0, 0, 1, 1], [], []>} : vector<16x103xf32>, vector<103x128xf32>, vector<16x128xf32> -> vector<16x128xf32>
    %cst_9 = arith.constant 0.000000e+00 : f32
    %7 = vector.broadcast %cst_9 : f32 to vector<16x128xf32>
    %8 = arith.cmpf oge, %6, %7 : vector<16x128xf32>
    %cst_10 = arith.constant 0.00999999977 : f32
    %9 = vector.broadcast %cst_10 : f32 to vector<16x128xf32>
    %10 = arith.mulf %9, %6 : vector<16x128xf32>
    %11 = arith.select %8, %6, %10 : vector<16x128xi1>, vector<16x128xf32>
    %12 = arith.mulf %11, %11 : vector<16x128xf32>
    %13 = tpu.concatenate %11, %12 in 0 : vector<16x128xf32>, vector<16x128xf32> -> vector<32x128xf32>
    %cst_11 = arith.constant dense<0.000000e+00> : vector<32x1xf32>
    %14 = tpu.matmul %13, %2, %cst_11 {dimension_numbers = #tpu.dot_dimension_numbers<[1], [0], [0], [1], [0, 0, 1, 1], [], []>} : vector<32x128xf32>, vector<128x1xf32>, vector<32x1xf32> -> vector<32x1xf32>
    %15 = vector.extract_strided_slice %14 {offsets = [0, 0], sizes = [16, 1], strides = [1, 1]} : vector<32x1xf32> to vector<16x1xf32>
    %16 = vector.extract_strided_slice %14 {offsets = [16, 0], sizes = [16, 1], strides = [1, 1]} : vector<32x1xf32> to vector<16x1xf32>
    %17 = arith.mulf %15, %15 : vector<16x1xf32>
    %18 = arith.subf %16, %17 : vector<16x1xf32>
    %19 = vector.broadcast %15 : vector<16x1xf32> to vector<16x128xf32>
    %20 = arith.subf %11, %19 : vector<16x128xf32>
    %cst_12 = arith.constant 9.99999974E-6 : f32
    %21 = vector.broadcast %cst_12 : f32 to vector<16x1xf32>
    %22 = arith.addf %18, %21 : vector<16x1xf32>
    %23 = math.rsqrt %22 : vector<16x1xf32>
    %24 = vector.broadcast %23 : vector<16x1xf32> to vector<16x128xf32>
    %25 = arith.mulf %20, %24 : vector<16x128xf32>
    %c0_13 = arith.constant 0 : index
    %c0_14 = arith.constant 0 : index
    %26 = vector.load %arg3[%c0_13, %c0_14] : memref<24x29xf32, #tpu.memory_space<vmem>>, vector<16x1xf32>
    %27 = vector.broadcast %26 : vector<16x1xf32> to vector<16x128xf32>
    %28 = arith.mulf %25, %27 : vector<16x128xf32>
    %c0_15 = arith.constant 0 : index
    %c1 = arith.constant 1 : index
    %29 = vector.load %arg3[%c0_15, %c1] : memref<24x29xf32, #tpu.memory_space<vmem>>, vector<16x1xf32>
    %30 = vector.broadcast %29 : vector<16x1xf32> to vector<16x128xf32>
    %31 = arith.addf %28, %30 : vector<16x128xf32>
    %c0_16 = arith.constant 0 : index
    %c0_17 = arith.constant 0 : index
    %32 = vector.load %arg2[%c0_16, %c0_17] : memref<240x16xf32, #tpu.memory_space<vmem>>, vector<16x16xf32>
    %c0_18 = arith.constant 0 : index
    %c2 = arith.constant 2 : index
    %33 = vector.load %arg3[%c0_18, %c2] : memref<24x29xf32, #tpu.memory_space<vmem>>, vector<16x1xf32>
    %cst_19 = arith.constant dense<0.000000e+00> : vector<16x128xf32>
    %34 = tpu.matmul %32, %31, %cst_19 {dimension_numbers = #tpu.dot_dimension_numbers<[1], [0], [0], [1], [0, 0, 1, 1], [], []>} : vector<16x16xf32>, vector<16x128xf32>, vector<16x128xf32> -> vector<16x128xf32>
    %35 = vector.broadcast %33 : vector<16x1xf32> to vector<16x128xf32>
    %36 = arith.addf %34, %35 : vector<16x128xf32>
    %cst_20 = arith.constant dense<0xFF800000> : vector<16xf32>
    %37 = vector.multi_reduction <maximumf>, %36, %cst_20 [1] : vector<16x128xf32> to vector<16xf32>
    %38 = vector.shape_cast %37 : vector<16xf32> to vector<16x1xf32>
    %39 = vector.broadcast %38 : vector<16x1xf32> to vector<16x128xf32>
    %40 = arith.subf %36, %39 : vector<16x128xf32>
    %41 = math.exp %40 : vector<16x128xf32>
    %cst_21 = arith.constant dense<0.000000e+00> : vector<16x2xf32>
    %42 = tpu.matmul %41, %0, %cst_21 {dimension_numbers = #tpu.dot_dimension_numbers<[1], [0], [0], [1], [0, 0, 1, 1], [], []>} : vector<16x128xf32>, vector<128x2xf32>, vector<16x2xf32> -> vector<16x2xf32>
    %cst_22 = arith.constant dense<0.000000e+00> : vector<16x128xf32>
    %43 = tpu.matmul %42, %1, %cst_22 {dimension_numbers = #tpu.dot_dimension_numbers<[1], [0], [0], [1], [0, 0, 1, 1], [], []>} : vector<16x2xf32>, vector<2x128xf32>, vector<16x128xf32> -> vector<16x128xf32>
    %44 = tpu.reciprocal %43 : vector<16x128xf32> -> vector<16x128xf32>
    %45 = arith.mulf %41, %44 : vector<16x128xf32>
    %cst_23 = arith.constant 0.000000e+00 : f32
    %46 = vector.broadcast %cst_23 : f32 to vector<16x128xf32>
    %47 = vector.extract_strided_slice %1 {offsets = [0, 0], sizes = [1, 128], strides = [1, 1]} : vector<2x128xf32> to vector<1x128xf32>
    %48 = vector.broadcast %47 : vector<1x128xf32> to vector<16x128xf32>
    %49 = arith.mulf %45, %48 : vector<16x128xf32>
    %cst_24 = arith.constant dense<0.000000e+00> : vector<16x16xf32>
    %50 = tpu.matmul %31, %49, %cst_24 {dimension_numbers = #tpu.dot_dimension_numbers<[1], [1], [0], [0], [0, 0, 1, 0], [], []>} : vector<16x128xf32>, vector<16x128xf32>, vector<16x16xf32> -> vector<16x16xf32>
    %cst_25 = arith.constant 0.000000e+00 : f32
    %51 = vector.broadcast %cst_25 : f32 to vector<16x16xf32>
    %52 = arith.cmpf oge, %50, %51 : vector<16x16xf32>
    %cst_26 = arith.constant 0.00999999977 : f32
    %53 = vector.broadcast %cst_26 : f32 to vector<16x16xf32>
    %54 = arith.mulf %53, %50 : vector<16x16xf32>
    %55 = arith.select %52, %50, %54 : vector<16x16xi1>, vector<16x16xf32>
    %cst_27 = arith.constant dense<0.000000e+00> : vector<16x128xf32>
    %56 = tpu.matmul %55, %49, %cst_27 {dimension_numbers = #tpu.dot_dimension_numbers<[1], [0], [0], [1], [0, 0, 1, 1], [], []>} : vector<16x16xf32>, vector<16x128xf32>, vector<16x128xf32> -> vector<16x128xf32>
    %57 = arith.addf %46, %56 : vector<16x128xf32>
    %58 = vector.extract_strided_slice %1 {offsets = [1, 0], sizes = [1, 128], strides = [1, 1]} : vector<2x128xf32> to vector<1x128xf32>
    %59 = vector.broadcast %58 : vector<1x128xf32> to vector<16x128xf32>
    %60 = arith.mulf %45, %59 : vector<16x128xf32>
    %cst_28 = arith.constant dense<0.000000e+00> : vector<16x16xf32>
    %61 = tpu.matmul %31, %60, %cst_28 {dimension_numbers = #tpu.dot_dimension_numbers<[1], [1], [0], [0], [0, 0, 1, 0], [], []>} : vector<16x128xf32>, vector<16x128xf32>, vector<16x16xf32> -> vector<16x16xf32>
    %cst_29 = arith.constant 0.000000e+00 : f32
    %62 = vector.broadcast %cst_29 : f32 to vector<16x16xf32>
    %63 = arith.cmpf oge, %61, %62 : vector<16x16xf32>
    %cst_30 = arith.constant 0.00999999977 : f32
    %64 = vector.broadcast %cst_30 : f32 to vector<16x16xf32>
    %65 = arith.mulf %64, %61 : vector<16x16xf32>
    %66 = arith.select %63, %61, %65 : vector<16x16xi1>, vector<16x16xf32>
    %cst_31 = arith.constant dense<0.000000e+00> : vector<16x128xf32>
    %67 = tpu.matmul %66, %60, %cst_31 {dimension_numbers = #tpu.dot_dimension_numbers<[1], [0], [0], [1], [0, 0, 1, 1], [], []>} : vector<16x16xf32>, vector<16x128xf32>, vector<16x128xf32> -> vector<16x128xf32>
    %68 = arith.addf %57, %67 : vector<16x128xf32>
    %69 = arith.mulf %68, %68 : vector<16x128xf32>
    %70 = tpu.concatenate %68, %69 in 0 : vector<16x128xf32>, vector<16x128xf32> -> vector<32x128xf32>
    %cst_32 = arith.constant dense<0.000000e+00> : vector<32x1xf32>
    %71 = tpu.matmul %70, %2, %cst_32 {dimension_numbers = #tpu.dot_dimension_numbers<[1], [0], [0], [1], [0, 0, 1, 1], [], []>} : vector<32x128xf32>, vector<128x1xf32>, vector<32x1xf32> -> vector<32x1xf32>
    %72 = vector.extract_strided_slice %71 {offsets = [0, 0], sizes = [16, 1], strides = [1, 1]} : vector<32x1xf32> to vector<16x1xf32>
    %73 = vector.extract_strided_slice %71 {offsets = [16, 0], sizes = [16, 1], strides = [1, 1]} : vector<32x1xf32> to vector<16x1xf32>
    %74 = arith.mulf %72, %72 : vector<16x1xf32>
    %75 = arith.subf %73, %74 : vector<16x1xf32>
    %76 = vector.broadcast %72 : vector<16x1xf32> to vector<16x128xf32>
    %77 = arith.subf %68, %76 : vector<16x128xf32>
    %cst_33 = arith.constant 9.99999974E-6 : f32
    %78 = vector.broadcast %cst_33 : f32 to vector<16x1xf32>
    %79 = arith.addf %75, %78 : vector<16x1xf32>
    %80 = math.rsqrt %79 : vector<16x1xf32>
    %81 = vector.broadcast %80 : vector<16x1xf32> to vector<16x128xf32>
    %82 = arith.mulf %77, %81 : vector<16x128xf32>
    %c0_34 = arith.constant 0 : index
    %c3 = arith.constant 3 : index
    %83 = vector.load %arg3[%c0_34, %c3] : memref<24x29xf32, #tpu.memory_space<vmem>>, vector<16x1xf32>
    %84 = vector.broadcast %83 : vector<16x1xf32> to vector<16x128xf32>
    %85 = arith.mulf %82, %84 : vector<16x128xf32>
    %c0_35 = arith.constant 0 : index
    %c4 = arith.constant 4 : index
    %86 = vector.load %arg3[%c0_35, %c4] : memref<24x29xf32, #tpu.memory_space<vmem>>, vector<16x1xf32>
    %87 = vector.broadcast %86 : vector<16x1xf32> to vector<16x128xf32>
    %88 = arith.addf %85, %87 : vector<16x128xf32>
    %c24 = arith.constant 24 : index
    %c0_36 = arith.constant 0 : index
    %89 = vector.load %arg2[%c24, %c0_36] : memref<240x16xf32, #tpu.memory_space<vmem>>, vector<16x16xf32>
    %c0_37 = arith.constant 0 : index
    %c5 = arith.constant 5 : index
    %90 = vector.load %arg3[%c0_37, %c5] : memref<24x29xf32, #tpu.memory_space<vmem>>, vector<16x1xf32>
    %cst_38 = arith.constant dense<0.000000e+00> : vector<16x128xf32>
    %91 = tpu.matmul %89, %88, %cst_38 {dimension_numbers = #tpu.dot_dimension_numbers<[1], [0], [0], [1], [0, 0, 1, 1], [], []>} : vector<16x16xf32>, vector<16x128xf32>, vector<16x128xf32> -> vector<16x128xf32>
    %92 = vector.broadcast %90 : vector<16x1xf32> to vector<16x128xf32>
    %93 = arith.addf %91, %92 : vector<16x128xf32>
    %cst_39 = arith.constant dense<0xFF800000> : vector<16xf32>
    %94 = vector.multi_reduction <maximumf>, %93, %cst_39 [1] : vector<16x128xf32> to vector<16xf32>
    %95 = vector.shape_cast %94 : vector<16xf32> to vector<16x1xf32>
    %96 = vector.broadcast %95 : vector<16x1xf32> to vector<16x128xf32>
    %97 = arith.subf %93, %96 : vector<16x128xf32>
    %98 = math.exp %97 : vector<16x128xf32>
    %cst_40 = arith.constant dense<0.000000e+00> : vector<16x2xf32>
    %99 = tpu.matmul %98, %0, %cst_40 {dimension_numbers = #tpu.dot_dimension_numbers<[1], [0], [0], [1], [0, 0, 1, 1], [], []>} : vector<16x128xf32>, vector<128x2xf32>, vector<16x2xf32> -> vector<16x2xf32>
    %cst_41 = arith.constant dense<0.000000e+00> : vector<16x128xf32>
    %100 = tpu.matmul %99, %1, %cst_41 {dimension_numbers = #tpu.dot_dimension_numbers<[1], [0], [0], [1], [0, 0, 1, 1], [], []>} : vector<16x2xf32>, vector<2x128xf32>, vector<16x128xf32> -> vector<16x128xf32>
    %101 = tpu.reciprocal %100 : vector<16x128xf32> -> vector<16x128xf32>
    %102 = arith.mulf %98, %101 : vector<16x128xf32>
    %cst_42 = arith.constant 0.000000e+00 : f32
    %103 = vector.broadcast %cst_42 : f32 to vector<16x128xf32>
    %104 = vector.extract_strided_slice %1 {offsets = [0, 0], sizes = [1, 128], strides = [1, 1]} : vector<2x128xf32> to vector<1x128xf32>
    %105 = vector.broadcast %104 : vector<1x128xf32> to vector<16x128xf32>
    %106 = arith.mulf %102, %105 : vector<16x128xf32>
    %cst_43 = arith.constant dense<0.000000e+00> : vector<16x16xf32>
    %107 = tpu.matmul %31, %106, %cst_43 {dimension_numbers = #tpu.dot_dimension_numbers<[1], [1], [0], [0], [0, 0, 1, 0], [], []>} : vector<16x128xf32>, vector<16x128xf32>, vector<16x16xf32> -> vector<16x16xf32>
    %cst_44 = arith.constant 0.000000e+00 : f32
    %108 = vector.broadcast %cst_44 : f32 to vector<16x16xf32>
    %109 = arith.cmpf oge, %107, %108 : vector<16x16xf32>
    %cst_45 = arith.constant 0.00999999977 : f32
    %110 = vector.broadcast %cst_45 : f32 to vector<16x16xf32>
    %111 = arith.mulf %110, %107 : vector<16x16xf32>
    %112 = arith.select %109, %107, %111 : vector<16x16xi1>, vector<16x16xf32>
    %cst_46 = arith.constant dense<0.000000e+00> : vector<16x128xf32>
    %113 = tpu.matmul %112, %106, %cst_46 {dimension_numbers = #tpu.dot_dimension_numbers<[1], [0], [0], [1], [0, 0, 1, 1], [], []>} : vector<16x16xf32>, vector<16x128xf32>, vector<16x128xf32> -> vector<16x128xf32>
    %114 = arith.addf %103, %113 : vector<16x128xf32>
    %115 = vector.extract_strided_slice %1 {offsets = [1, 0], sizes = [1, 128], strides = [1, 1]} : vector<2x128xf32> to vector<1x128xf32>
    %116 = vector.broadcast %115 : vector<1x128xf32> to vector<16x128xf32>
    %117 = arith.mulf %102, %116 : vector<16x128xf32>
    %cst_47 = arith.constant dense<0.000000e+00> : vector<16x16xf32>
    %118 = tpu.matmul %31, %117, %cst_47 {dimension_numbers = #tpu.dot_dimension_numbers<[1], [1], [0], [0], [0, 0, 1, 0], [], []>} : vector<16x128xf32>, vector<16x128xf32>, vector<16x16xf32> -> vector<16x16xf32>
    %cst_48 = arith.constant 0.000000e+00 : f32
    %119 = vector.broadcast %cst_48 : f32 to vector<16x16xf32>
    %120 = arith.cmpf oge, %118, %119 : vector<16x16xf32>
    %cst_49 = arith.constant 0.00999999977 : f32
    %121 = vector.broadcast %cst_49 : f32 to vector<16x16xf32>
    %122 = arith.mulf %121, %118 : vector<16x16xf32>
    %123 = arith.select %120, %118, %122 : vector<16x16xi1>, vector<16x16xf32>
    %cst_50 = arith.constant dense<0.000000e+00> : vector<16x128xf32>
    %124 = tpu.matmul %123, %117, %cst_50 {dimension_numbers = #tpu.dot_dimension_numbers<[1], [0], [0], [1], [0, 0, 1, 1], [], []>} : vector<16x16xf32>, vector<16x128xf32>, vector<16x128xf32> -> vector<16x128xf32>
    %125 = arith.addf %114, %124 : vector<16x128xf32>
    %126 = arith.addf %125, %31 : vector<16x128xf32>
    %127 = arith.mulf %126, %126 : vector<16x128xf32>
    %128 = tpu.concatenate %126, %127 in 0 : vector<16x128xf32>, vector<16x128xf32> -> vector<32x128xf32>
    %cst_51 = arith.constant dense<0.000000e+00> : vector<32x1xf32>
    %129 = tpu.matmul %128, %2, %cst_51 {dimension_numbers = #tpu.dot_dimension_numbers<[1], [0], [0], [1], [0, 0, 1, 1], [], []>} : vector<32x128xf32>, vector<128x1xf32>, vector<32x1xf32> -> vector<32x1xf32>
    %130 = vector.extract_strided_slice %129 {offsets = [0, 0], sizes = [16, 1], strides = [1, 1]} : vector<32x1xf32> to vector<16x1xf32>
    %131 = vector.extract_strided_slice %129 {offsets = [16, 0], sizes = [16, 1], strides = [1, 1]} : vector<32x1xf32> to vector<16x1xf32>
    %132 = arith.mulf %130, %130 : vector<16x1xf32>
    %133 = arith.subf %131, %132 : vector<16x1xf32>
    %134 = vector.broadcast %130 : vector<16x1xf32> to vector<16x128xf32>
    %135 = arith.subf %126, %134 : vector<16x128xf32>
    %cst_52 = arith.constant 9.99999974E-6 : f32
    %136 = vector.broadcast %cst_52 : f32 to vector<16x1xf32>
    %137 = arith.addf %133, %136 : vector<16x1xf32>
    %138 = math.rsqrt %137 : vector<16x1xf32>
    %139 = vector.broadcast %138 : vector<16x1xf32> to vector<16x128xf32>
    %140 = arith.mulf %135, %139 : vector<16x128xf32>
    %c0_53 = arith.constant 0 : index
    %c6 = arith.constant 6 : index
    %141 = vector.load %arg3[%c0_53, %c6] : memref<24x29xf32, #tpu.memory_space<vmem>>, vector<16x1xf32>
    %142 = vector.broadcast %141 : vector<16x1xf32> to vector<16x128xf32>
    %143 = arith.mulf %140, %142 : vector<16x128xf32>
    %c0_54 = arith.constant 0 : index
    %c7 = arith.constant 7 : index
    %144 = vector.load %arg3[%c0_54, %c7] : memref<24x29xf32, #tpu.memory_space<vmem>>, vector<16x1xf32>
    %145 = vector.broadcast %144 : vector<16x1xf32> to vector<16x128xf32>
    %146 = arith.addf %143, %145 : vector<16x128xf32>
    %c48 = arith.constant 48 : index
    %c0_55 = arith.constant 0 : index
    %147 = vector.load %arg2[%c48, %c0_55] : memref<240x16xf32, #tpu.memory_space<vmem>>, vector<16x16xf32>
    %c0_56 = arith.constant 0 : index
    %c8 = arith.constant 8 : index
    %148 = vector.load %arg3[%c0_56, %c8] : memref<24x29xf32, #tpu.memory_space<vmem>>, vector<16x1xf32>
    %cst_57 = arith.constant dense<0.000000e+00> : vector<16x128xf32>
    %149 = tpu.matmul %147, %146, %cst_57 {dimension_numbers = #tpu.dot_dimension_numbers<[1], [0], [0], [1], [0, 0, 1, 1], [], []>} : vector<16x16xf32>, vector<16x128xf32>, vector<16x128xf32> -> vector<16x128xf32>
    %150 = vector.broadcast %148 : vector<16x1xf32> to vector<16x128xf32>
    %151 = arith.addf %149, %150 : vector<16x128xf32>
    %cst_58 = arith.constant dense<0xFF800000> : vector<16xf32>
    %152 = vector.multi_reduction <maximumf>, %151, %cst_58 [1] : vector<16x128xf32> to vector<16xf32>
    %153 = vector.shape_cast %152 : vector<16xf32> to vector<16x1xf32>
    %154 = vector.broadcast %153 : vector<16x1xf32> to vector<16x128xf32>
    %155 = arith.subf %151, %154 : vector<16x128xf32>
    %156 = math.exp %155 : vector<16x128xf32>
    %cst_59 = arith.constant dense<0.000000e+00> : vector<16x2xf32>
    %157 = tpu.matmul %156, %0, %cst_59 {dimension_numbers = #tpu.dot_dimension_numbers<[1], [0], [0], [1], [0, 0, 1, 1], [], []>} : vector<16x128xf32>, vector<128x2xf32>, vector<16x2xf32> -> vector<16x2xf32>
    %cst_60 = arith.constant dense<0.000000e+00> : vector<16x128xf32>
    %158 = tpu.matmul %157, %1, %cst_60 {dimension_numbers = #tpu.dot_dimension_numbers<[1], [0], [0], [1], [0, 0, 1, 1], [], []>} : vector<16x2xf32>, vector<2x128xf32>, vector<16x128xf32> -> vector<16x128xf32>
    %159 = tpu.reciprocal %158 : vector<16x128xf32> -> vector<16x128xf32>
    %160 = arith.mulf %156, %159 : vector<16x128xf32>
    %cst_61 = arith.constant 0.000000e+00 : f32
    %161 = vector.broadcast %cst_61 : f32 to vector<16x128xf32>
    %162 = vector.extract_strided_slice %1 {offsets = [0, 0], sizes = [1, 128], strides = [1, 1]} : vector<2x128xf32> to vector<1x128xf32>
    %163 = vector.broadcast %162 : vector<1x128xf32> to vector<16x128xf32>
    %164 = arith.mulf %160, %163 : vector<16x128xf32>
    %cst_62 = arith.constant dense<0.000000e+00> : vector<16x16xf32>
    %165 = tpu.matmul %146, %164, %cst_62 {dimension_numbers = #tpu.dot_dimension_numbers<[1], [1], [0], [0], [0, 0, 1, 0], [], []>} : vector<16x128xf32>, vector<16x128xf32>, vector<16x16xf32> -> vector<16x16xf32>
    %cst_63 = arith.constant 0.000000e+00 : f32
    %166 = vector.broadcast %cst_63 : f32 to vector<16x16xf32>
    %167 = arith.cmpf oge, %165, %166 : vector<16x16xf32>
    %cst_64 = arith.constant 0.00999999977 : f32
    %168 = vector.broadcast %cst_64 : f32 to vector<16x16xf32>
    %169 = arith.mulf %168, %165 : vector<16x16xf32>
    %170 = arith.select %167, %165, %169 : vector<16x16xi1>, vector<16x16xf32>
    %cst_65 = arith.constant dense<0.000000e+00> : vector<16x128xf32>
    %171 = tpu.matmul %170, %164, %cst_65 {dimension_numbers = #tpu.dot_dimension_numbers<[1], [0], [0], [1], [0, 0, 1, 1], [], []>} : vector<16x16xf32>, vector<16x128xf32>, vector<16x128xf32> -> vector<16x128xf32>
    %172 = arith.addf %161, %171 : vector<16x128xf32>
    %173 = vector.extract_strided_slice %1 {offsets = [1, 0], sizes = [1, 128], strides = [1, 1]} : vector<2x128xf32> to vector<1x128xf32>
    %174 = vector.broadcast %173 : vector<1x128xf32> to vector<16x128xf32>
    %175 = arith.mulf %160, %174 : vector<16x128xf32>
    %cst_66 = arith.constant dense<0.000000e+00> : vector<16x16xf32>
    %176 = tpu.matmul %146, %175, %cst_66 {dimension_numbers = #tpu.dot_dimension_numbers<[1], [1], [0], [0], [0, 0, 1, 0], [], []>} : vector<16x128xf32>, vector<16x128xf32>, vector<16x16xf32> -> vector<16x16xf32>
    %cst_67 = arith.constant 0.000000e+00 : f32
    %177 = vector.broadcast %cst_67 : f32 to vector<16x16xf32>
    %178 = arith.cmpf oge, %176, %177 : vector<16x16xf32>
    %cst_68 = arith.constant 0.00999999977 : f32
    %179 = vector.broadcast %cst_68 : f32 to vector<16x16xf32>
    %180 = arith.mulf %179, %176 : vector<16x16xf32>
    %181 = arith.select %178, %176, %180 : vector<16x16xi1>, vector<16x16xf32>
    %cst_69 = arith.constant dense<0.000000e+00> : vector<16x128xf32>
    %182 = tpu.matmul %181, %175, %cst_69 {dimension_numbers = #tpu.dot_dimension_numbers<[1], [0], [0], [1], [0, 0, 1, 1], [], []>} : vector<16x16xf32>, vector<16x128xf32>, vector<16x128xf32> -> vector<16x128xf32>
    %183 = arith.addf %172, %182 : vector<16x128xf32>
    %184 = arith.mulf %183, %183 : vector<16x128xf32>
    %185 = tpu.concatenate %183, %184 in 0 : vector<16x128xf32>, vector<16x128xf32> -> vector<32x128xf32>
    %cst_70 = arith.constant dense<0.000000e+00> : vector<32x1xf32>
    %186 = tpu.matmul %185, %2, %cst_70 {dimension_numbers = #tpu.dot_dimension_numbers<[1], [0], [0], [1], [0, 0, 1, 1], [], []>} : vector<32x128xf32>, vector<128x1xf32>, vector<32x1xf32> -> vector<32x1xf32>
    %187 = vector.extract_strided_slice %186 {offsets = [0, 0], sizes = [16, 1], strides = [1, 1]} : vector<32x1xf32> to vector<16x1xf32>
    %188 = vector.extract_strided_slice %186 {offsets = [16, 0], sizes = [16, 1], strides = [1, 1]} : vector<32x1xf32> to vector<16x1xf32>
    %189 = arith.mulf %187, %187 : vector<16x1xf32>
    %190 = arith.subf %188, %189 : vector<16x1xf32>
    %191 = vector.broadcast %187 : vector<16x1xf32> to vector<16x128xf32>
    %192 = arith.subf %183, %191 : vector<16x128xf32>
    %cst_71 = arith.constant 9.99999974E-6 : f32
    %193 = vector.broadcast %cst_71 : f32 to vector<16x1xf32>
    %194 = arith.addf %190, %193 : vector<16x1xf32>
    %195 = math.rsqrt %194 : vector<16x1xf32>
    %196 = vector.broadcast %195 : vector<16x1xf32> to vector<16x128xf32>
    %197 = arith.mulf %192, %196 : vector<16x128xf32>
    %c0_72 = arith.constant 0 : index
    %c9 = arith.constant 9 : index
    %198 = vector.load %arg3[%c0_72, %c9] : memref<24x29xf32, #tpu.memory_space<vmem>>, vector<16x1xf32>
    %199 = vector.broadcast %198 : vector<16x1xf32> to vector<16x128xf32>
    %200 = arith.mulf %197, %199 : vector<16x128xf32>
    %c0_73 = arith.constant 0 : index
    %c10 = arith.constant 10 : index
    %201 = vector.load %arg3[%c0_73, %c10] : memref<24x29xf32, #tpu.memory_space<vmem>>, vector<16x1xf32>
    %202 = vector.broadcast %201 : vector<16x1xf32> to vector<16x128xf32>
    %203 = arith.addf %200, %202 : vector<16x128xf32>
    %c72 = arith.constant 72 : index
    %c0_74 = arith.constant 0 : index
    %204 = vector.load %arg2[%c72, %c0_74] : memref<240x16xf32, #tpu.memory_space<vmem>>, vector<16x16xf32>
    %c0_75 = arith.constant 0 : index
    %c11 = arith.constant 11 : index
    %205 = vector.load %arg3[%c0_75, %c11] : memref<24x29xf32, #tpu.memory_space<vmem>>, vector<16x1xf32>
    %cst_76 = arith.constant dense<0.000000e+00> : vector<16x128xf32>
    %206 = tpu.matmul %204, %203, %cst_76 {dimension_numbers = #tpu.dot_dimension_numbers<[1], [0], [0], [1], [0, 0, 1, 1], [], []>} : vector<16x16xf32>, vector<16x128xf32>, vector<16x128xf32> -> vector<16x128xf32>
    %207 = vector.broadcast %205 : vector<16x1xf32> to vector<16x128xf32>
    %208 = arith.addf %206, %207 : vector<16x128xf32>
    %cst_77 = arith.constant dense<0xFF800000> : vector<16xf32>
    %209 = vector.multi_reduction <maximumf>, %208, %cst_77 [1] : vector<16x128xf32> to vector<16xf32>
    %210 = vector.shape_cast %209 : vector<16xf32> to vector<16x1xf32>
    %211 = vector.broadcast %210 : vector<16x1xf32> to vector<16x128xf32>
    %212 = arith.subf %208, %211 : vector<16x128xf32>
    %213 = math.exp %212 : vector<16x128xf32>
    %cst_78 = arith.constant dense<0.000000e+00> : vector<16x2xf32>
    %214 = tpu.matmul %213, %0, %cst_78 {dimension_numbers = #tpu.dot_dimension_numbers<[1], [0], [0], [1], [0, 0, 1, 1], [], []>} : vector<16x128xf32>, vector<128x2xf32>, vector<16x2xf32> -> vector<16x2xf32>
    %cst_79 = arith.constant dense<0.000000e+00> : vector<16x128xf32>
    %215 = tpu.matmul %214, %1, %cst_79 {dimension_numbers = #tpu.dot_dimension_numbers<[1], [0], [0], [1], [0, 0, 1, 1], [], []>} : vector<16x2xf32>, vector<2x128xf32>, vector<16x128xf32> -> vector<16x128xf32>
    %216 = tpu.reciprocal %215 : vector<16x128xf32> -> vector<16x128xf32>
    %217 = arith.mulf %213, %216 : vector<16x128xf32>
    %cst_80 = arith.constant 0.000000e+00 : f32
    %218 = vector.broadcast %cst_80 : f32 to vector<16x128xf32>
    %219 = vector.extract_strided_slice %1 {offsets = [0, 0], sizes = [1, 128], strides = [1, 1]} : vector<2x128xf32> to vector<1x128xf32>
    %220 = vector.broadcast %219 : vector<1x128xf32> to vector<16x128xf32>
    %221 = arith.mulf %217, %220 : vector<16x128xf32>
    %cst_81 = arith.constant dense<0.000000e+00> : vector<16x16xf32>
    %222 = tpu.matmul %146, %221, %cst_81 {dimension_numbers = #tpu.dot_dimension_numbers<[1], [1], [0], [0], [0, 0, 1, 0], [], []>} : vector<16x128xf32>, vector<16x128xf32>, vector<16x16xf32> -> vector<16x16xf32>
    %cst_82 = arith.constant 0.000000e+00 : f32
    %223 = vector.broadcast %cst_82 : f32 to vector<16x16xf32>
    %224 = arith.cmpf oge, %222, %223 : vector<16x16xf32>
    %cst_83 = arith.constant 0.00999999977 : f32
    %225 = vector.broadcast %cst_83 : f32 to vector<16x16xf32>
    %226 = arith.mulf %225, %222 : vector<16x16xf32>
    %227 = arith.select %224, %222, %226 : vector<16x16xi1>, vector<16x16xf32>
    %cst_84 = arith.constant dense<0.000000e+00> : vector<16x128xf32>
    %228 = tpu.matmul %227, %221, %cst_84 {dimension_numbers = #tpu.dot_dimension_numbers<[1], [0], [0], [1], [0, 0, 1, 1], [], []>} : vector<16x16xf32>, vector<16x128xf32>, vector<16x128xf32> -> vector<16x128xf32>
    %229 = arith.addf %218, %228 : vector<16x128xf32>
    %230 = vector.extract_strided_slice %1 {offsets = [1, 0], sizes = [1, 128], strides = [1, 1]} : vector<2x128xf32> to vector<1x128xf32>
    %231 = vector.broadcast %230 : vector<1x128xf32> to vector<16x128xf32>
    %232 = arith.mulf %217, %231 : vector<16x128xf32>
    %cst_85 = arith.constant dense<0.000000e+00> : vector<16x16xf32>
    %233 = tpu.matmul %146, %232, %cst_85 {dimension_numbers = #tpu.dot_dimension_numbers<[1], [1], [0], [0], [0, 0, 1, 0], [], []>} : vector<16x128xf32>, vector<16x128xf32>, vector<16x16xf32> -> vector<16x16xf32>
    %cst_86 = arith.constant 0.000000e+00 : f32
    %234 = vector.broadcast %cst_86 : f32 to vector<16x16xf32>
    %235 = arith.cmpf oge, %233, %234 : vector<16x16xf32>
    %cst_87 = arith.constant 0.00999999977 : f32
    %236 = vector.broadcast %cst_87 : f32 to vector<16x16xf32>
    %237 = arith.mulf %236, %233 : vector<16x16xf32>
    %238 = arith.select %235, %233, %237 : vector<16x16xi1>, vector<16x16xf32>
    %cst_88 = arith.constant dense<0.000000e+00> : vector<16x128xf32>
    %239 = tpu.matmul %238, %232, %cst_88 {dimension_numbers = #tpu.dot_dimension_numbers<[1], [0], [0], [1], [0, 0, 1, 1], [], []>} : vector<16x16xf32>, vector<16x128xf32>, vector<16x128xf32> -> vector<16x128xf32>
    %240 = arith.addf %229, %239 : vector<16x128xf32>
    %241 = arith.addf %240, %146 : vector<16x128xf32>
    %242 = arith.mulf %241, %241 : vector<16x128xf32>
    %243 = tpu.concatenate %241, %242 in 0 : vector<16x128xf32>, vector<16x128xf32> -> vector<32x128xf32>
    %cst_89 = arith.constant dense<0.000000e+00> : vector<32x1xf32>
    %244 = tpu.matmul %243, %2, %cst_89 {dimension_numbers = #tpu.dot_dimension_numbers<[1], [0], [0], [1], [0, 0, 1, 1], [], []>} : vector<32x128xf32>, vector<128x1xf32>, vector<32x1xf32> -> vector<32x1xf32>
    %245 = vector.extract_strided_slice %244 {offsets = [0, 0], sizes = [16, 1], strides = [1, 1]} : vector<32x1xf32> to vector<16x1xf32>
    %246 = vector.extract_strided_slice %244 {offsets = [16, 0], sizes = [16, 1], strides = [1, 1]} : vector<32x1xf32> to vector<16x1xf32>
    %247 = arith.mulf %245, %245 : vector<16x1xf32>
    %248 = arith.subf %246, %247 : vector<16x1xf32>
    %249 = vector.broadcast %245 : vector<16x1xf32> to vector<16x128xf32>
    %250 = arith.subf %241, %249 : vector<16x128xf32>
    %cst_90 = arith.constant 9.99999974E-6 : f32
    %251 = vector.broadcast %cst_90 : f32 to vector<16x1xf32>
    %252 = arith.addf %248, %251 : vector<16x1xf32>
    %253 = math.rsqrt %252 : vector<16x1xf32>
    %254 = vector.broadcast %253 : vector<16x1xf32> to vector<16x128xf32>
    %255 = arith.mulf %250, %254 : vector<16x128xf32>
    %c0_91 = arith.constant 0 : index
    %c12 = arith.constant 12 : index
    %256 = vector.load %arg3[%c0_91, %c12] : memref<24x29xf32, #tpu.memory_space<vmem>>, vector<16x1xf32>
    %257 = vector.broadcast %256 : vector<16x1xf32> to vector<16x128xf32>
    %258 = arith.mulf %255, %257 : vector<16x128xf32>
    %c0_92 = arith.constant 0 : index
    %c13 = arith.constant 13 : index
    %259 = vector.load %arg3[%c0_92, %c13] : memref<24x29xf32, #tpu.memory_space<vmem>>, vector<16x1xf32>
    %260 = vector.broadcast %259 : vector<16x1xf32> to vector<16x128xf32>
    %261 = arith.addf %258, %260 : vector<16x128xf32>
    %c96 = arith.constant 96 : index
    %c0_93 = arith.constant 0 : index
    %262 = vector.load %arg2[%c96, %c0_93] : memref<240x16xf32, #tpu.memory_space<vmem>>, vector<16x16xf32>
    %c0_94 = arith.constant 0 : index
    %c14 = arith.constant 14 : index
    %263 = vector.load %arg3[%c0_94, %c14] : memref<24x29xf32, #tpu.memory_space<vmem>>, vector<16x1xf32>
    %cst_95 = arith.constant dense<0.000000e+00> : vector<16x128xf32>
    %264 = tpu.matmul %262, %261, %cst_95 {dimension_numbers = #tpu.dot_dimension_numbers<[1], [0], [0], [1], [0, 0, 1, 1], [], []>} : vector<16x16xf32>, vector<16x128xf32>, vector<16x128xf32> -> vector<16x128xf32>
    %265 = vector.broadcast %263 : vector<16x1xf32> to vector<16x128xf32>
    %266 = arith.addf %264, %265 : vector<16x128xf32>
    %cst_96 = arith.constant 0.000000e+00 : f32
    %267 = vector.broadcast %cst_96 : f32 to vector<16x128xf32>
    %268 = arith.cmpf oge, %266, %267 : vector<16x128xf32>
    %cst_97 = arith.constant 0.00999999977 : f32
    %269 = vector.broadcast %cst_97 : f32 to vector<16x128xf32>
    %270 = arith.mulf %269, %266 : vector<16x128xf32>
    %271 = arith.select %268, %266, %270 : vector<16x128xi1>, vector<16x128xf32>
    %272 = arith.mulf %271, %271 : vector<16x128xf32>
    %273 = tpu.concatenate %271, %272 in 0 : vector<16x128xf32>, vector<16x128xf32> -> vector<32x128xf32>
    %cst_98 = arith.constant dense<0.000000e+00> : vector<32x1xf32>
    %274 = tpu.matmul %273, %2, %cst_98 {dimension_numbers = #tpu.dot_dimension_numbers<[1], [0], [0], [1], [0, 0, 1, 1], [], []>} : vector<32x128xf32>, vector<128x1xf32>, vector<32x1xf32> -> vector<32x1xf32>
    %275 = vector.extract_strided_slice %274 {offsets = [0, 0], sizes = [16, 1], strides = [1, 1]} : vector<32x1xf32> to vector<16x1xf32>
    %276 = vector.extract_strided_slice %274 {offsets = [16, 0], sizes = [16, 1], strides = [1, 1]} : vector<32x1xf32> to vector<16x1xf32>
    %277 = arith.mulf %275, %275 : vector<16x1xf32>
    %278 = arith.subf %276, %277 : vector<16x1xf32>
    %279 = vector.broadcast %275 : vector<16x1xf32> to vector<16x128xf32>
    %280 = arith.subf %271, %279 : vector<16x128xf32>
    %cst_99 = arith.constant 9.99999974E-6 : f32
    %281 = vector.broadcast %cst_99 : f32 to vector<16x1xf32>
    %282 = arith.addf %278, %281 : vector<16x1xf32>
    %283 = math.rsqrt %282 : vector<16x1xf32>
    %284 = vector.broadcast %283 : vector<16x1xf32> to vector<16x128xf32>
    %285 = arith.mulf %280, %284 : vector<16x128xf32>
    %c0_100 = arith.constant 0 : index
    %c15 = arith.constant 15 : index
    %286 = vector.load %arg3[%c0_100, %c15] : memref<24x29xf32, #tpu.memory_space<vmem>>, vector<16x1xf32>
    %287 = vector.broadcast %286 : vector<16x1xf32> to vector<16x128xf32>
    %288 = arith.mulf %285, %287 : vector<16x128xf32>
    %c0_101 = arith.constant 0 : index
    %c16 = arith.constant 16 : index
    %289 = vector.load %arg3[%c0_101, %c16] : memref<24x29xf32, #tpu.memory_space<vmem>>, vector<16x1xf32>
    %290 = vector.broadcast %289 : vector<16x1xf32> to vector<16x128xf32>
    %291 = arith.addf %288, %290 : vector<16x128xf32>
    %c120 = arith.constant 120 : index
    %c0_102 = arith.constant 0 : index
    %292 = vector.load %arg2[%c120, %c0_102] : memref<240x16xf32, #tpu.memory_space<vmem>>, vector<20x16xf32>
    %c0_103 = arith.constant 0 : index
    %c17 = arith.constant 17 : index
    %293 = vector.load %arg3[%c0_103, %c17] : memref<24x29xf32, #tpu.memory_space<vmem>>, vector<20x1xf32>
    %cst_104 = arith.constant dense<0.000000e+00> : vector<20x128xf32>
    %294 = tpu.matmul %292, %291, %cst_104 {dimension_numbers = #tpu.dot_dimension_numbers<[1], [0], [0], [1], [0, 0, 1, 1], [], []>} : vector<20x16xf32>, vector<16x128xf32>, vector<20x128xf32> -> vector<20x128xf32>
    %295 = vector.broadcast %293 : vector<20x1xf32> to vector<20x128xf32>
    %296 = arith.addf %294, %295 : vector<20x128xf32>
    %297 = vector.extract_strided_slice %296 {offsets = [0, 0], sizes = [2, 128], strides = [1, 1]} : vector<20x128xf32> to vector<2x128xf32>
    %298 = vector.extract_strided_slice %296 {offsets = [2, 0], sizes = [2, 128], strides = [1, 1]} : vector<20x128xf32> to vector<2x128xf32>
    %299 = vector.extract_strided_slice %296 {offsets = [4, 0], sizes = [16, 128], strides = [1, 1]} : vector<20x128xf32> to vector<16x128xf32>
    %cst_105 = arith.constant dense<0.000000e+00> : vector<128x128xf32>
    %300 = tpu.matmul %297, %298, %cst_105 {dimension_numbers = #tpu.dot_dimension_numbers<[0], [0], [1], [1], [0, 1, 1, 1], [], []>} : vector<2x128xf32>, vector<2x128xf32>, vector<128x128xf32> -> vector<128x128xf32>
    %c0_106 = arith.constant 0 : index
    %c0_107 = arith.constant 0 : index
    %301 = vector.load %arg4[%c0_106, %c0_107] : memref<128x128xf32, #tpu.memory_space<vmem>>, vector<128x128xf32>
    %302 = arith.addf %300, %301 : vector<128x128xf32>
    %cst_108 = arith.constant dense<0xFF800000> : vector<128xf32>
    %303 = vector.multi_reduction <maximumf>, %302, %cst_108 [1] : vector<128x128xf32> to vector<128xf32>
    %304 = vector.shape_cast %303 : vector<128xf32> to vector<128x1xf32>
    %305 = vector.broadcast %304 : vector<128x1xf32> to vector<128x128xf32>
    %306 = arith.subf %302, %305 : vector<128x128xf32>
    %307 = math.exp %306 : vector<128x128xf32>
    %cst_109 = arith.constant dense<0.000000e+00> : vector<128x1xf32>
    %308 = tpu.matmul %307, %3, %cst_109 {dimension_numbers = #tpu.dot_dimension_numbers<[1], [0], [0], [1], [0, 0, 1, 1], [], []>} : vector<128x128xf32>, vector<128x1xf32>, vector<128x1xf32> -> vector<128x1xf32>
    %309 = tpu.reciprocal %308 : vector<128x1xf32> -> vector<128x1xf32>
    %310 = vector.broadcast %309 : vector<128x1xf32> to vector<128x128xf32>
    %311 = arith.mulf %307, %310 : vector<128x128xf32>
    %cst_110 = arith.constant dense<0.000000e+00> : vector<16x128xf32>
    %312 = tpu.matmul %299, %311, %cst_110 {dimension_numbers = #tpu.dot_dimension_numbers<[1], [1], [0], [0], [0, 0, 1, 0], [], []>} : vector<16x128xf32>, vector<128x128xf32>, vector<16x128xf32> -> vector<16x128xf32>
    %c0_111 = arith.constant 0 : index
    %313 = memref.load %arg7[%c0_111] : memref<4xf32, #tpu.memory_space<smem>>
    %314 = vector.broadcast %313 : f32 to vector<16x128xf32>
    %315 = arith.mulf %314, %312 : vector<16x128xf32>
    %cst_112 = arith.constant 0.000000e+00 : f32
    %316 = vector.broadcast %cst_112 : f32 to vector<16x128xf32>
    %317 = arith.maximumf %315, %316 : vector<16x128xf32>
    %318 = arith.mulf %317, %317 : vector<16x128xf32>
    %319 = tpu.concatenate %317, %318 in 0 : vector<16x128xf32>, vector<16x128xf32> -> vector<32x128xf32>
    %cst_113 = arith.constant dense<0.000000e+00> : vector<32x1xf32>
    %320 = tpu.matmul %319, %2, %cst_113 {dimension_numbers = #tpu.dot_dimension_numbers<[1], [0], [0], [1], [0, 0, 1, 1], [], []>} : vector<32x128xf32>, vector<128x1xf32>, vector<32x1xf32> -> vector<32x1xf32>
    %321 = vector.extract_strided_slice %320 {offsets = [0, 0], sizes = [16, 1], strides = [1, 1]} : vector<32x1xf32> to vector<16x1xf32>
    %322 = vector.extract_strided_slice %320 {offsets = [16, 0], sizes = [16, 1], strides = [1, 1]} : vector<32x1xf32> to vector<16x1xf32>
    %323 = arith.mulf %321, %321 : vector<16x1xf32>
    %324 = arith.subf %322, %323 : vector<16x1xf32>
    %325 = vector.broadcast %321 : vector<16x1xf32> to vector<16x128xf32>
    %326 = arith.subf %317, %325 : vector<16x128xf32>
    %cst_114 = arith.constant 9.99999974E-6 : f32
    %327 = vector.broadcast %cst_114 : f32 to vector<16x1xf32>
    %328 = arith.addf %324, %327 : vector<16x1xf32>
    %329 = math.rsqrt %328 : vector<16x1xf32>
    %330 = vector.broadcast %329 : vector<16x1xf32> to vector<16x128xf32>
    %331 = arith.mulf %326, %330 : vector<16x128xf32>
    %c0_115 = arith.constant 0 : index
    %c18 = arith.constant 18 : index
    %332 = vector.load %arg3[%c0_115, %c18] : memref<24x29xf32, #tpu.memory_space<vmem>>, vector<16x1xf32>
    %333 = vector.broadcast %332 : vector<16x1xf32> to vector<16x128xf32>
    %334 = arith.mulf %331, %333 : vector<16x128xf32>
    %c0_116 = arith.constant 0 : index
    %c19 = arith.constant 19 : index
    %335 = vector.load %arg3[%c0_116, %c19] : memref<24x29xf32, #tpu.memory_space<vmem>>, vector<16x1xf32>
    %336 = vector.broadcast %335 : vector<16x1xf32> to vector<16x128xf32>
    %337 = arith.addf %334, %336 : vector<16x128xf32>
    %c144 = arith.constant 144 : index
    %c0_117 = arith.constant 0 : index
    %338 = vector.load %arg2[%c144, %c0_117] : memref<240x16xf32, #tpu.memory_space<vmem>>, vector<20x16xf32>
    %c0_118 = arith.constant 0 : index
    %c20 = arith.constant 20 : index
    %339 = vector.load %arg3[%c0_118, %c20] : memref<24x29xf32, #tpu.memory_space<vmem>>, vector<20x1xf32>
    %cst_119 = arith.constant dense<0.000000e+00> : vector<20x128xf32>
    %340 = tpu.matmul %338, %337, %cst_119 {dimension_numbers = #tpu.dot_dimension_numbers<[1], [0], [0], [1], [0, 0, 1, 1], [], []>} : vector<20x16xf32>, vector<16x128xf32>, vector<20x128xf32> -> vector<20x128xf32>
    %341 = vector.broadcast %339 : vector<20x1xf32> to vector<20x128xf32>
    %342 = arith.addf %340, %341 : vector<20x128xf32>
    %343 = vector.extract_strided_slice %342 {offsets = [0, 0], sizes = [2, 128], strides = [1, 1]} : vector<20x128xf32> to vector<2x128xf32>
    %344 = vector.extract_strided_slice %342 {offsets = [2, 0], sizes = [2, 128], strides = [1, 1]} : vector<20x128xf32> to vector<2x128xf32>
    %345 = vector.extract_strided_slice %342 {offsets = [4, 0], sizes = [16, 128], strides = [1, 1]} : vector<20x128xf32> to vector<16x128xf32>
    %cst_120 = arith.constant dense<0.000000e+00> : vector<128x128xf32>
    %346 = tpu.matmul %343, %344, %cst_120 {dimension_numbers = #tpu.dot_dimension_numbers<[0], [0], [1], [1], [0, 1, 1, 1], [], []>} : vector<2x128xf32>, vector<2x128xf32>, vector<128x128xf32> -> vector<128x128xf32>
    %c0_121 = arith.constant 0 : index
    %c0_122 = arith.constant 0 : index
    %347 = vector.load %arg4[%c0_121, %c0_122] : memref<128x128xf32, #tpu.memory_space<vmem>>, vector<128x128xf32>
    %348 = arith.addf %346, %347 : vector<128x128xf32>
    %cst_123 = arith.constant dense<0xFF800000> : vector<128xf32>
    %349 = vector.multi_reduction <maximumf>, %348, %cst_123 [1] : vector<128x128xf32> to vector<128xf32>
    %350 = vector.shape_cast %349 : vector<128xf32> to vector<128x1xf32>
    %351 = vector.broadcast %350 : vector<128x1xf32> to vector<128x128xf32>
    %352 = arith.subf %348, %351 : vector<128x128xf32>
    %353 = math.exp %352 : vector<128x128xf32>
    %cst_124 = arith.constant dense<0.000000e+00> : vector<128x1xf32>
    %354 = tpu.matmul %353, %3, %cst_124 {dimension_numbers = #tpu.dot_dimension_numbers<[1], [0], [0], [1], [0, 0, 1, 1], [], []>} : vector<128x128xf32>, vector<128x1xf32>, vector<128x1xf32> -> vector<128x1xf32>
    %355 = tpu.reciprocal %354 : vector<128x1xf32> -> vector<128x1xf32>
    %356 = vector.broadcast %355 : vector<128x1xf32> to vector<128x128xf32>
    %357 = arith.mulf %353, %356 : vector<128x128xf32>
    %cst_125 = arith.constant dense<0.000000e+00> : vector<16x128xf32>
    %358 = tpu.matmul %345, %357, %cst_125 {dimension_numbers = #tpu.dot_dimension_numbers<[1], [1], [0], [0], [0, 0, 1, 0], [], []>} : vector<16x128xf32>, vector<128x128xf32>, vector<16x128xf32> -> vector<16x128xf32>
    %c1_126 = arith.constant 1 : index
    %359 = memref.load %arg7[%c1_126] : memref<4xf32, #tpu.memory_space<smem>>
    %360 = vector.broadcast %359 : f32 to vector<16x128xf32>
    %361 = arith.mulf %360, %358 : vector<16x128xf32>
    %cst_127 = arith.constant 0.000000e+00 : f32
    %362 = vector.broadcast %cst_127 : f32 to vector<16x128xf32>
    %363 = arith.maximumf %361, %362 : vector<16x128xf32>
    %364 = arith.mulf %363, %363 : vector<16x128xf32>
    %365 = tpu.concatenate %363, %364 in 0 : vector<16x128xf32>, vector<16x128xf32> -> vector<32x128xf32>
    %cst_128 = arith.constant dense<0.000000e+00> : vector<32x1xf32>
    %366 = tpu.matmul %365, %2, %cst_128 {dimension_numbers = #tpu.dot_dimension_numbers<[1], [0], [0], [1], [0, 0, 1, 1], [], []>} : vector<32x128xf32>, vector<128x1xf32>, vector<32x1xf32> -> vector<32x1xf32>
    %367 = vector.extract_strided_slice %366 {offsets = [0, 0], sizes = [16, 1], strides = [1, 1]} : vector<32x1xf32> to vector<16x1xf32>
    %368 = vector.extract_strided_slice %366 {offsets = [16, 0], sizes = [16, 1], strides = [1, 1]} : vector<32x1xf32> to vector<16x1xf32>
    %369 = arith.mulf %367, %367 : vector<16x1xf32>
    %370 = arith.subf %368, %369 : vector<16x1xf32>
    %371 = vector.broadcast %367 : vector<16x1xf32> to vector<16x128xf32>
    %372 = arith.subf %363, %371 : vector<16x128xf32>
    %cst_129 = arith.constant 9.99999974E-6 : f32
    %373 = vector.broadcast %cst_129 : f32 to vector<16x1xf32>
    %374 = arith.addf %370, %373 : vector<16x1xf32>
    %375 = math.rsqrt %374 : vector<16x1xf32>
    %376 = vector.broadcast %375 : vector<16x1xf32> to vector<16x128xf32>
    %377 = arith.mulf %372, %376 : vector<16x128xf32>
    %c0_130 = arith.constant 0 : index
    %c21 = arith.constant 21 : index
    %378 = vector.load %arg3[%c0_130, %c21] : memref<24x29xf32, #tpu.memory_space<vmem>>, vector<16x1xf32>
    %379 = vector.broadcast %378 : vector<16x1xf32> to vector<16x128xf32>
    %380 = arith.mulf %377, %379 : vector<16x128xf32>
    %c0_131 = arith.constant 0 : index
    %c22 = arith.constant 22 : index
    %381 = vector.load %arg3[%c0_131, %c22] : memref<24x29xf32, #tpu.memory_space<vmem>>, vector<16x1xf32>
    %382 = vector.broadcast %381 : vector<16x1xf32> to vector<16x128xf32>
    %383 = arith.addf %380, %382 : vector<16x128xf32>
    %384 = arith.addf %383, %291 : vector<16x128xf32>
    %cst_132 = arith.constant 0.000000e+00 : f32
    %385 = vector.broadcast %cst_132 : f32 to vector<16x128xf32>
    %386 = arith.maximumf %384, %385 : vector<16x128xf32>
    %c168 = arith.constant 168 : index
    %c0_133 = arith.constant 0 : index
    %387 = vector.load %arg2[%c168, %c0_133] : memref<240x16xf32, #tpu.memory_space<vmem>>, vector<20x16xf32>
    %c0_134 = arith.constant 0 : index
    %c23 = arith.constant 23 : index
    %388 = vector.load %arg3[%c0_134, %c23] : memref<24x29xf32, #tpu.memory_space<vmem>>, vector<20x1xf32>
    %cst_135 = arith.constant dense<0.000000e+00> : vector<20x128xf32>
    %389 = tpu.matmul %387, %386, %cst_135 {dimension_numbers = #tpu.dot_dimension_numbers<[1], [0], [0], [1], [0, 0, 1, 1], [], []>} : vector<20x16xf32>, vector<16x128xf32>, vector<20x128xf32> -> vector<20x128xf32>
    %390 = vector.broadcast %388 : vector<20x1xf32> to vector<20x128xf32>
    %391 = arith.addf %389, %390 : vector<20x128xf32>
    %392 = vector.extract_strided_slice %391 {offsets = [0, 0], sizes = [2, 128], strides = [1, 1]} : vector<20x128xf32> to vector<2x128xf32>
    %393 = vector.extract_strided_slice %391 {offsets = [2, 0], sizes = [2, 128], strides = [1, 1]} : vector<20x128xf32> to vector<2x128xf32>
    %394 = vector.extract_strided_slice %391 {offsets = [4, 0], sizes = [16, 128], strides = [1, 1]} : vector<20x128xf32> to vector<16x128xf32>
    %cst_136 = arith.constant dense<0.000000e+00> : vector<128x128xf32>
    %395 = tpu.matmul %392, %393, %cst_136 {dimension_numbers = #tpu.dot_dimension_numbers<[0], [0], [1], [1], [0, 1, 1, 1], [], []>} : vector<2x128xf32>, vector<2x128xf32>, vector<128x128xf32> -> vector<128x128xf32>
    %c0_137 = arith.constant 0 : index
    %c0_138 = arith.constant 0 : index
    %396 = vector.load %arg4[%c0_137, %c0_138] : memref<128x128xf32, #tpu.memory_space<vmem>>, vector<128x128xf32>
    %397 = arith.addf %395, %396 : vector<128x128xf32>
    %cst_139 = arith.constant dense<0xFF800000> : vector<128xf32>
    %398 = vector.multi_reduction <maximumf>, %397, %cst_139 [1] : vector<128x128xf32> to vector<128xf32>
    %399 = vector.shape_cast %398 : vector<128xf32> to vector<128x1xf32>
    %400 = vector.broadcast %399 : vector<128x1xf32> to vector<128x128xf32>
    %401 = arith.subf %397, %400 : vector<128x128xf32>
    %402 = math.exp %401 : vector<128x128xf32>
    %cst_140 = arith.constant dense<0.000000e+00> : vector<128x1xf32>
    %403 = tpu.matmul %402, %3, %cst_140 {dimension_numbers = #tpu.dot_dimension_numbers<[1], [0], [0], [1], [0, 0, 1, 1], [], []>} : vector<128x128xf32>, vector<128x1xf32>, vector<128x1xf32> -> vector<128x1xf32>
    %404 = tpu.reciprocal %403 : vector<128x1xf32> -> vector<128x1xf32>
    %405 = vector.broadcast %404 : vector<128x1xf32> to vector<128x128xf32>
    %406 = arith.mulf %402, %405 : vector<128x128xf32>
    %cst_141 = arith.constant dense<0.000000e+00> : vector<16x128xf32>
    %407 = tpu.matmul %394, %406, %cst_141 {dimension_numbers = #tpu.dot_dimension_numbers<[1], [1], [0], [0], [0, 0, 1, 0], [], []>} : vector<16x128xf32>, vector<128x128xf32>, vector<16x128xf32> -> vector<16x128xf32>
    %c2_142 = arith.constant 2 : index
    %408 = memref.load %arg7[%c2_142] : memref<4xf32, #tpu.memory_space<smem>>
    %409 = vector.broadcast %408 : f32 to vector<16x128xf32>
    %410 = arith.mulf %409, %407 : vector<16x128xf32>
    %cst_143 = arith.constant 0.000000e+00 : f32
    %411 = vector.broadcast %cst_143 : f32 to vector<16x128xf32>
    %412 = arith.maximumf %410, %411 : vector<16x128xf32>
    %413 = arith.mulf %412, %412 : vector<16x128xf32>
    %414 = tpu.concatenate %412, %413 in 0 : vector<16x128xf32>, vector<16x128xf32> -> vector<32x128xf32>
    %cst_144 = arith.constant dense<0.000000e+00> : vector<32x1xf32>
    %415 = tpu.matmul %414, %2, %cst_144 {dimension_numbers = #tpu.dot_dimension_numbers<[1], [0], [0], [1], [0, 0, 1, 1], [], []>} : vector<32x128xf32>, vector<128x1xf32>, vector<32x1xf32> -> vector<32x1xf32>
    %416 = vector.extract_strided_slice %415 {offsets = [0, 0], sizes = [16, 1], strides = [1, 1]} : vector<32x1xf32> to vector<16x1xf32>
    %417 = vector.extract_strided_slice %415 {offsets = [16, 0], sizes = [16, 1], strides = [1, 1]} : vector<32x1xf32> to vector<16x1xf32>
    %418 = arith.mulf %416, %416 : vector<16x1xf32>
    %419 = arith.subf %417, %418 : vector<16x1xf32>
    %420 = vector.broadcast %416 : vector<16x1xf32> to vector<16x128xf32>
    %421 = arith.subf %412, %420 : vector<16x128xf32>
    %cst_145 = arith.constant 9.99999974E-6 : f32
    %422 = vector.broadcast %cst_145 : f32 to vector<16x1xf32>
    %423 = arith.addf %419, %422 : vector<16x1xf32>
    %424 = math.rsqrt %423 : vector<16x1xf32>
    %425 = vector.broadcast %424 : vector<16x1xf32> to vector<16x128xf32>
    %426 = arith.mulf %421, %425 : vector<16x128xf32>
    %c0_146 = arith.constant 0 : index
    %c24_147 = arith.constant 24 : index
    %427 = vector.load %arg3[%c0_146, %c24_147] : memref<24x29xf32, #tpu.memory_space<vmem>>, vector<16x1xf32>
    %428 = vector.broadcast %427 : vector<16x1xf32> to vector<16x128xf32>
    %429 = arith.mulf %426, %428 : vector<16x128xf32>
    %c0_148 = arith.constant 0 : index
    %c25 = arith.constant 25 : index
    %430 = vector.load %arg3[%c0_148, %c25] : memref<24x29xf32, #tpu.memory_space<vmem>>, vector<16x1xf32>
    %431 = vector.broadcast %430 : vector<16x1xf32> to vector<16x128xf32>
    %432 = arith.addf %429, %431 : vector<16x128xf32>
    %c192 = arith.constant 192 : index
    %c0_149 = arith.constant 0 : index
    %433 = vector.load %arg2[%c192, %c0_149] : memref<240x16xf32, #tpu.memory_space<vmem>>, vector<20x16xf32>
    %c0_150 = arith.constant 0 : index
    %c26 = arith.constant 26 : index
    %434 = vector.load %arg3[%c0_150, %c26] : memref<24x29xf32, #tpu.memory_space<vmem>>, vector<20x1xf32>
    %cst_151 = arith.constant dense<0.000000e+00> : vector<20x128xf32>
    %435 = tpu.matmul %433, %432, %cst_151 {dimension_numbers = #tpu.dot_dimension_numbers<[1], [0], [0], [1], [0, 0, 1, 1], [], []>} : vector<20x16xf32>, vector<16x128xf32>, vector<20x128xf32> -> vector<20x128xf32>
    %436 = vector.broadcast %434 : vector<20x1xf32> to vector<20x128xf32>
    %437 = arith.addf %435, %436 : vector<20x128xf32>
    %438 = vector.extract_strided_slice %437 {offsets = [0, 0], sizes = [2, 128], strides = [1, 1]} : vector<20x128xf32> to vector<2x128xf32>
    %439 = vector.extract_strided_slice %437 {offsets = [2, 0], sizes = [2, 128], strides = [1, 1]} : vector<20x128xf32> to vector<2x128xf32>
    %440 = vector.extract_strided_slice %437 {offsets = [4, 0], sizes = [16, 128], strides = [1, 1]} : vector<20x128xf32> to vector<16x128xf32>
    %cst_152 = arith.constant dense<0.000000e+00> : vector<128x128xf32>
    %441 = tpu.matmul %438, %439, %cst_152 {dimension_numbers = #tpu.dot_dimension_numbers<[0], [0], [1], [1], [0, 1, 1, 1], [], []>} : vector<2x128xf32>, vector<2x128xf32>, vector<128x128xf32> -> vector<128x128xf32>
    %c0_153 = arith.constant 0 : index
    %c0_154 = arith.constant 0 : index
    %442 = vector.load %arg4[%c0_153, %c0_154] : memref<128x128xf32, #tpu.memory_space<vmem>>, vector<128x128xf32>
    %443 = arith.addf %441, %442 : vector<128x128xf32>
    %cst_155 = arith.constant dense<0xFF800000> : vector<128xf32>
    %444 = vector.multi_reduction <maximumf>, %443, %cst_155 [1] : vector<128x128xf32> to vector<128xf32>
    %445 = vector.shape_cast %444 : vector<128xf32> to vector<128x1xf32>
    %446 = vector.broadcast %445 : vector<128x1xf32> to vector<128x128xf32>
    %447 = arith.subf %443, %446 : vector<128x128xf32>
    %448 = math.exp %447 : vector<128x128xf32>
    %cst_156 = arith.constant dense<0.000000e+00> : vector<128x1xf32>
    %449 = tpu.matmul %448, %3, %cst_156 {dimension_numbers = #tpu.dot_dimension_numbers<[1], [0], [0], [1], [0, 0, 1, 1], [], []>} : vector<128x128xf32>, vector<128x1xf32>, vector<128x1xf32> -> vector<128x1xf32>
    %450 = tpu.reciprocal %449 : vector<128x1xf32> -> vector<128x1xf32>
    %451 = vector.broadcast %450 : vector<128x1xf32> to vector<128x128xf32>
    %452 = arith.mulf %448, %451 : vector<128x128xf32>
    %cst_157 = arith.constant dense<0.000000e+00> : vector<16x128xf32>
    %453 = tpu.matmul %440, %452, %cst_157 {dimension_numbers = #tpu.dot_dimension_numbers<[1], [1], [0], [0], [0, 0, 1, 0], [], []>} : vector<16x128xf32>, vector<128x128xf32>, vector<16x128xf32> -> vector<16x128xf32>
    %c3_158 = arith.constant 3 : index
    %454 = memref.load %arg7[%c3_158] : memref<4xf32, #tpu.memory_space<smem>>
    %455 = vector.broadcast %454 : f32 to vector<16x128xf32>
    %456 = arith.mulf %455, %453 : vector<16x128xf32>
    %cst_159 = arith.constant 0.000000e+00 : f32
    %457 = vector.broadcast %cst_159 : f32 to vector<16x128xf32>
    %458 = arith.maximumf %456, %457 : vector<16x128xf32>
    %459 = arith.mulf %458, %458 : vector<16x128xf32>
    %460 = tpu.concatenate %458, %459 in 0 : vector<16x128xf32>, vector<16x128xf32> -> vector<32x128xf32>
    %cst_160 = arith.constant dense<0.000000e+00> : vector<32x1xf32>
    %461 = tpu.matmul %460, %2, %cst_160 {dimension_numbers = #tpu.dot_dimension_numbers<[1], [0], [0], [1], [0, 0, 1, 1], [], []>} : vector<32x128xf32>, vector<128x1xf32>, vector<32x1xf32> -> vector<32x1xf32>
    %462 = vector.extract_strided_slice %461 {offsets = [0, 0], sizes = [16, 1], strides = [1, 1]} : vector<32x1xf32> to vector<16x1xf32>
    %463 = vector.extract_strided_slice %461 {offsets = [16, 0], sizes = [16, 1], strides = [1, 1]} : vector<32x1xf32> to vector<16x1xf32>
    %464 = arith.mulf %462, %462 : vector<16x1xf32>
    %465 = arith.subf %463, %464 : vector<16x1xf32>
    %466 = vector.broadcast %462 : vector<16x1xf32> to vector<16x128xf32>
    %467 = arith.subf %458, %466 : vector<16x128xf32>
    %cst_161 = arith.constant 9.99999974E-6 : f32
    %468 = vector.broadcast %cst_161 : f32 to vector<16x1xf32>
    %469 = arith.addf %465, %468 : vector<16x1xf32>
    %470 = math.rsqrt %469 : vector<16x1xf32>
    %471 = vector.broadcast %470 : vector<16x1xf32> to vector<16x128xf32>
    %472 = arith.mulf %467, %471 : vector<16x128xf32>
    %c0_162 = arith.constant 0 : index
    %c27 = arith.constant 27 : index
    %473 = vector.load %arg3[%c0_162, %c27] : memref<24x29xf32, #tpu.memory_space<vmem>>, vector<16x1xf32>
    %474 = vector.broadcast %473 : vector<16x1xf32> to vector<16x128xf32>
    %475 = arith.mulf %472, %474 : vector<16x128xf32>
    %c0_163 = arith.constant 0 : index
    %c28 = arith.constant 28 : index
    %476 = vector.load %arg3[%c0_163, %c28] : memref<24x29xf32, #tpu.memory_space<vmem>>, vector<16x1xf32>
    %477 = vector.broadcast %476 : vector<16x1xf32> to vector<16x128xf32>
    %478 = arith.addf %475, %477 : vector<16x128xf32>
    %479 = arith.addf %478, %386 : vector<16x128xf32>
    %cst_164 = arith.constant 0.000000e+00 : f32
    %480 = vector.broadcast %cst_164 : f32 to vector<16x128xf32>
    %481 = arith.maximumf %479, %480 : vector<16x128xf32>
    %cst_165 = arith.constant dense<0.000000e+00> : vector<16x2xf32>
    %482 = tpu.matmul %481, %0, %cst_165 {dimension_numbers = #tpu.dot_dimension_numbers<[1], [0], [0], [1], [0, 0, 1, 1], [], []>} : vector<16x128xf32>, vector<128x2xf32>, vector<16x2xf32> -> vector<16x2xf32>
    %cst_166 = arith.constant 1.562500e-02 : f32
    %483 = vector.broadcast %cst_166 : f32 to vector<16x2xf32>
    %484 = arith.mulf %482, %483 : vector<16x2xf32>
    %c216 = arith.constant 216 : index
    %c0_167 = arith.constant 0 : index
    %485 = vector.load %arg2[%c216, %c0_167] : memref<240x16xf32, #tpu.memory_space<vmem>>, vector<16x6xf32>
    %c232 = arith.constant 232 : index
    %c0_168 = arith.constant 0 : index
    %486 = vector.load %arg2[%c232, %c0_168] : memref<240x16xf32, #tpu.memory_space<vmem>>, vector<1x6xf32>
    %cst_169 = arith.constant dense<0.000000e+00> : vector<2x6xf32>
    %487 = tpu.matmul %484, %485, %cst_169 {dimension_numbers = #tpu.dot_dimension_numbers<[0], [0], [1], [1], [0, 1, 1, 1], [], []>} : vector<16x2xf32>, vector<16x6xf32>, vector<2x6xf32> -> vector<2x6xf32>
    %488 = vector.broadcast %486 : vector<1x6xf32> to vector<2x6xf32>
    %489 = arith.addf %487, %488 : vector<2x6xf32>
    %c0_170 = arith.constant 0 : index
    %c0_171 = arith.constant 0 : index
    %490 = vector.load %arg8[%c0_170, %c0_171] : memref<2x6xf32, #tpu.memory_space<vmem>>, vector<2x6xf32>
    tpu.vector_store %arg8[%c0_170, %c0_171], %489 {strides = array<i32>} : memref<2x6xf32, #tpu.memory_space<vmem>>, vector<2x6xf32>,
    return
  }
}

</mosaic_0001>

<llo_original>
// kernel: forward.1
$region0: #{forward.1}
  #allocation0 [shape = 'u32[]', space=smem, size = 0x4, offset = 0x4, fixed_abs, tag = 'smem constant byte address 0x4 - core index']
  #allocation1 [shape = 'u32[72,128]{1,0:T(1,128)}', space=vmem, size = 0x9000, scoped, tag = 'internal scratch']
  %s0 = inlined_call_operand.vmem [shape: f32[103,128], index: 0, kind: input, shape index: {}]
  %s1 = inlined_call_operand.vmem [shape: f32[16,103], index: 1, kind: input, shape index: {}]
  %s2 = inlined_call_operand.hbm [shape: f32[240,16], index: 2, kind: input, shape index: {}]
  %s3 = inlined_call_operand.vmem [shape: f32[24,29], index: 3, kind: input, shape index: {}]
  %s4 = inlined_call_operand.hbm [shape: f32[128,128], index: 4, kind: input, shape index: {}]
  %s5 = inlined_call_operand.vmem [shape: f32[128,2], index: 5, kind: input, shape index: {}]
  %s6 = inlined_call_operand.vmem [shape: f32[2,128], index: 6, kind: input, shape index: {}]
  %s7 = inlined_call_operand.vmem [shape: f32[4], index: 7, kind: input, shape index: {}]
  %s8 = inlined_call_operand.hbm [shape: f32[2,6], index: 8, kind: output, shape index: {}]
  %s9 = sld [smem:[#allocation0]]
  $region54: #{forward.1} parent=0
    _
  %s11 = ssub.s32 1, %s9
  %s12 = scalar_select 0, %s11, %s9
  $region1: #{forward.1} parent=0
    #allocation2 [shape = 'u8[122880]{0}', space=vmem, size = 0x1e000, scoped, tag = 'input window, operand 2, single buffered']
    #allocation3 [shape = 's32[1]{0}', space=sflag, size = 0x4, scoped, tag = 'scoped memory for forward.1']
    #allocation4 [shape = 's32[1]{0}', space=sflag, size = 0x4, scoped, tag = 'scoped memory for forward.1']
    #allocation5 [shape = 's32[1]{0}', space=sflag, size = 0x4, scoped, tag = 'scoped memory for forward.1']
    #allocation6 [shape = 'u8[65536]{0}', space=vmem, size = 0x10000, scoped, tag = 'input window, operand 4, single buffered']
    #allocation7 [shape = 's32[1]{0}', space=sflag, size = 0x4, scoped, tag = 'scoped memory for forward.1']
    #allocation8 [shape = 'u8[512]{0}', space=smem, size = 0x200, scoped, tag = 'input window, operand 7, single buffered']
    #allocation9 [shape = 'u8[1024]{0}', space=vmem, size = 0x400, scoped, tag = 'output window, operand 0, single buffered']
    %13 = vsyncpa [#allocation3], 0
    %14 = vsyncpa [#allocation7], 0
    %15 = vsyncpa [#allocation5], 0
    %16 = vsyncpa [#allocation4], 0
    // Predicated region
    $region2: #{forward.1} parent=1 // pred_check
      _
    $region3: #{forward.1} parent=1 // pred_check_branch
      %18 = sbr.rel (0) target = $region5
    $region4: #{forward.1} parent=1 // pred_region
      _
    $region5: #{forward.1} parent=1 // pred_fallthru
      _
    // Predicated region
    $region6: #{forward.1} parent=1 // pred_check
      _
    $region7: #{forward.1} parent=1 // pred_check_branch
      %20 = sbr.rel (0) target = $region9
    $region8: #{forward.1} parent=1 // pred_region
      _
    $region9: #{forward.1} parent=1 // pred_fallthru
      _
    // Predicated region
    $region10: #{forward.1} parent=1 // pred_check
      _
    $region11: #{forward.1} parent=1 // pred_check_branch
      %22 = sbr.rel (0) target = $region13
    $region12: #{forward.1} parent=1 // pred_region
      %24 = vsyncadd [#allocation3], 0
      %s25 = sshll.u32 %s2, 4
      %s26 = int_to_ptr.hbm [resolvable:$true] %s25
      %s27 = sshll.u32 [#allocation2], 4
      %s28 = int_to_ptr.vmem [resolvable:$true] %s27
      %33 = dma.hbm_to_vmem [thread:$0]  %s26, 3840, %s28, [#allocation3], 128, 128, 8
    $region13: #{forward.1} parent=1 // pred_fallthru
      _
    // Predicated region
    $region14: #{forward.1} parent=1 // pred_check
      _
    $region15: #{forward.1} parent=1 // pred_check_branch
      %35 = sbr.rel (0) target = $region17
    $region16: #{forward.1} parent=1 // pred_region
      _
    $region17: #{forward.1} parent=1 // pred_fallthru
      _
    // Predicated region
    $region18: #{forward.1} parent=1 // pred_check
      _
    $region19: #{forward.1} parent=1 // pred_check_branch
      %37 = sbr.rel (0) target = $region21
    $region20: #{forward.1} parent=1 // pred_region
      %39 = vsyncadd [#allocation7], 0
      %s40 = sshll.u32 %s4, 4
      %s41 = int_to_ptr.hbm [resolvable:$true] %s40
      %s42 = sshll.u32 [#allocation6], 4
      %s43 = int_to_ptr.vmem [resolvable:$true] %s42
      %48 = dma.hbm_to_vmem [thread:$0]  %s41, 2048, %s43, [#allocation7], 128, 128, 8
    $region21: #{forward.1} parent=1 // pred_fallthru
      _
    // Predicated region
    $region22: #{forward.1} parent=1 // pred_check
      _
    $region23: #{forward.1} parent=1 // pred_check_branch
      %50 = sbr.rel (0) target = $region25
    $region24: #{forward.1} parent=1 // pred_region
      _
    $region25: #{forward.1} parent=1 // pred_fallthru
      _
    // Predicated region
    $region26: #{forward.1} parent=1 // pred_check
      _
    $region27: #{forward.1} parent=1 // pred_check_branch
      %52 = sbr.rel (0) target = $region29
    $region28: #{forward.1} parent=1 // pred_region
      _
    $region29: #{forward.1} parent=1 // pred_fallthru
      _
    // Predicated region
    $region30: #{forward.1} parent=1 // pred_check
      _
    $region31: #{forward.1} parent=1 // pred_check_branch
      %54 = sbr.rel (0) target = $region33
    $region32: #{forward.1} parent=1 // pred_region
      %56 = vsyncadd [#allocation5], 0
      %s58 = sshll.u32 %s7, 4
      %s59 = int_to_ptr.vmem [resolvable:$true] %s58
      %61 = dma.vmem_to_smem %s59, 16, [#allocation8], [#allocation5]
    $region33: #{forward.1} parent=1 // pred_fallthru
      _
    // Predicated region
    $region34: #{forward.1} parent=1 // pred_check
      _
    $region35: #{forward.1} parent=1 // pred_check_branch
      %63 = sbr.rel (0) target = $region37
    $region36: #{forward.1} parent=1 // pred_region
      %65 = dma.done [#allocation3], 3840
    $region37: #{forward.1} parent=1 // pred_fallthru
      _
    // Predicated region
    $region38: #{forward.1} parent=1 // pred_check
      _
    $region39: #{forward.1} parent=1 // pred_check_branch
      %67 = sbr.rel (0) target = $region41
    $region40: #{forward.1} parent=1 // pred_region
      %69 = dma.done [#allocation7], 2048
    $region41: #{forward.1} parent=1 // pred_fallthru
      _
    // Predicated region
    $region42: #{forward.1} parent=1 // pred_check
      _
    $region43: #{forward.1} parent=1 // pred_check_branch
      %71 = sbr.rel (0) target = $region45
    $region44: #{forward.1} parent=1 // pred_region
      %73 = dma.done [#allocation5], 16
    $region45: #{forward.1} parent=1 // pred_fallthru
      _
    %74 = sfence
    %v75 = vld [vmem:[%s5] sm:$0xff]
    %v76 = vld [vmem:[%s5 + $0x8] sm:$0xff]
    %v77 = vld [vmem:[%s5 + $0x10] sm:$0xff]
    %v78 = vld [vmem:[%s5 + $0x18] sm:$0xff]
    %v79 = vld [vmem:[%s5 + $0x20] sm:$0xff]
    %v80 = vld [vmem:[%s5 + $0x28] sm:$0xff]
    %v81 = vld [vmem:[%s5 + $0x30] sm:$0xff]
    %v82 = vld [vmem:[%s5 + $0x38] sm:$0xff]
    %v83 = vld [vmem:[%s5 + $0x40] sm:$0xff]
    %v84 = vld [vmem:[%s5 + $0x48] sm:$0xff]
    %v85 = vld [vmem:[%s5 + $0x50] sm:$0xff]
    %v86 = vld [vmem:[%s5 + $0x58] sm:$0xff]
    %v87 = vld [vmem:[%s5 + $0x60] sm:$0xff]
    %v88 = vld [vmem:[%s5 + $0x68] sm:$0xff]
    %v89 = vld [vmem:[%s5 + $0x70] sm:$0xff]
    %v90 = vld [vmem:[%s5 + $0x78] sm:$0xff]
    %v91 = vld [vmem:[%s6] sm:$0x3]
    %v92 = vld [vmem:[%s0] sm:$0xff]
    %v93 = vld [vmem:[%s0 + $0x8] sm:$0xff]
    %v94 = vld [vmem:[%s0 + $0x10] sm:$0xff]
    %v95 = vld [vmem:[%s0 + $0x18] sm:$0xff]
    %v96 = vld [vmem:[%s0 + $0x20] sm:$0xff]
    %v97 = vld [vmem:[%s0 + $0x28] sm:$0xff]
    %v98 = vld [vmem:[%s0 + $0x30] sm:$0xff]
    %v99 = vld [vmem:[%s0 + $0x38] sm:$0xff]
    %v100 = vld [vmem:[%s0 + $0x40] sm:$0xff]
    %v101 = vld [vmem:[%s0 + $0x48] sm:$0xff]
    %v102 = vld [vmem:[%s0 + $0x50] sm:$0xff]
    %v103 = vld [vmem:[%s0 + $0x58] sm:$0xff]
    %v104 = vld [vmem:[%s0 + $0x60] sm:$0x7f]
    %v105 = vld [vmem:[%s1] sm:$0xff]
    %v106 = vld [vmem:[%s1 + $0x8] sm:$0xff]
    %vm107 = vcmask 842752
    %v109 = vsel %vm107, %v105, 0
    %v112 = vsel %vm107, %v106, 0
    %vm114 = vcmask 1046528
    %v116 = vsel %vm114, %v104, 0
    %118 = vmatpush.msra.mxu0 0.0
    %119 = vmatpush.msra.mxu0 0.0
    %120 = vmatpush.msra.mxu0 0.0
    %121 = vmatpush.msra.mxu0 %v116
    %122 = vmatpush.msra.mxu0 %v103
    %123 = vmatpush.msra.mxu0 %v102
    %124 = vmatpush.msra.mxu0 %v101
    %125 = vmatpush.msra.mxu0 %v100
    %126 = vmatpush.msra.mxu0 %v99
    %127 = vmatpush.msra.mxu0 %v98
    %128 = vmatpush.msra.mxu0 %v97
    %129 = vmatpush.msra.mxu0 %v96
    %130 = vmatpush.msra.mxu0 %v95
    %131 = vmatpush.msra.mxu0 %v94
    %132 = vmatpush.msra.mxu0 %v93
    %133 = vmatpush.msra.mxu0 %v92
    %134 = vmatmul.f32.gmra.mxu0 %v109
    %v135 = vpop.f32.mrf.mxu0
    %v136 = vadd.f32 0.0, %v135
    %137 = vmatmul.f32.gmra.mxu0 %v112
    %v138 = vpop.f32.mrf.mxu0
    %v139 = vadd.f32 0.0, %v138
    %140 = vdwg.mxu0
    %vm141 = vcmp.ge.f32.partialorder %v136, 0.0
    %vm142 = vcmp.ge.f32.partialorder %v139, 0.0
    %v143 = vmul.f32 %v136, 0.01
    %v144 = vmul.f32 %v139, 0.01
    %v145 = vsel %vm141, %v136, %v143
    %v146 = vsel %vm142, %v139, %v144
    %v147 = vmul.f32 %v145, %v145
    %v148 = vmul.f32 %v146, %v146
    %149 = vmatpush.msra.mxu0 0.0078125
    %150 = vmatpush.msra.mxu0 0.0078125
    %151 = vmatpush.msra.mxu0 0.0078125
    %152 = vmatpush.msra.mxu0 0.0078125
    %153 = vmatpush.msra.mxu0 0.0078125
    %154 = vmatpush.msra.mxu0 0.0078125
    %155 = vmatpush.msra.mxu0 0.0078125
    %156 = vmatpush.msra.mxu0 0.0078125
    %157 = vmatpush.msra.mxu0 0.0078125
    %158 = vmatpush.msra.mxu0 0.0078125
    %159 = vmatpush.msra.mxu0 0.0078125
    %160 = vmatpush.msra.mxu0 0.0078125
    %161 = vmatpush.msra.mxu0 0.0078125
    %162 = vmatpush.msra.mxu0 0.0078125
    %163 = vmatpush.msra.mxu0 0.0078125
    %164 = vmatpush.msra.mxu0 0.0078125
    %165 = vmatmul.f32.gmra.mxu0 %v145
    %v166 = vpop.f32.mrf.mxu0
    %v167 = vadd.f32 0.0, %v166
    %168 = vmatmul.f32.gmra.mxu0 %v146
    %v169 = vpop.f32.mrf.mxu0
    %v170 = vadd.f32 0.0, %v169
    %171 = vmatmul.f32.gmra.mxu0 %v147
    %v172 = vpop.f32.mrf.mxu0
    %v173 = vadd.f32 0.0, %v172
    %174 = vmatmul.f32.gmra.mxu0 %v148
    %v175 = vpop.f32.mrf.mxu0
    %v176 = vadd.f32 0.0, %v175
    %177 = vdwg.mxu0
    %v178 = vmul.f32 %v167, %v167
    %v179 = vmul.f32 %v170, %v170
    %v180 = vsub.f32 %v173, %v178
    %v181 = vsub.f32 %v176, %v179
    %183 = vset.pattern.permute.xlu0 0
    %184 = vperm.xlu0 %183, %v167
    %v185 = vpop.permute.xlu0 %184
    %188 = vset.pattern.permute.xlu0 0
    %189 = vperm.xlu0 %188, %v170
    %v190 = vpop.permute.xlu0 %189
    %v192 = vsub.f32 %v145, %v185
    %v193 = vsub.f32 %v146, %v190
    %v194 = vadd.f32 %v180, 1e-05
    %v195 = vadd.f32 %v181, 1e-05
    %v196 = vrsqrt.pop %v194
    %v197 = vmul.f32 %v196, %v194
    %v198 = vmul.f32 %v197, %v196
    %v199 = vmul.f32 0.5, %v198
    %v200 = vsub.f32 1.5, %v199
    %v201 = vmul.f32 %v196, %v200
    %vm202 = vweird.f32 %v194
    %vm203 = vweird.f32 %v196
    %vm204 = vmor %vm202, %vm203
    %v205 = vsel %vm204, %v196, %v201
    %v206 = vrsqrt.pop %v195
    %v207 = vmul.f32 %v206, %v195
    %v208 = vmul.f32 %v207, %v206
    %v209 = vmul.f32 0.5, %v208
    %v210 = vsub.f32 1.5, %v209
    %v211 = vmul.f32 %v206, %v210
    %vm212 = vweird.f32 %v195
    %vm213 = vweird.f32 %v206
    %vm214 = vmor %vm212, %vm213
    %v215 = vsel %vm214, %v206, %v211
    %217 = vset.pattern.permute.xlu0 0
    %218 = vperm.xlu0 %217, %v205
    %v219 = vpop.permute.xlu0 %218
    %222 = vset.pattern.permute.xlu0 0
    %223 = vperm.xlu0 %222, %v215
    %v224 = vpop.permute.xlu0 %223
    %v226 = vmul.f32 %v192, %v219
    %v227 = vmul.f32 %v193, %v224
    %v228 = vld [vmem:[%s3] sm:$0xff]
    %v229 = vld [vmem:[%s3 + $0x8] sm:$0xff]
    %231 = vset.pattern.permute.xlu0 0
    %232 = vperm.xlu0 %231, %v228
    %v233 = vpop.permute.xlu0 %232
    %236 = vset.pattern.permute.xlu0 0
    %237 = vperm.xlu0 %236, %v229
    %v238 = vpop.permute.xlu0 %237
    %v240 = vmul.f32 %v226, %v233
    %v241 = vmul.f32 %v227, %v238
    %242 = vset.pattern.permute.xlu0 1
    %243 = vperm.xlu0 %242, %v228
    %v244 = vpop.permute.xlu0 %243
    %246 = vset.pattern.permute.xlu0 1
    %247 = vperm.xlu0 %246, %v229
    %v248 = vpop.permute.xlu0 %247
    %v250 = vadd.f32 %v240, %v244
    %v251 = vadd.f32 %v241, %v248
    %v252 = vld [vmem:[#allocation2] sm:$0xff]
    %v253 = vld [vmem:[#allocation2 + $0x8] sm:$0xff]
    %254 = vset.pattern.permute.xlu0 2
    %255 = vperm.xlu0 %254, %v228
    %v256 = vpop.permute.xlu0 %255
    %258 = vset.pattern.permute.xlu0 2
    %259 = vperm.xlu0 %258, %v229
    %v260 = vpop.permute.xlu0 %259
    %vm262 = vcmask 130048
    %v264 = vsel %vm262, %v252, 0
    %v267 = vsel %vm262, %v253, 0
    %269 = vmatpush.msra.mxu0 0.0
    %270 = vmatpush.msra.mxu0 0.0
    %271 = vmatpush.msra.mxu0 0.0
    %272 = vmatpush.msra.mxu0 0.0
    %273 = vmatpush.msra.mxu0 0.0
    %274 = vmatpush.msra.mxu0 0.0
    %275 = vmatpush.msra.mxu0 0.0
    %276 = vmatpush.msra.mxu0 0.0
    %277 = vmatpush.msra.mxu0 0.0
    %278 = vmatpush.msra.mxu0 0.0
    %279 = vmatpush.msra.mxu0 0.0
    %280 = vmatpush.msra.mxu0 0.0
    %281 = vmatpush.msra.mxu0 0.0
    %282 = vmatpush.msra.mxu0 0.0
    %283 = vmatpush.msra.mxu0 %v251
    %284 = vmatpush.msra.mxu0 %v250
    %285 = vmatmul.f32.gmra.mxu0 %v264
    %v286 = vpop.f32.mrf.mxu0
    %v287 = vadd.f32 %v256, %v286
    %288 = vmatmul.f32.gmra.mxu0 %v267
    %v289 = vpop.f32.mrf.mxu0
    %v290 = vadd.f32 %v260, %v289
    %291 = vdwg.mxu0
    %292 = vmax.xlane.f32.xlu0 %v287
    %v293 = vpop.xlane.xlu0 %292
    %294 = vmax.xlane.f32.xlu0 %v290
    %v295 = vpop.xlane.xlu0 %294
    %v296 = vsub.f32 %v287, %v293
    %v297 = vsub.f32 %v290, %v295
    %v298 = vmul.f32 %v296, 1.442695
    %v299 = vpow.pop %v298
    %v300 = vmul.f32 %v297, 1.442695
    %v301 = vpow.pop %v300
    %302 = vmatpush.msra.mxu0 %v90
    %303 = vmatpush.msra.mxu0 %v89
    %304 = vmatpush.msra.mxu0 %v88
    %305 = vmatpush.msra.mxu0 %v87
    %306 = vmatpush.msra.mxu0 %v86
    %307 = vmatpush.msra.mxu0 %v85
    %308 = vmatpush.msra.mxu0 %v84
    %309 = vmatpush.msra.mxu0 %v83
    %310 = vmatpush.msra.mxu0 %v82
    %311 = vmatpush.msra.mxu0 %v81
    %312 = vmatpush.msra.mxu0 %v80
    %313 = vmatpush.msra.mxu0 %v79
    %314 = vmatpush.msra.mxu0 %v78
    %315 = vmatpush.msra.mxu0 %v77
    %316 = vmatpush.msra.mxu0 %v76
    %317 = vmatpush.msra.mxu0 %v75
    %318 = vmatmul.f32.gmra.mxu0 %v299
    %v319 = vpop.f32.mrf.mxu0
    %v320 = vadd.f32 0.0, %v319
    %321 = vmatmul.f32.gmra.mxu0 %v301
    %v322 = vpop.f32.mrf.mxu0
    %v323 = vadd.f32 0.0, %v322
    %324 = vdwg.mxu0
    %vm325 = vcmask 15360
    %v327 = vsel %vm325, %v320, 0
    %v330 = vsel %vm325, %v323, 0
    %vm332 = vcmask 1041408
    %v334 = vsel %vm332, %v91, 0
    %336 = vmatpush.msra.mxu0 0.0
    %337 = vmatpush.msra.mxu0 0.0
    %338 = vmatpush.msra.mxu0 0.0
    %339 = vmatpush.msra.mxu0 0.0
    %340 = vmatpush.msra.mxu0 0.0
    %341 = vmatpush.msra.mxu0 0.0
    %342 = vmatpush.msra.mxu0 0.0
    %343 = vmatpush.msra.mxu0 0.0
    %344 = vmatpush.msra.mxu0 0.0
    %345 = vmatpush.msra.mxu0 0.0
    %346 = vmatpush.msra.mxu0 0.0
    %347 = vmatpush.msra.mxu0 0.0
    %348 = vmatpush.msra.mxu0 0.0
    %349 = vmatpush.msra.mxu0 0.0
    %350 = vmatpush.msra.mxu0 0.0
    %351 = vmatpush.msra.mxu0 %v334
    %352 = vmatmul.f32.gmra.mxu0 %v327
    %v353 = vpop.f32.mrf.mxu0
    %v354 = vadd.f32 0.0, %v353
    %355 = vmatmul.f32.gmra.mxu0 %v330
    %v356 = vpop.f32.mrf.mxu0
    %v357 = vadd.f32 0.0, %v356
    %358 = vdwg.mxu0
    %v359 = vrcp.pop %v354
    %v360 = vmul.f32 %v354, %v359
    %v361 = vsub.f32 1.0, %v360
    %v362 = vmul.f32 %v359, %v361
    %v363 = vadd.f32 %v359, %v362
    %vm364 = vweird.f32 %v354
    %vm365 = vweird.f32 %v359
    %vm366 = vmor %vm364, %vm365
    %v367 = vsel %vm366, %v359, %v363
    %v368 = vand.u32 2147483647, %v354
    %vm369 = vcmp.eq.f32.partialorder %v368, 8.507059e+37
    %v370 = vand.u32 %v354, 2147483648
    %v371 = vor.u32 1.1754944e-38, %v370
    %v372 = vsel %vm369, %v371, %v367
    %v373 = vrcp.pop %v357
    %v374 = vmul.f32 %v357, %v373
    %v375 = vsub.f32 1.0, %v374
    %v376 = vmul.f32 %v373, %v375
    %v377 = vadd.f32 %v373, %v376
    %vm378 = vweird.f32 %v357
    %vm379 = vweird.f32 %v373
    %vm380 = vmor %vm378, %vm379
    %v381 = vsel %vm380, %v373, %v377
    %v382 = vand.u32 2147483647, %v357
    %vm383 = vcmp.eq.f32.partialorder %v382, 8.507059e+37
    %v384 = vand.u32 %v357, 2147483648
    %v385 = vor.u32 1.1754944e-38, %v384
    %v386 = vsel %vm383, %v385, %v381
    %v387 = vmul.f32 %v299, %v372
    %v388 = vmul.f32 %v301, %v386
    %v389 = vperm.slane %v91, 0
    %v390 = vmul.f32 %v387, %v389
    %v391 = vmul.f32 %v388, %v389
    %392 = vmatpush.xpose.msra.mxu0 0.0
    %393 = vmatpush.xpose.msra.mxu0 0.0
    %394 = vmatpush.xpose.msra.mxu0 0.0
    %395 = vmatpush.xpose.msra.mxu0 0.0
    %396 = vmatpush.xpose.msra.mxu0 0.0
    %397 = vmatpush.xpose.msra.mxu0 0.0
    %398 = vmatpush.xpose.msra.mxu0 0.0
    %399 = vmatpush.xpose.msra.mxu0 0.0
    %400 = vmatpush.xpose.msra.mxu0 0.0
    %401 = vmatpush.xpose.msra.mxu0 0.0
    %402 = vmatpush.xpose.msra.mxu0 0.0
    %403 = vmatpush.xpose.msra.mxu0 0.0
    %404 = vmatpush.xpose.msra.mxu0 0.0
    %405 = vmatpush.xpose.msra.mxu0 0.0
    %406 = vmatpush.xpose.msra.mxu0 %v391
    %407 = vmatpush.xpose.msra.mxu0 %v390
    %408 = vmatmul.f32.gmra.mxu0 %v250
    %v409 = vpop.f32.mrf.mxu0
    %v410 = vadd.f32 0.0, %v409
    %411 = vmatmul.f32.gmra.mxu0 %v251
    %v412 = vpop.f32.mrf.mxu0
    %v413 = vadd.f32 0.0, %v412
    %414 = vdwg.mxu0
    %vm415 = vcmp.ge.f32.partialorder %v410, 0.0
    %vm416 = vcmp.ge.f32.partialorder %v413, 0.0
    %v417 = vmul.f32 %v410, 0.01
    %v418 = vmul.f32 %v413, 0.01
    %v419 = vsel %vm415, %v410, %v417
    %v420 = vsel %vm416, %v413, %v418
    %v421 = vperm.slane %v91, 1
    %v422 = vmul.f32 %v387, %v421
    %v423 = vmul.f32 %v388, %v421
    %424 = vmatpush.xpose.msra.mxu0 0.0
    %425 = vmatpush.xpose.msra.mxu0 0.0
    %426 = vmatpush.xpose.msra.mxu0 0.0
    %427 = vmatpush.xpose.msra.mxu0 0.0
    %428 = vmatpush.xpose.msra.mxu0 0.0
    %429 = vmatpush.xpose.msra.mxu0 0.0
    %430 = vmatpush.xpose.msra.mxu0 0.0
    %431 = vmatpush.xpose.msra.mxu0 0.0
    %432 = vmatpush.xpose.msra.mxu0 0.0
    %433 = vmatpush.xpose.msra.mxu0 0.0
    %434 = vmatpush.xpose.msra.mxu0 0.0
    %435 = vmatpush.xpose.msra.mxu0 0.0
    %436 = vmatpush.xpose.msra.mxu0 0.0
    %437 = vmatpush.xpose.msra.mxu0 0.0
    %438 = vmatpush.xpose.msra.mxu0 %v423
    %439 = vmatpush.xpose.msra.mxu0 %v422
    %440 = vmatmul.f32.gmra.mxu0 %v250
    %v441 = vpop.f32.mrf.mxu0
    %v442 = vadd.f32 0.0, %v441
    %443 = vmatmul.f32.gmra.mxu0 %v251
    %v444 = vpop.f32.mrf.mxu0
    %v445 = vadd.f32 0.0, %v444
    %446 = vdwg.mxu0
    %vm447 = vcmp.ge.f32.partialorder %v442, 0.0
    %vm448 = vcmp.ge.f32.partialorder %v445, 0.0
    %v449 = vmul.f32 %v442, 0.01
    %v450 = vmul.f32 %v445, 0.01
    %v451 = vsel %vm447, %v442, %v449
    %v452 = vsel %vm448, %v445, %v450
    %v454 = vsel %vm262, %v451, 0
    %v457 = vsel %vm262, %v452, 0
    %459 = vmatpush.msra.mxu0 0.0
    %460 = vmatpush.msra.mxu0 0.0
    %461 = vmatpush.msra.mxu0 0.0
    %462 = vmatpush.msra.mxu0 0.0
    %463 = vmatpush.msra.mxu0 0.0
    %464 = vmatpush.msra.mxu0 0.0
    %465 = vmatpush.msra.mxu0 0.0
    %466 = vmatpush.msra.mxu0 0.0
    %467 = vmatpush.msra.mxu0 0.0
    %468 = vmatpush.msra.mxu0 0.0
    %469 = vmatpush.msra.mxu0 0.0
    %470 = vmatpush.msra.mxu0 0.0
    %471 = vmatpush.msra.mxu0 0.0
    %472 = vmatpush.msra.mxu0 0.0
    %473 = vmatpush.msra.mxu0 %v423
    %474 = vmatpush.msra.mxu0 %v422
    %475 = vmatmul.f32.gmra.mxu0 %v454
    %v476 = vpop.f32.mrf.mxu0
    %v477 = vadd.f32 0.0, %v476
    %478 = vmatmul.f32.gmra.mxu0 %v457
    %v479 = vpop.f32.mrf.mxu0
    %v480 = vadd.f32 0.0, %v479
    %481 = vdwg.mxu0
    %v483 = vsel %vm262, %v419, 0
    %v486 = vsel %vm262, %v420, 0
    %488 = vmatpush.msra.mxu0 0.0
    %489 = vmatpush.msra.mxu0 0.0
    %490 = vmatpush.msra.mxu0 0.0
    %491 = vmatpush.msra.mxu0 0.0
    %492 = vmatpush.msra.mxu0 0.0
    %493 = vmatpush.msra.mxu0 0.0
    %494 = vmatpush.msra.mxu0 0.0
    %495 = vmatpush.msra.mxu0 0.0
    %496 = vmatpush.msra.mxu0 0.0
    %497 = vmatpush.msra.mxu0 0.0
    %498 = vmatpush.msra.mxu0 0.0
    %499 = vmatpush.msra.mxu0 0.0
    %500 = vmatpush.msra.mxu0 0.0
    %501 = vmatpush.msra.mxu0 0.0
    %502 = vmatpush.msra.mxu0 %v391
    %503 = vmatpush.msra.mxu0 %v390
    %504 = vmatmul.f32.gmra.mxu0 %v483
    %v505 = vpop.f32.mrf.mxu0
    %v506 = vadd.f32 %v477, %v505
    %507 = vmatmul.f32.gmra.mxu0 %v486
    %v508 = vpop.f32.mrf.mxu0
    %v509 = vadd.f32 %v480, %v508
    %510 = vdwg.mxu0
    %v511 = vmul.f32 %v506, %v506
    %v512 = vmul.f32 %v509, %v509
    %513 = vmatpush.msra.mxu0 0.0078125
    %514 = vmatpush.msra.mxu0 0.0078125
    %515 = vmatpush.msra.mxu0 0.0078125
    %516 = vmatpush.msra.mxu0 0.0078125
    %517 = vmatpush.msra.mxu0 0.0078125
    %518 = vmatpush.msra.mxu0 0.0078125
    %519 = vmatpush.msra.mxu0 0.0078125
    %520 = vmatpush.msra.mxu0 0.0078125
    %521 = vmatpush.msra.mxu0 0.0078125
    %522 = vmatpush.msra.mxu0 0.0078125
    %523 = vmatpush.msra.mxu0 0.0078125
    %524 = vmatpush.msra.mxu0 0.0078125
    %525 = vmatpush.msra.mxu0 0.0078125
    %526 = vmatpush.msra.mxu0 0.0078125
    %527 = vmatpush.msra.mxu0 0.0078125
    %528 = vmatpush.msra.mxu0 0.0078125
    %529 = vmatmul.f32.gmra.mxu0 %v506
    %v530 = vpop.f32.mrf.mxu0
    %v531 = vadd.f32 0.0, %v530
    %532 = vmatmul.f32.gmra.mxu0 %v509
    %v533 = vpop.f32.mrf.mxu0
    %v534 = vadd.f32 0.0, %v533
    %535 = vmatmul.f32.gmra.mxu0 %v511
    %v536 = vpop.f32.mrf.mxu0
    %v537 = vadd.f32 0.0, %v536
    %538 = vmatmul.f32.gmra.mxu0 %v512
    %v539 = vpop.f32.mrf.mxu0
    %v540 = vadd.f32 0.0, %v539
    %541 = vdwg.mxu0
    %v542 = vmul.f32 %v531, %v531
    %v543 = vmul.f32 %v534, %v534
    %v544 = vsub.f32 %v537, %v542
    %v545 = vsub.f32 %v540, %v543
    %547 = vset.pattern.permute.xlu0 0
    %548 = vperm.xlu0 %547, %v531
    %v549 = vpop.permute.xlu0 %548
    %552 = vset.pattern.permute.xlu0 0
    %553 = vperm.xlu0 %552, %v534
    %v554 = vpop.permute.xlu0 %553
    %v556 = vsub.f32 %v506, %v549
    %v557 = vsub.f32 %v509, %v554
    %v558 = vadd.f32 %v544, 1e-05
    %v559 = vadd.f32 %v545, 1e-05
    %v560 = vrsqrt.pop %v558
    %v561 = vmul.f32 %v560, %v558
    %v562 = vmul.f32 %v561, %v560
    %v563 = vmul.f32 0.5, %v562
    %v564 = vsub.f32 1.5, %v563
    %v565 = vmul.f32 %v560, %v564
    %vm566 = vweird.f32 %v558
    %vm567 = vweird.f32 %v560
    %vm568 = vmor %vm566, %vm567
    %v569 = vsel %vm568, %v560, %v565
    %v570 = vrsqrt.pop %v559
    %v571 = vmul.f32 %v570, %v559
    %v572 = vmul.f32 %v571, %v570
    %v573 = vmul.f32 0.5, %v572
    %v574 = vsub.f32 1.5, %v573
    %v575 = vmul.f32 %v570, %v574
    %vm576 = vweird.f32 %v559
    %vm577 = vweird.f32 %v570
    %vm578 = vmor %vm576, %vm577
    %v579 = vsel %vm578, %v570, %v575
    %581 = vset.pattern.permute.xlu0 0
    %582 = vperm.xlu0 %581, %v569
    %v583 = vpop.permute.xlu0 %582
    %586 = vset.pattern.permute.xlu0 0
    %587 = vperm.xlu0 %586, %v579
    %v588 = vpop.permute.xlu0 %587
    %v590 = vmul.f32 %v556, %v583
    %v591 = vmul.f32 %v557, %v588
    %592 = vset.pattern.permute.xlu0 3
    %593 = vperm.xlu0 %592, %v228
    %v594 = vpop.permute.xlu0 %593
    %596 = vset.pattern.permute.xlu0 3
    %597 = vperm.xlu0 %596, %v229
    %v598 = vpop.permute.xlu0 %597
    %v600 = vmul.f32 %v590, %v594
    %v601 = vmul.f32 %v591, %v598
    %602 = vset.pattern.permute.xlu0 4
    %603 = vperm.xlu0 %602, %v228
    %v604 = vpop.permute.xlu0 %603
    %606 = vset.pattern.permute.xlu0 4
    %607 = vperm.xlu0 %606, %v229
    %v608 = vpop.permute.xlu0 %607
    %v610 = vadd.f32 %v600, %v604
    %v611 = vadd.f32 %v601, %v608
    %v612 = vld [vmem:[#allocation2 + $0x18] sm:$0xff]
    %v613 = vld [vmem:[#allocation2 + $0x20] sm:$0xff]
    %614 = vset.pattern.permute.xlu0 5
    %615 = vperm.xlu0 %614, %v228
    %v616 = vpop.permute.xlu0 %615
    %618 = vset.pattern.permute.xlu0 5
    %619 = vperm.xlu0 %618, %v229
    %v620 = vpop.permute.xlu0 %619
    %v623 = vsel %vm262, %v612, 0
    %v626 = vsel %vm262, %v613, 0
    %628 = vmatpush.msra.mxu0 0.0
    %629 = vmatpush.msra.mxu0 0.0
    %630 = vmatpush.msra.mxu0 0.0
    %631 = vmatpush.msra.mxu0 0.0
    %632 = vmatpush.msra.mxu0 0.0
    %633 = vmatpush.msra.mxu0 0.0
    %634 = vmatpush.msra.mxu0 0.0
    %635 = vmatpush.msra.mxu0 0.0
    %636 = vmatpush.msra.mxu0 0.0
    %637 = vmatpush.msra.mxu0 0.0
    %638 = vmatpush.msra.mxu0 0.0
    %639 = vmatpush.msra.mxu0 0.0
    %640 = vmatpush.msra.mxu0 0.0
    %641 = vmatpush.msra.mxu0 0.0
    %642 = vmatpush.msra.mxu0 %v611
    %643 = vmatpush.msra.mxu0 %v610
    %644 = vmatmul.f32.gmra.mxu0 %v623
    %v645 = vpop.f32.mrf.mxu0
    %v646 = vadd.f32 %v616, %v645
    %647 = vmatmul.f32.gmra.mxu0 %v626
    %v648 = vpop.f32.mrf.mxu0
    %v649 = vadd.f32 %v620, %v648
    %650 = vdwg.mxu0
    %651 = vmax.xlane.f32.xlu0 %v646
    %v652 = vpop.xlane.xlu0 %651
    %653 = vmax.xlane.f32.xlu0 %v649
    %v654 = vpop.xlane.xlu0 %653
    %v655 = vsub.f32 %v646, %v652
    %v656 = vsub.f32 %v649, %v654
    %v657 = vmul.f32 %v655, 1.442695
    %v658 = vpow.pop %v657
    %v659 = vmul.f32 %v656, 1.442695
    %v660 = vpow.pop %v659
    %661 = vmatpush.msra.mxu0 %v90
    %662 = vmatpush.msra.mxu0 %v89
    %663 = vmatpush.msra.mxu0 %v88
    %664 = vmatpush.msra.mxu0 %v87
    %665 = vmatpush.msra.mxu0 %v86
    %666 = vmatpush.msra.mxu0 %v85
    %667 = vmatpush.msra.mxu0 %v84
    %668 = vmatpush.msra.mxu0 %v83
    %669 = vmatpush.msra.mxu0 %v82
    %670 = vmatpush.msra.mxu0 %v81
    %671 = vmatpush.msra.mxu0 %v80
    %672 = vmatpush.msra.mxu0 %v79
    %673 = vmatpush.msra.mxu0 %v78
    %674 = vmatpush.msra.mxu0 %v77
    %675 = vmatpush.msra.mxu0 %v76
    %676 = vmatpush.msra.mxu0 %v75
    %677 = vmatmul.f32.gmra.mxu0 %v658
    %v678 = vpop.f32.mrf.mxu0
    %v679 = vadd.f32 0.0, %v678
    %680 = vmatmul.f32.gmra.mxu0 %v660
    %v681 = vpop.f32.mrf.mxu0
    %v682 = vadd.f32 0.0, %v681
    %683 = vdwg.mxu0
    %v685 = vsel %vm325, %v679, 0
    %v688 = vsel %vm325, %v682, 0
    %690 = vmatpush.msra.mxu0 0.0
    %691 = vmatpush.msra.mxu0 0.0
    %692 = vmatpush.msra.mxu0 0.0
    %693 = vmatpush.msra.mxu0 0.0
    %694 = vmatpush.msra.mxu0 0.0
    %695 = vmatpush.msra.mxu0 0.0
    %696 = vmatpush.msra.mxu0 0.0
    %697 = vmatpush.msra.mxu0 0.0
    %698 = vmatpush.msra.mxu0 0.0
    %699 = vmatpush.msra.mxu0 0.0
    %700 = vmatpush.msra.mxu0 0.0
    %701 = vmatpush.msra.mxu0 0.0
    %702 = vmatpush.msra.mxu0 0.0
    %703 = vmatpush.msra.mxu0 0.0
    %704 = vmatpush.msra.mxu0 0.0
    %705 = vmatpush.msra.mxu0 %v334
    %706 = vmatmul.f32.gmra.mxu0 %v685
    %v707 = vpop.f32.mrf.mxu0
    %v708 = vadd.f32 0.0, %v707
    %709 = vmatmul.f32.gmra.mxu0 %v688
    %v710 = vpop.f32.mrf.mxu0
    %v711 = vadd.f32 0.0, %v710
    %712 = vdwg.mxu0
    %v713 = vrcp.pop %v708
    %v714 = vmul.f32 %v708, %v713
    %v715 = vsub.f32 1.0, %v714
    %v716 = vmul.f32 %v713, %v715
    %v717 = vadd.f32 %v713, %v716
    %vm718 = vweird.f32 %v708
    %vm719 = vweird.f32 %v713
    %vm720 = vmor %vm718, %vm719
    %v721 = vsel %vm720, %v713, %v717
    %v722 = vand.u32 2147483647, %v708
    %vm723 = vcmp.eq.f32.partialorder %v722, 8.507059e+37
    %v724 = vand.u32 %v708, 2147483648
    %v725 = vor.u32 1.1754944e-38, %v724
    %v726 = vsel %vm723, %v725, %v721
    %v727 = vrcp.pop %v711
    %v728 = vmul.f32 %v711, %v727
    %v729 = vsub.f32 1.0, %v728
    %v730 = vmul.f32 %v727, %v729
    %v731 = vadd.f32 %v727, %v730
    %vm732 = vweird.f32 %v711
    %vm733 = vweird.f32 %v727
    %vm734 = vmor %vm732, %vm733
    %v735 = vsel %vm734, %v727, %v731
    %v736 = vand.u32 2147483647, %v711
    %vm737 = vcmp.eq.f32.partialorder %v736, 8.507059e+37
    %v738 = vand.u32 %v711, 2147483648
    %v739 = vor.u32 1.1754944e-38, %v738
    %v740 = vsel %vm737, %v739, %v735
    %v741 = vmul.f32 %v658, %v726
    %v742 = vmul.f32 %v660, %v740
    %v743 = vmul.f32 %v741, %v389
    %v744 = vmul.f32 %v742, %v389
    %745 = vmatpush.xpose.msra.mxu0 0.0
    %746 = vmatpush.xpose.msra.mxu0 0.0
    %747 = vmatpush.xpose.msra.mxu0 0.0
    %748 = vmatpush.xpose.msra.mxu0 0.0
    %749 = vmatpush.xpose.msra.mxu0 0.0
    %750 = vmatpush.xpose.msra.mxu0 0.0
    %751 = vmatpush.xpose.msra.mxu0 0.0
    %752 = vmatpush.xpose.msra.mxu0 0.0
    %753 = vmatpush.xpose.msra.mxu0 0.0
    %754 = vmatpush.xpose.msra.mxu0 0.0
    %755 = vmatpush.xpose.msra.mxu0 0.0
    %756 = vmatpush.xpose.msra.mxu0 0.0
    %757 = vmatpush.xpose.msra.mxu0 0.0
    %758 = vmatpush.xpose.msra.mxu0 0.0
    %759 = vmatpush.xpose.msra.mxu0 %v744
    %760 = vmatpush.xpose.msra.mxu0 %v743
    %761 = vmatmul.f32.gmra.mxu0 %v250
    %v762 = vpop.f32.mrf.mxu0
    %v763 = vadd.f32 0.0, %v762
    %764 = vmatmul.f32.gmra.mxu0 %v251
    %v765 = vpop.f32.mrf.mxu0
    %v766 = vadd.f32 0.0, %v765
    %767 = vdwg.mxu0
    %vm768 = vcmp.ge.f32.partialorder %v763, 0.0
    %vm769 = vcmp.ge.f32.partialorder %v766, 0.0
    %v770 = vmul.f32 %v763, 0.01
    %v771 = vmul.f32 %v766, 0.01
    %v772 = vsel %vm768, %v763, %v770
    %v773 = vsel %vm769, %v766, %v771
    %v774 = vmul.f32 %v741, %v421
    %v775 = vmul.f32 %v742, %v421
    %776 = vmatpush.xpose.msra.mxu0 0.0
    %777 = vmatpush.xpose.msra.mxu0 0.0
    %778 = vmatpush.xpose.msra.mxu0 0.0
    %779 = vmatpush.xpose.msra.mxu0 0.0
    %780 = vmatpush.xpose.msra.mxu0 0.0
    %781 = vmatpush.xpose.msra.mxu0 0.0
    %782 = vmatpush.xpose.msra.mxu0 0.0
    %783 = vmatpush.xpose.msra.mxu0 0.0
    %784 = vmatpush.xpose.msra.mxu0 0.0
    %785 = vmatpush.xpose.msra.mxu0 0.0
    %786 = vmatpush.xpose.msra.mxu0 0.0
    %787 = vmatpush.xpose.msra.mxu0 0.0
    %788 = vmatpush.xpose.msra.mxu0 0.0
    %789 = vmatpush.xpose.msra.mxu0 0.0
    %790 = vmatpush.xpose.msra.mxu0 %v775
    %791 = vmatpush.xpose.msra.mxu0 %v774
    %792 = vmatmul.f32.gmra.mxu0 %v250
    %v793 = vpop.f32.mrf.mxu0
    %v794 = vadd.f32 0.0, %v793
    %795 = vmatmul.f32.gmra.mxu0 %v251
    %v796 = vpop.f32.mrf.mxu0
    %v797 = vadd.f32 0.0, %v796
    %798 = vdwg.mxu0
    %vm799 = vcmp.ge.f32.partialorder %v794, 0.0
    %vm800 = vcmp.ge.f32.partialorder %v797, 0.0
    %v801 = vmul.f32 %v794, 0.01
    %v802 = vmul.f32 %v797, 0.01
    %v803 = vsel %vm799, %v794, %v801
    %v804 = vsel %vm800, %v797, %v802
    %v806 = vsel %vm262, %v803, 0
    %v809 = vsel %vm262, %v804, 0
    %811 = vmatpush.msra.mxu0 0.0
    %812 = vmatpush.msra.mxu0 0.0
    %813 = vmatpush.msra.mxu0 0.0
    %814 = vmatpush.msra.mxu0 0.0
    %815 = vmatpush.msra.mxu0 0.0
    %816 = vmatpush.msra.mxu0 0.0
    %817 = vmatpush.msra.mxu0 0.0
    %818 = vmatpush.msra.mxu0 0.0
    %819 = vmatpush.msra.mxu0 0.0
    %820 = vmatpush.msra.mxu0 0.0
    %821 = vmatpush.msra.mxu0 0.0
    %822 = vmatpush.msra.mxu0 0.0
    %823 = vmatpush.msra.mxu0 0.0
    %824 = vmatpush.msra.mxu0 0.0
    %825 = vmatpush.msra.mxu0 %v775
    %826 = vmatpush.msra.mxu0 %v774
    %827 = vmatmul.f32.gmra.mxu0 %v806
    %v828 = vpop.f32.mrf.mxu0
    %v829 = vadd.f32 0.0, %v828
    %830 = vmatmul.f32.gmra.mxu0 %v809
    %v831 = vpop.f32.mrf.mxu0
    %v832 = vadd.f32 0.0, %v831
    %833 = vdwg.mxu0
    %v835 = vsel %vm262, %v772, 0
    %v838 = vsel %vm262, %v773, 0
    %840 = vmatpush.msra.mxu0 0.0
    %841 = vmatpush.msra.mxu0 0.0
    %842 = vmatpush.msra.mxu0 0.0
    %843 = vmatpush.msra.mxu0 0.0
    %844 = vmatpush.msra.mxu0 0.0
    %845 = vmatpush.msra.mxu0 0.0
    %846 = vmatpush.msra.mxu0 0.0
    %847 = vmatpush.msra.mxu0 0.0
    %848 = vmatpush.msra.mxu0 0.0
    %849 = vmatpush.msra.mxu0 0.0
    %850 = vmatpush.msra.mxu0 0.0
    %851 = vmatpush.msra.mxu0 0.0
    %852 = vmatpush.msra.mxu0 0.0
    %853 = vmatpush.msra.mxu0 0.0
    %854 = vmatpush.msra.mxu0 %v744
    %855 = vmatpush.msra.mxu0 %v743
    %856 = vmatmul.f32.gmra.mxu0 %v835
    %v857 = vpop.f32.mrf.mxu0
    %v858 = vadd.f32 %v829, %v857
    %859 = vmatmul.f32.gmra.mxu0 %v838
    %v860 = vpop.f32.mrf.mxu0
    %v861 = vadd.f32 %v832, %v860
    %862 = vdwg.mxu0
    %v863 = vadd.f32 %v858, %v250
    %v864 = vadd.f32 %v861, %v251
    %v865 = vmul.f32 %v863, %v863
    %v866 = vmul.f32 %v864, %v864
    %867 = vmatpush.msra.mxu0 0.0078125
    %868 = vmatpush.msra.mxu0 0.0078125
    %869 = vmatpush.msra.mxu0 0.0078125
    %870 = vmatpush.msra.mxu0 0.0078125
    %871 = vmatpush.msra.mxu0 0.0078125
    %872 = vmatpush.msra.mxu0 0.0078125
    %873 = vmatpush.msra.mxu0 0.0078125
    %874 = vmatpush.msra.mxu0 0.0078125
    %875 = vmatpush.msra.mxu0 0.0078125
    %876 = vmatpush.msra.mxu0 0.0078125
    %877 = vmatpush.msra.mxu0 0.0078125
    %878 = vmatpush.msra.mxu0 0.0078125
    %879 = vmatpush.msra.mxu0 0.0078125
    %880 = vmatpush.msra.mxu0 0.0078125
    %881 = vmatpush.msra.mxu0 0.0078125
    %882 = vmatpush.msra.mxu0 0.0078125
    %883 = vmatmul.f32.gmra.mxu0 %v863
    %v884 = vpop.f32.mrf.mxu0
    %v885 = vadd.f32 0.0, %v884
    %886 = vmatmul.f32.gmra.mxu0 %v864
    %v887 = vpop.f32.mrf.mxu0
    %v888 = vadd.f32 0.0, %v887
    %889 = vmatmul.f32.gmra.mxu0 %v865
    %v890 = vpop.f32.mrf.mxu0
    %v891 = vadd.f32 0.0, %v890
    %892 = vmatmul.f32.gmra.mxu0 %v866
    %v893 = vpop.f32.mrf.mxu0
    %v894 = vadd.f32 0.0, %v893
    %895 = vdwg.mxu0
    %v896 = vmul.f32 %v885, %v885
    %v897 = vmul.f32 %v888, %v888
    %v898 = vsub.f32 %v891, %v896
    %v899 = vsub.f32 %v894, %v897
    %901 = vset.pattern.permute.xlu0 0
    %902 = vperm.xlu0 %901, %v885
    %v903 = vpop.permute.xlu0 %902
    %906 = vset.pattern.permute.xlu0 0
    %907 = vperm.xlu0 %906, %v888
    %v908 = vpop.permute.xlu0 %907
    %v910 = vsub.f32 %v863, %v903
    %v911 = vsub.f32 %v864, %v908
    %v912 = vadd.f32 %v898, 1e-05
    %v913 = vadd.f32 %v899, 1e-05
    %v914 = vrsqrt.pop %v912
    %v915 = vmul.f32 %v914, %v912
    %v916 = vmul.f32 %v915, %v914
    %v917 = vmul.f32 0.5, %v916
    %v918 = vsub.f32 1.5, %v917
    %v919 = vmul.f32 %v914, %v918
    %vm920 = vweird.f32 %v912
    %vm921 = vweird.f32 %v914
    %vm922 = vmor %vm920, %vm921
    %v923 = vsel %vm922, %v914, %v919
    %v924 = vrsqrt.pop %v913
    %v925 = vmul.f32 %v924, %v913
    %v926 = vmul.f32 %v925, %v924
    %v927 = vmul.f32 0.5, %v926
    %v928 = vsub.f32 1.5, %v927
    %v929 = vmul.f32 %v924, %v928
    %vm930 = vweird.f32 %v913
    %vm931 = vweird.f32 %v924
    %vm932 = vmor %vm930, %vm931
    %v933 = vsel %vm932, %v924, %v929
    %935 = vset.pattern.permute.xlu0 0
    %936 = vperm.xlu0 %935, %v923
    %v937 = vpop.permute.xlu0 %936
    %940 = vset.pattern.permute.xlu0 0
    %941 = vperm.xlu0 %940, %v933
    %v942 = vpop.permute.xlu0 %941
    %v944 = vmul.f32 %v910, %v937
    %v945 = vmul.f32 %v911, %v942
    %946 = vset.pattern.permute.xlu0 6
    %947 = vperm.xlu0 %946, %v228
    %v948 = vpop.permute.xlu0 %947
    %950 = vset.pattern.permute.xlu0 6
    %951 = vperm.xlu0 %950, %v229
    %v952 = vpop.permute.xlu0 %951
    %v954 = vmul.f32 %v944, %v948
    %v955 = vmul.f32 %v945, %v952
    %956 = vset.pattern.permute.xlu0 7
    %957 = vperm.xlu0 %956, %v228
    %v958 = vpop.permute.xlu0 %957
    %960 = vset.pattern.permute.xlu0 7
    %961 = vperm.xlu0 %960, %v229
    %v962 = vpop.permute.xlu0 %961
    %v964 = vadd.f32 %v954, %v958
    %v965 = vadd.f32 %v955, %v962
    %v966 = vld [vmem:[#allocation2 + $0x30] sm:$0xff]
    %v967 = vld [vmem:[#allocation2 + $0x38] sm:$0xff]
    %968 = vset.pattern.permute.xlu0 8
    %969 = vperm.xlu0 %968, %v228
    %v970 = vpop.permute.xlu0 %969
    %972 = vset.pattern.permute.xlu0 8
    %973 = vperm.xlu0 %972, %v229
    %v974 = vpop.permute.xlu0 %973
    %v977 = vsel %vm262, %v966, 0
    %v980 = vsel %vm262, %v967, 0
    %982 = vmatpush.msra.mxu0 0.0
    %983 = vmatpush.msra.mxu0 0.0
    %984 = vmatpush.msra.mxu0 0.0
    %985 = vmatpush.msra.mxu0 0.0
    %986 = vmatpush.msra.mxu0 0.0
    %987 = vmatpush.msra.mxu0 0.0
    %988 = vmatpush.msra.mxu0 0.0
    %989 = vmatpush.msra.mxu0 0.0
    %990 = vmatpush.msra.mxu0 0.0
    %991 = vmatpush.msra.mxu0 0.0
    %992 = vmatpush.msra.mxu0 0.0
    %993 = vmatpush.msra.mxu0 0.0
    %994 = vmatpush.msra.mxu0 0.0
    %995 = vmatpush.msra.mxu0 0.0
    %996 = vmatpush.msra.mxu0 %v965
    %997 = vmatpush.msra.mxu0 %v964
    %998 = vmatmul.f32.gmra.mxu0 %v977
    %v999 = vpop.f32.mrf.mxu0
    %v1000 = vadd.f32 %v970, %v999
    %1001 = vmatmul.f32.gmra.mxu0 %v980
    %v1002 = vpop.f32.mrf.mxu0
    %v1003 = vadd.f32 %v974, %v1002
    %1004 = vdwg.mxu0
    %1005 = vmax.xlane.f32.xlu0 %v1000
    %v1006 = vpop.xlane.xlu0 %1005
    %1007 = vmax.xlane.f32.xlu0 %v1003
    %v1008 = vpop.xlane.xlu0 %1007
    %v1009 = vsub.f32 %v1000, %v1006
    %v1010 = vsub.f32 %v1003, %v1008
    %v1011 = vmul.f32 %v1009, 1.442695
    %v1012 = vpow.pop %v1011
    %v1013 = vmul.f32 %v1010, 1.442695
    %v1014 = vpow.pop %v1013
    %1015 = vmatpush.msra.mxu0 %v90
    %1016 = vmatpush.msra.mxu0 %v89
    %1017 = vmatpush.msra.mxu0 %v88
    %1018 = vmatpush.msra.mxu0 %v87
    %1019 = vmatpush.msra.mxu0 %v86
    %1020 = vmatpush.msra.mxu0 %v85
    %1021 = vmatpush.msra.mxu0 %v84
    %1022 = vmatpush.msra.mxu0 %v83
    %1023 = vmatpush.msra.mxu0 %v82
    %1024 = vmatpush.msra.mxu0 %v81
    %1025 = vmatpush.msra.mxu0 %v80
    %1026 = vmatpush.msra.mxu0 %v79
    %1027 = vmatpush.msra.mxu0 %v78
    %1028 = vmatpush.msra.mxu0 %v77
    %1029 = vmatpush.msra.mxu0 %v76
    %1030 = vmatpush.msra.mxu0 %v75
    %1031 = vmatmul.f32.gmra.mxu0 %v1012
    %v1032 = vpop.f32.mrf.mxu0
    %v1033 = vadd.f32 0.0, %v1032
    %1034 = vmatmul.f32.gmra.mxu0 %v1014
    %v1035 = vpop.f32.mrf.mxu0
    %v1036 = vadd.f32 0.0, %v1035
    %1037 = vdwg.mxu0
    %v1039 = vsel %vm325, %v1033, 0
    %v1042 = vsel %vm325, %v1036, 0
    %1044 = vmatpush.msra.mxu0 0.0
    %1045 = vmatpush.msra.mxu0 0.0
    %1046 = vmatpush.msra.mxu0 0.0
    %1047 = vmatpush.msra.mxu0 0.0
    %1048 = vmatpush.msra.mxu0 0.0
    %1049 = vmatpush.msra.mxu0 0.0
    %1050 = vmatpush.msra.mxu0 0.0
    %1051 = vmatpush.msra.mxu0 0.0
    %1052 = vmatpush.msra.mxu0 0.0
    %1053 = vmatpush.msra.mxu0 0.0
    %1054 = vmatpush.msra.mxu0 0.0
    %1055 = vmatpush.msra.mxu0 0.0
    %1056 = vmatpush.msra.mxu0 0.0
    %1057 = vmatpush.msra.mxu0 0.0
    %1058 = vmatpush.msra.mxu0 0.0
    %1059 = vmatpush.msra.mxu0 %v334
    %1060 = vmatmul.f32.gmra.mxu0 %v1039
    %v1061 = vpop.f32.mrf.mxu0
    %v1062 = vadd.f32 0.0, %v1061
    %1063 = vmatmul.f32.gmra.mxu0 %v1042
    %v1064 = vpop.f32.mrf.mxu0
    %v1065 = vadd.f32 0.0, %v1064
    %1066 = vdwg.mxu0
    %v1067 = vrcp.pop %v1062
    %v1068 = vmul.f32 %v1062, %v1067
    %v1069 = vsub.f32 1.0, %v1068
    %v1070 = vmul.f32 %v1067, %v1069
    %v1071 = vadd.f32 %v1067, %v1070
    %vm1072 = vweird.f32 %v1062
    %vm1073 = vweird.f32 %v1067
    %vm1074 = vmor %vm1072, %vm1073
    %v1075 = vsel %vm1074, %v1067, %v1071
    %v1076 = vand.u32 2147483647, %v1062
    %vm1077 = vcmp.eq.f32.partialorder %v1076, 8.507059e+37
    %v1078 = vand.u32 %v1062, 2147483648
    %v1079 = vor.u32 1.1754944e-38, %v1078
    %v1080 = vsel %vm1077, %v1079, %v1075
    %v1081 = vrcp.pop %v1065
    %v1082 = vmul.f32 %v1065, %v1081
    %v1083 = vsub.f32 1.0, %v1082
    %v1084 = vmul.f32 %v1081, %v1083
    %v1085 = vadd.f32 %v1081, %v1084
    %vm1086 = vweird.f32 %v1065
    %vm1087 = vweird.f32 %v1081
    %vm1088 = vmor %vm1086, %vm1087
    %v1089 = vsel %vm1088, %v1081, %v1085
    %v1090 = vand.u32 2147483647, %v1065
    %vm1091 = vcmp.eq.f32.partialorder %v1090, 8.507059e+37
    %v1092 = vand.u32 %v1065, 2147483648
    %v1093 = vor.u32 1.1754944e-38, %v1092
    %v1094 = vsel %vm1091, %v1093, %v1089
    %v1095 = vmul.f32 %v1012, %v1080
    %v1096 = vmul.f32 %v1014, %v1094
    %v1097 = vmul.f32 %v1095, %v389
    %v1098 = vmul.f32 %v1096, %v389
    %1099 = vmatpush.xpose.msra.mxu0 0.0
    %1100 = vmatpush.xpose.msra.mxu0 0.0
    %1101 = vmatpush.xpose.msra.mxu0 0.0
    %1102 = vmatpush.xpose.msra.mxu0 0.0
    %1103 = vmatpush.xpose.msra.mxu0 0.0
    %1104 = vmatpush.xpose.msra.mxu0 0.0
    %1105 = vmatpush.xpose.msra.mxu0 0.0
    %1106 = vmatpush.xpose.msra.mxu0 0.0
    %1107 = vmatpush.xpose.msra.mxu0 0.0
    %1108 = vmatpush.xpose.msra.mxu0 0.0
    %1109 = vmatpush.xpose.msra.mxu0 0.0
    %1110 = vmatpush.xpose.msra.mxu0 0.0
    %1111 = vmatpush.xpose.msra.mxu0 0.0
    %1112 = vmatpush.xpose.msra.mxu0 0.0
    %1113 = vmatpush.xpose.msra.mxu0 %v1098
    %1114 = vmatpush.xpose.msra.mxu0 %v1097
    %1115 = vmatmul.f32.gmra.mxu0 %v964
    %v1116 = vpop.f32.mrf.mxu0
    %v1117 = vadd.f32 0.0, %v1116
    %1118 = vmatmul.f32.gmra.mxu0 %v965
    %v1119 = vpop.f32.mrf.mxu0
    %v1120 = vadd.f32 0.0, %v1119
    %1121 = vdwg.mxu0
    %vm1122 = vcmp.ge.f32.partialorder %v1117, 0.0
    %vm1123 = vcmp.ge.f32.partialorder %v1120, 0.0
    %v1124 = vmul.f32 %v1117, 0.01
    %v1125 = vmul.f32 %v1120, 0.01
    %v1126 = vsel %vm1122, %v1117, %v1124
    %v1127 = vsel %vm1123, %v1120, %v1125
    %v1128 = vmul.f32 %v1095, %v421
    %v1129 = vmul.f32 %v1096, %v421
    %1130 = vmatpush.xpose.msra.mxu0 0.0
    %1131 = vmatpush.xpose.msra.mxu0 0.0
    %1132 = vmatpush.xpose.msra.mxu0 0.0
    %1133 = vmatpush.xpose.msra.mxu0 0.0
    %1134 = vmatpush.xpose.msra.mxu0 0.0
    %1135 = vmatpush.xpose.msra.mxu0 0.0
    %1136 = vmatpush.xpose.msra.mxu0 0.0
    %1137 = vmatpush.xpose.msra.mxu0 0.0
    %1138 = vmatpush.xpose.msra.mxu0 0.0
    %1139 = vmatpush.xpose.msra.mxu0 0.0
    %1140 = vmatpush.xpose.msra.mxu0 0.0
    %1141 = vmatpush.xpose.msra.mxu0 0.0
    %1142 = vmatpush.xpose.msra.mxu0 0.0
    %1143 = vmatpush.xpose.msra.mxu0 0.0
    %1144 = vmatpush.xpose.msra.mxu0 %v1129
    %1145 = vmatpush.xpose.msra.mxu0 %v1128
    %1146 = vmatmul.f32.gmra.mxu0 %v964
    %v1147 = vpop.f32.mrf.mxu0
    %v1148 = vadd.f32 0.0, %v1147
    %1149 = vmatmul.f32.gmra.mxu0 %v965
    %v1150 = vpop.f32.mrf.mxu0
    %v1151 = vadd.f32 0.0, %v1150
    %1152 = vdwg.mxu0
    %vm1153 = vcmp.ge.f32.partialorder %v1148, 0.0
    %vm1154 = vcmp.ge.f32.partialorder %v1151, 0.0
    %v1155 = vmul.f32 %v1148, 0.01
    %v1156 = vmul.f32 %v1151, 0.01
    %v1157 = vsel %vm1153, %v1148, %v1155
    %v1158 = vsel %vm1154, %v1151, %v1156
    %v1160 = vsel %vm262, %v1157, 0
    %v1163 = vsel %vm262, %v1158, 0
    %1165 = vmatpush.msra.mxu0 0.0
    %1166 = vmatpush.msra.mxu0 0.0
    %1167 = vmatpush.msra.mxu0 0.0
    %1168 = vmatpush.msra.mxu0 0.0
    %1169 = vmatpush.msra.mxu0 0.0
    %1170 = vmatpush.msra.mxu0 0.0
    %1171 = vmatpush.msra.mxu0 0.0
    %1172 = vmatpush.msra.mxu0 0.0
    %1173 = vmatpush.msra.mxu0 0.0
    %1174 = vmatpush.msra.mxu0 0.0
    %1175 = vmatpush.msra.mxu0 0.0
    %1176 = vmatpush.msra.mxu0 0.0
    %1177 = vmatpush.msra.mxu0 0.0
    %1178 = vmatpush.msra.mxu0 0.0
    %1179 = vmatpush.msra.mxu0 %v1129
    %1180 = vmatpush.msra.mxu0 %v1128
    %1181 = vmatmul.f32.gmra.mxu0 %v1160
    %v1182 = vpop.f32.mrf.mxu0
    %v1183 = vadd.f32 0.0, %v1182
    %1184 = vmatmul.f32.gmra.mxu0 %v1163
    %v1185 = vpop.f32.mrf.mxu0
    %v1186 = vadd.f32 0.0, %v1185
    %1187 = vdwg.mxu0
    %v1189 = vsel %vm262, %v1126, 0
    %v1192 = vsel %vm262, %v1127, 0
    %1194 = vmatpush.msra.mxu0 0.0
    %1195 = vmatpush.msra.mxu0 0.0
    %1196 = vmatpush.msra.mxu0 0.0
    %1197 = vmatpush.msra.mxu0 0.0
    %1198 = vmatpush.msra.mxu0 0.0
    %1199 = vmatpush.msra.mxu0 0.0
    %1200 = vmatpush.msra.mxu0 0.0
    %1201 = vmatpush.msra.mxu0 0.0
    %1202 = vmatpush.msra.mxu0 0.0
    %1203 = vmatpush.msra.mxu0 0.0
    %1204 = vmatpush.msra.mxu0 0.0
    %1205 = vmatpush.msra.mxu0 0.0
    %1206 = vmatpush.msra.mxu0 0.0
    %1207 = vmatpush.msra.mxu0 0.0
    %1208 = vmatpush.msra.mxu0 %v1098
    %1209 = vmatpush.msra.mxu0 %v1097
    %1210 = vmatmul.f32.gmra.mxu0 %v1189
    %v1211 = vpop.f32.mrf.mxu0
    %v1212 = vadd.f32 %v1183, %v1211
    %1213 = vmatmul.f32.gmra.mxu0 %v1192
    %v1214 = vpop.f32.mrf.mxu0
    %v1215 = vadd.f32 %v1186, %v1214
    %1216 = vdwg.mxu0
    %v1217 = vmul.f32 %v1212, %v1212
    %v1218 = vmul.f32 %v1215, %v1215
    %1219 = vmatpush.msra.mxu0 0.0078125
    %1220 = vmatpush.msra.mxu0 0.0078125
    %1221 = vmatpush.msra.mxu0 0.0078125
    %1222 = vmatpush.msra.mxu0 0.0078125
    %1223 = vmatpush.msra.mxu0 0.0078125
    %1224 = vmatpush.msra.mxu0 0.0078125
    %1225 = vmatpush.msra.mxu0 0.0078125
    %1226 = vmatpush.msra.mxu0 0.0078125
    %1227 = vmatpush.msra.mxu0 0.0078125
    %1228 = vmatpush.msra.mxu0 0.0078125
    %1229 = vmatpush.msra.mxu0 0.0078125
    %1230 = vmatpush.msra.mxu0 0.0078125
    %1231 = vmatpush.msra.mxu0 0.0078125
    %1232 = vmatpush.msra.mxu0 0.0078125
    %1233 = vmatpush.msra.mxu0 0.0078125
    %1234 = vmatpush.msra.mxu0 0.0078125
    %1235 = vmatmul.f32.gmra.mxu0 %v1212
    %v1236 = vpop.f32.mrf.mxu0
    %v1237 = vadd.f32 0.0, %v1236
    %1238 = vmatmul.f32.gmra.mxu0 %v1215
    %v1239 = vpop.f32.mrf.mxu0
    %v1240 = vadd.f32 0.0, %v1239
    %1241 = vmatmul.f32.gmra.mxu0 %v1217
    %v1242 = vpop.f32.mrf.mxu0
    %v1243 = vadd.f32 0.0, %v1242
    %1244 = vmatmul.f32.gmra.mxu0 %v1218
    %v1245 = vpop.f32.mrf.mxu0
    %v1246 = vadd.f32 0.0, %v1245
    %1247 = vdwg.mxu0
    %v1248 = vmul.f32 %v1237, %v1237
    %v1249 = vmul.f32 %v1240, %v1240
    %v1250 = vsub.f32 %v1243, %v1248
    %v1251 = vsub.f32 %v1246, %v1249
    %1253 = vset.pattern.permute.xlu0 0
    %1254 = vperm.xlu0 %1253, %v1237
    %v1255 = vpop.permute.xlu0 %1254
    %1258 = vset.pattern.permute.xlu0 0
    %1259 = vperm.xlu0 %1258, %v1240
    %v1260 = vpop.permute.xlu0 %1259
    %v1262 = vsub.f32 %v1212, %v1255
    %v1263 = vsub.f32 %v1215, %v1260
    %v1264 = vadd.f32 %v1250, 1e-05
    %v1265 = vadd.f32 %v1251, 1e-05
    %v1266 = vrsqrt.pop %v1264
    %v1267 = vmul.f32 %v1266, %v1264
    %v1268 = vmul.f32 %v1267, %v1266
    %v1269 = vmul.f32 0.5, %v1268
    %v1270 = vsub.f32 1.5, %v1269
    %v1271 = vmul.f32 %v1266, %v1270
    %vm1272 = vweird.f32 %v1264
    %vm1273 = vweird.f32 %v1266
    %vm1274 = vmor %vm1272, %vm1273
    %v1275 = vsel %vm1274, %v1266, %v1271
    %v1276 = vrsqrt.pop %v1265
    %v1277 = vmul.f32 %v1276, %v1265
    %v1278 = vmul.f32 %v1277, %v1276
    %v1279 = vmul.f32 0.5, %v1278
    %v1280 = vsub.f32 1.5, %v1279
    %v1281 = vmul.f32 %v1276, %v1280
    %vm1282 = vweird.f32 %v1265
    %vm1283 = vweird.f32 %v1276
    %vm1284 = vmor %vm1282, %vm1283
    %v1285 = vsel %vm1284, %v1276, %v1281
    %1287 = vset.pattern.permute.xlu0 0
    %1288 = vperm.xlu0 %1287, %v1275
    %v1289 = vpop.permute.xlu0 %1288
    %1292 = vset.pattern.permute.xlu0 0
    %1293 = vperm.xlu0 %1292, %v1285
    %v1294 = vpop.permute.xlu0 %1293
    %v1296 = vmul.f32 %v1262, %v1289
    %v1297 = vmul.f32 %v1263, %v1294
    %1298 = vset.pattern.permute.xlu0 9
    %1299 = vperm.xlu0 %1298, %v228
    %v1300 = vpop.permute.xlu0 %1299
    %1302 = vset.pattern.permute.xlu0 9
    %1303 = vperm.xlu0 %1302, %v229
    %v1304 = vpop.permute.xlu0 %1303
    %v1306 = vmul.f32 %v1296, %v1300
    %v1307 = vmul.f32 %v1297, %v1304
    %1308 = vset.pattern.permute.xlu0 10
    %1309 = vperm.xlu0 %1308, %v228
    %v1310 = vpop.permute.xlu0 %1309
    %1312 = vset.pattern.permute.xlu0 10
    %1313 = vperm.xlu0 %1312, %v229
    %v1314 = vpop.permute.xlu0 %1313
    %v1316 = vadd.f32 %v1306, %v1310
    %v1317 = vadd.f32 %v1307, %v1314
    %v1318 = vld [vmem:[#allocation2 + $0x48] sm:$0xff]
    %v1319 = vld [vmem:[#allocation2 + $0x50] sm:$0xff]
    %1320 = vset.pattern.permute.xlu0 11
    %1321 = vperm.xlu0 %1320, %v228
    %v1322 = vpop.permute.xlu0 %1321
    %1324 = vset.pattern.permute.xlu0 11
    %1325 = vperm.xlu0 %1324, %v229
    %v1326 = vpop.permute.xlu0 %1325
    %v1329 = vsel %vm262, %v1318, 0
    %v1332 = vsel %vm262, %v1319, 0
    %1334 = vmatpush.msra.mxu0 0.0
    %1335 = vmatpush.msra.mxu0 0.0
    %1336 = vmatpush.msra.mxu0 0.0
    %1337 = vmatpush.msra.mxu0 0.0
    %1338 = vmatpush.msra.mxu0 0.0
    %1339 = vmatpush.msra.mxu0 0.0
    %1340 = vmatpush.msra.mxu0 0.0
    %1341 = vmatpush.msra.mxu0 0.0
    %1342 = vmatpush.msra.mxu0 0.0
    %1343 = vmatpush.msra.mxu0 0.0
    %1344 = vmatpush.msra.mxu0 0.0
    %1345 = vmatpush.msra.mxu0 0.0
    %1346 = vmatpush.msra.mxu0 0.0
    %1347 = vmatpush.msra.mxu0 0.0
    %1348 = vmatpush.msra.mxu0 %v1317
    %1349 = vmatpush.msra.mxu0 %v1316
    %1350 = vmatmul.f32.gmra.mxu0 %v1329
    %v1351 = vpop.f32.mrf.mxu0
    %v1352 = vadd.f32 %v1322, %v1351
    %1353 = vmatmul.f32.gmra.mxu0 %v1332
    %v1354 = vpop.f32.mrf.mxu0
    %v1355 = vadd.f32 %v1326, %v1354
    %1356 = vdwg.mxu0
    %1357 = vmax.xlane.f32.xlu0 %v1352
    %v1358 = vpop.xlane.xlu0 %1357
    %1359 = vmax.xlane.f32.xlu0 %v1355
    %v1360 = vpop.xlane.xlu0 %1359
    %v1361 = vsub.f32 %v1352, %v1358
    %v1362 = vsub.f32 %v1355, %v1360
    %v1363 = vmul.f32 %v1361, 1.442695
    %v1364 = vpow.pop %v1363
    %v1365 = vmul.f32 %v1362, 1.442695
    %v1366 = vpow.pop %v1365
    %1367 = vmatpush.msra.mxu0 %v90
    %1368 = vmatpush.msra.mxu0 %v89
    %1369 = vmatpush.msra.mxu0 %v88
    %1370 = vmatpush.msra.mxu0 %v87
    %1371 = vmatpush.msra.mxu0 %v86
    %1372 = vmatpush.msra.mxu0 %v85
    %1373 = vmatpush.msra.mxu0 %v84
    %1374 = vmatpush.msra.mxu0 %v83
    %1375 = vmatpush.msra.mxu0 %v82
    %1376 = vmatpush.msra.mxu0 %v81
    %1377 = vmatpush.msra.mxu0 %v80
    %1378 = vmatpush.msra.mxu0 %v79
    %1379 = vmatpush.msra.mxu0 %v78
    %1380 = vmatpush.msra.mxu0 %v77
    %1381 = vmatpush.msra.mxu0 %v76
    %1382 = vmatpush.msra.mxu0 %v75
    %1383 = vmatmul.f32.gmra.mxu0 %v1364
    %v1384 = vpop.f32.mrf.mxu0
    %v1385 = vadd.f32 0.0, %v1384
    %1386 = vmatmul.f32.gmra.mxu0 %v1366
    %v1387 = vpop.f32.mrf.mxu0
    %v1388 = vadd.f32 0.0, %v1387
    %1389 = vdwg.mxu0
    %v1391 = vsel %vm325, %v1385, 0
    %v1394 = vsel %vm325, %v1388, 0
    %1396 = vmatpush.msra.mxu0 0.0
    %1397 = vmatpush.msra.mxu0 0.0
    %1398 = vmatpush.msra.mxu0 0.0
    %1399 = vmatpush.msra.mxu0 0.0
    %1400 = vmatpush.msra.mxu0 0.0
    %1401 = vmatpush.msra.mxu0 0.0
    %1402 = vmatpush.msra.mxu0 0.0
    %1403 = vmatpush.msra.mxu0 0.0
    %1404 = vmatpush.msra.mxu0 0.0
    %1405 = vmatpush.msra.mxu0 0.0
    %1406 = vmatpush.msra.mxu0 0.0
    %1407 = vmatpush.msra.mxu0 0.0
    %1408 = vmatpush.msra.mxu0 0.0
    %1409 = vmatpush.msra.mxu0 0.0
    %1410 = vmatpush.msra.mxu0 0.0
    %1411 = vmatpush.msra.mxu0 %v334
    %1412 = vmatmul.f32.gmra.mxu0 %v1391
    %v1413 = vpop.f32.mrf.mxu0
    %v1414 = vadd.f32 0.0, %v1413
    %1415 = vmatmul.f32.gmra.mxu0 %v1394
    %v1416 = vpop.f32.mrf.mxu0
    %v1417 = vadd.f32 0.0, %v1416
    %1418 = vdwg.mxu0
    %v1419 = vrcp.pop %v1414
    %v1420 = vmul.f32 %v1414, %v1419
    %v1421 = vsub.f32 1.0, %v1420
    %v1422 = vmul.f32 %v1419, %v1421
    %v1423 = vadd.f32 %v1419, %v1422
    %vm1424 = vweird.f32 %v1414
    %vm1425 = vweird.f32 %v1419
    %vm1426 = vmor %vm1424, %vm1425
    %v1427 = vsel %vm1426, %v1419, %v1423
    %v1428 = vand.u32 2147483647, %v1414
    %vm1429 = vcmp.eq.f32.partialorder %v1428, 8.507059e+37
    %v1430 = vand.u32 %v1414, 2147483648
    %v1431 = vor.u32 1.1754944e-38, %v1430
    %v1432 = vsel %vm1429, %v1431, %v1427
    %v1433 = vrcp.pop %v1417
    %v1434 = vmul.f32 %v1417, %v1433
    %v1435 = vsub.f32 1.0, %v1434
    %v1436 = vmul.f32 %v1433, %v1435
    %v1437 = vadd.f32 %v1433, %v1436
    %vm1438 = vweird.f32 %v1417
    %vm1439 = vweird.f32 %v1433
    %vm1440 = vmor %vm1438, %vm1439
    %v1441 = vsel %vm1440, %v1433, %v1437
    %v1442 = vand.u32 2147483647, %v1417
    %vm1443 = vcmp.eq.f32.partialorder %v1442, 8.507059e+37
    %v1444 = vand.u32 %v1417, 2147483648
    %v1445 = vor.u32 1.1754944e-38, %v1444
    %v1446 = vsel %vm1443, %v1445, %v1441
    %v1447 = vmul.f32 %v1364, %v1432
    %v1448 = vmul.f32 %v1366, %v1446
    %v1449 = vmul.f32 %v1447, %v389
    %v1450 = vmul.f32 %v1448, %v389
    %1451 = vmatpush.xpose.msra.mxu0 0.0
    %1452 = vmatpush.xpose.msra.mxu0 0.0
    %1453 = vmatpush.xpose.msra.mxu0 0.0
    %1454 = vmatpush.xpose.msra.mxu0 0.0
    %1455 = vmatpush.xpose.msra.mxu0 0.0
    %1456 = vmatpush.xpose.msra.mxu0 0.0
    %1457 = vmatpush.xpose.msra.mxu0 0.0
    %1458 = vmatpush.xpose.msra.mxu0 0.0
    %1459 = vmatpush.xpose.msra.mxu0 0.0
    %1460 = vmatpush.xpose.msra.mxu0 0.0
    %1461 = vmatpush.xpose.msra.mxu0 0.0
    %1462 = vmatpush.xpose.msra.mxu0 0.0
    %1463 = vmatpush.xpose.msra.mxu0 0.0
    %1464 = vmatpush.xpose.msra.mxu0 0.0
    %1465 = vmatpush.xpose.msra.mxu0 %v1450
    %1466 = vmatpush.xpose.msra.mxu0 %v1449
    %1467 = vmatmul.f32.gmra.mxu0 %v964
    %v1468 = vpop.f32.mrf.mxu0
    %v1469 = vadd.f32 0.0, %v1468
    %1470 = vmatmul.f32.gmra.mxu0 %v965
    %v1471 = vpop.f32.mrf.mxu0
    %v1472 = vadd.f32 0.0, %v1471
    %1473 = vdwg.mxu0
    %vm1474 = vcmp.ge.f32.partialorder %v1469, 0.0
    %vm1475 = vcmp.ge.f32.partialorder %v1472, 0.0
    %v1476 = vmul.f32 %v1469, 0.01
    %v1477 = vmul.f32 %v1472, 0.01
    %v1478 = vsel %vm1474, %v1469, %v1476
    %v1479 = vsel %vm1475, %v1472, %v1477
    %v1480 = vmul.f32 %v1447, %v421
    %v1481 = vmul.f32 %v1448, %v421
    %1482 = vmatpush.xpose.msra.mxu0 0.0
    %1483 = vmatpush.xpose.msra.mxu0 0.0
    %1484 = vmatpush.xpose.msra.mxu0 0.0
    %1485 = vmatpush.xpose.msra.mxu0 0.0
    %1486 = vmatpush.xpose.msra.mxu0 0.0
    %1487 = vmatpush.xpose.msra.mxu0 0.0
    %1488 = vmatpush.xpose.msra.mxu0 0.0
    %1489 = vmatpush.xpose.msra.mxu0 0.0
    %1490 = vmatpush.xpose.msra.mxu0 0.0
    %1491 = vmatpush.xpose.msra.mxu0 0.0
    %1492 = vmatpush.xpose.msra.mxu0 0.0
    %1493 = vmatpush.xpose.msra.mxu0 0.0
    %1494 = vmatpush.xpose.msra.mxu0 0.0
    %1495 = vmatpush.xpose.msra.mxu0 0.0
    %1496 = vmatpush.xpose.msra.mxu0 %v1481
    %1497 = vmatpush.xpose.msra.mxu0 %v1480
    %1498 = vmatmul.f32.gmra.mxu0 %v964
    %v1499 = vpop.f32.mrf.mxu0
    %v1500 = vadd.f32 0.0, %v1499
    %1501 = vmatmul.f32.gmra.mxu0 %v965
    %v1502 = vpop.f32.mrf.mxu0
    %v1503 = vadd.f32 0.0, %v1502
    %1504 = vdwg.mxu0
    %vm1505 = vcmp.ge.f32.partialorder %v1500, 0.0
    %vm1506 = vcmp.ge.f32.partialorder %v1503, 0.0
    %v1507 = vmul.f32 %v1500, 0.01
    %v1508 = vmul.f32 %v1503, 0.01
    %v1509 = vsel %vm1505, %v1500, %v1507
    %v1510 = vsel %vm1506, %v1503, %v1508
    %v1512 = vsel %vm262, %v1509, 0
    %v1515 = vsel %vm262, %v1510, 0
    %1517 = vmatpush.msra.mxu0 0.0
    %1518 = vmatpush.msra.mxu0 0.0
    %1519 = vmatpush.msra.mxu0 0.0
    %1520 = vmatpush.msra.mxu0 0.0
    %1521 = vmatpush.msra.mxu0 0.0
    %1522 = vmatpush.msra.mxu0 0.0
    %1523 = vmatpush.msra.mxu0 0.0
    %1524 = vmatpush.msra.mxu0 0.0
    %1525 = vmatpush.msra.mxu0 0.0
    %1526 = vmatpush.msra.mxu0 0.0
    %1527 = vmatpush.msra.mxu0 0.0
    %1528 = vmatpush.msra.mxu0 0.0
    %1529 = vmatpush.msra.mxu0 0.0
    %1530 = vmatpush.msra.mxu0 0.0
    %1531 = vmatpush.msra.mxu0 %v1481
    %1532 = vmatpush.msra.mxu0 %v1480
    %1533 = vmatmul.f32.gmra.mxu0 %v1512
    %v1534 = vpop.f32.mrf.mxu0
    %v1535 = vadd.f32 0.0, %v1534
    %1536 = vmatmul.f32.gmra.mxu0 %v1515
    %v1537 = vpop.f32.mrf.mxu0
    %v1538 = vadd.f32 0.0, %v1537
    %1539 = vdwg.mxu0
    %v1541 = vsel %vm262, %v1478, 0
    %v1544 = vsel %vm262, %v1479, 0
    %1546 = vmatpush.msra.mxu0 0.0
    %1547 = vmatpush.msra.mxu0 0.0
    %1548 = vmatpush.msra.mxu0 0.0
    %1549 = vmatpush.msra.mxu0 0.0
    %1550 = vmatpush.msra.mxu0 0.0
    %1551 = vmatpush.msra.mxu0 0.0
    %1552 = vmatpush.msra.mxu0 0.0
    %1553 = vmatpush.msra.mxu0 0.0
    %1554 = vmatpush.msra.mxu0 0.0
    %1555 = vmatpush.msra.mxu0 0.0
    %1556 = vmatpush.msra.mxu0 0.0
    %1557 = vmatpush.msra.mxu0 0.0
    %1558 = vmatpush.msra.mxu0 0.0
    %1559 = vmatpush.msra.mxu0 0.0
    %1560 = vmatpush.msra.mxu0 %v1450
    %1561 = vmatpush.msra.mxu0 %v1449
    %1562 = vmatmul.f32.gmra.mxu0 %v1541
    %v1563 = vpop.f32.mrf.mxu0
    %v1564 = vadd.f32 %v1535, %v1563
    %1565 = vmatmul.f32.gmra.mxu0 %v1544
    %v1566 = vpop.f32.mrf.mxu0
    %v1567 = vadd.f32 %v1538, %v1566
    %1568 = vdwg.mxu0
    %v1569 = vadd.f32 %v1564, %v964
    %v1570 = vadd.f32 %v1567, %v965
    %v1571 = vmul.f32 %v1569, %v1569
    %v1572 = vmul.f32 %v1570, %v1570
    %1573 = vmatpush.msra.mxu0 0.0078125
    %1574 = vmatpush.msra.mxu0 0.0078125
    %1575 = vmatpush.msra.mxu0 0.0078125
    %1576 = vmatpush.msra.mxu0 0.0078125
    %1577 = vmatpush.msra.mxu0 0.0078125
    %1578 = vmatpush.msra.mxu0 0.0078125
    %1579 = vmatpush.msra.mxu0 0.0078125
    %1580 = vmatpush.msra.mxu0 0.0078125
    %1581 = vmatpush.msra.mxu0 0.0078125
    %1582 = vmatpush.msra.mxu0 0.0078125
    %1583 = vmatpush.msra.mxu0 0.0078125
    %1584 = vmatpush.msra.mxu0 0.0078125
    %1585 = vmatpush.msra.mxu0 0.0078125
    %1586 = vmatpush.msra.mxu0 0.0078125
    %1587 = vmatpush.msra.mxu0 0.0078125
    %1588 = vmatpush.msra.mxu0 0.0078125
    %1589 = vmatmul.f32.gmra.mxu0 %v1569
    %v1590 = vpop.f32.mrf.mxu0
    %v1591 = vadd.f32 0.0, %v1590
    %1592 = vmatmul.f32.gmra.mxu0 %v1570
    %v1593 = vpop.f32.mrf.mxu0
    %v1594 = vadd.f32 0.0, %v1593
    %1595 = vmatmul.f32.gmra.mxu0 %v1571
    %v1596 = vpop.f32.mrf.mxu0
    %v1597 = vadd.f32 0.0, %v1596
    %1598 = vmatmul.f32.gmra.mxu0 %v1572
    %v1599 = vpop.f32.mrf.mxu0
    %v1600 = vadd.f32 0.0, %v1599
    %1601 = vdwg.mxu0
    %v1602 = vmul.f32 %v1591, %v1591
    %v1603 = vmul.f32 %v1594, %v1594
    %v1604 = vsub.f32 %v1597, %v1602
    %v1605 = vsub.f32 %v1600, %v1603
    %1607 = vset.pattern.permute.xlu0 0
    %1608 = vperm.xlu0 %1607, %v1591
    %v1609 = vpop.permute.xlu0 %1608
    %1612 = vset.pattern.permute.xlu0 0
    %1613 = vperm.xlu0 %1612, %v1594
    %v1614 = vpop.permute.xlu0 %1613
    %v1616 = vsub.f32 %v1569, %v1609
    %v1617 = vsub.f32 %v1570, %v1614
    %v1618 = vadd.f32 %v1604, 1e-05
    %v1619 = vadd.f32 %v1605, 1e-05
    %v1620 = vrsqrt.pop %v1618
    %v1621 = vmul.f32 %v1620, %v1618
    %v1622 = vmul.f32 %v1621, %v1620
    %v1623 = vmul.f32 0.5, %v1622
    %v1624 = vsub.f32 1.5, %v1623
    %v1625 = vmul.f32 %v1620, %v1624
    %vm1626 = vweird.f32 %v1618
    %vm1627 = vweird.f32 %v1620
    %vm1628 = vmor %vm1626, %vm1627
    %v1629 = vsel %vm1628, %v1620, %v1625
    %v1630 = vrsqrt.pop %v1619
    %v1631 = vmul.f32 %v1630, %v1619
    %v1632 = vmul.f32 %v1631, %v1630
    %v1633 = vmul.f32 0.5, %v1632
    %v1634 = vsub.f32 1.5, %v1633
    %v1635 = vmul.f32 %v1630, %v1634
    %vm1636 = vweird.f32 %v1619
    %vm1637 = vweird.f32 %v1630
    %vm1638 = vmor %vm1636, %vm1637
    %v1639 = vsel %vm1638, %v1630, %v1635
    %1641 = vset.pattern.permute.xlu0 0
    %1642 = vperm.xlu0 %1641, %v1629
    %v1643 = vpop.permute.xlu0 %1642
    %1646 = vset.pattern.permute.xlu0 0
    %1647 = vperm.xlu0 %1646, %v1639
    %v1648 = vpop.permute.xlu0 %1647
    %v1650 = vmul.f32 %v1616, %v1643
    %v1651 = vmul.f32 %v1617, %v1648
    %1652 = vset.pattern.permute.xlu0 12
    %1653 = vperm.xlu0 %1652, %v228
    %v1654 = vpop.permute.xlu0 %1653
    %1656 = vset.pattern.permute.xlu0 12
    %1657 = vperm.xlu0 %1656, %v229
    %v1658 = vpop.permute.xlu0 %1657
    %v1660 = vmul.f32 %v1650, %v1654
    %v1661 = vmul.f32 %v1651, %v1658
    %1662 = vset.pattern.permute.xlu0 13
    %1663 = vperm.xlu0 %1662, %v228
    %v1664 = vpop.permute.xlu0 %1663
    %1666 = vset.pattern.permute.xlu0 13
    %1667 = vperm.xlu0 %1666, %v229
    %v1668 = vpop.permute.xlu0 %1667
    %v1670 = vadd.f32 %v1660, %v1664
    %v1671 = vadd.f32 %v1661, %v1668
    %v1672 = vld [vmem:[#allocation2 + $0x60] sm:$0xff]
    %v1673 = vld [vmem:[#allocation2 + $0x68] sm:$0xff]
    %1674 = vset.pattern.permute.xlu0 14
    %1675 = vperm.xlu0 %1674, %v228
    %v1676 = vpop.permute.xlu0 %1675
    %1678 = vset.pattern.permute.xlu0 14
    %1679 = vperm.xlu0 %1678, %v229
    %v1680 = vpop.permute.xlu0 %1679
    %v1683 = vsel %vm262, %v1672, 0
    %v1686 = vsel %vm262, %v1673, 0
    %1688 = vmatpush.msra.mxu0 0.0
    %1689 = vmatpush.msra.mxu0 0.0
    %1690 = vmatpush.msra.mxu0 0.0
    %1691 = vmatpush.msra.mxu0 0.0
    %1692 = vmatpush.msra.mxu0 0.0
    %1693 = vmatpush.msra.mxu0 0.0
    %1694 = vmatpush.msra.mxu0 0.0
    %1695 = vmatpush.msra.mxu0 0.0
    %1696 = vmatpush.msra.mxu0 0.0
    %1697 = vmatpush.msra.mxu0 0.0
    %1698 = vmatpush.msra.mxu0 0.0
    %1699 = vmatpush.msra.mxu0 0.0
    %1700 = vmatpush.msra.mxu0 0.0
    %1701 = vmatpush.msra.mxu0 0.0
    %1702 = vmatpush.msra.mxu0 %v1671
    %1703 = vmatpush.msra.mxu0 %v1670
    %1704 = vmatmul.f32.gmra.mxu0 %v1683
    %v1705 = vpop.f32.mrf.mxu0
    %v1706 = vadd.f32 %v1676, %v1705
    %1707 = vmatmul.f32.gmra.mxu0 %v1686
    %v1708 = vpop.f32.mrf.mxu0
    %v1709 = vadd.f32 %v1680, %v1708
    %1710 = vdwg.mxu0
    %vm1711 = vcmp.ge.f32.partialorder %v1706, 0.0
    %vm1712 = vcmp.ge.f32.partialorder %v1709, 0.0
    %v1713 = vmul.f32 %v1706, 0.01
    %v1714 = vmul.f32 %v1709, 0.01
    %v1715 = vsel %vm1711, %v1706, %v1713
    %v1716 = vsel %vm1712, %v1709, %v1714
    %v1717 = vmul.f32 %v1715, %v1715
    %v1718 = vmul.f32 %v1716, %v1716
    %1719 = vmatpush.msra.mxu0 0.0078125
    %1720 = vmatpush.msra.mxu0 0.0078125
    %1721 = vmatpush.msra.mxu0 0.0078125
    %1722 = vmatpush.msra.mxu0 0.0078125
    %1723 = vmatpush.msra.mxu0 0.0078125
    %1724 = vmatpush.msra.mxu0 0.0078125
    %1725 = vmatpush.msra.mxu0 0.0078125
    %1726 = vmatpush.msra.mxu0 0.0078125
    %1727 = vmatpush.msra.mxu0 0.0078125
    %1728 = vmatpush.msra.mxu0 0.0078125
    %1729 = vmatpush.msra.mxu0 0.0078125
    %1730 = vmatpush.msra.mxu0 0.0078125
    %1731 = vmatpush.msra.mxu0 0.0078125
    %1732 = vmatpush.msra.mxu0 0.0078125
    %1733 = vmatpush.msra.mxu0 0.0078125
    %1734 = vmatpush.msra.mxu0 0.0078125
    %1735 = vmatmul.f32.gmra.mxu0 %v1715
    %v1736 = vpop.f32.mrf.mxu0
    %v1737 = vadd.f32 0.0, %v1736
    %1738 = vmatmul.f32.gmra.mxu0 %v1716
    %v1739 = vpop.f32.mrf.mxu0
    %v1740 = vadd.f32 0.0, %v1739
    %1741 = vmatmul.f32.gmra.mxu0 %v1717
    %v1742 = vpop.f32.mrf.mxu0
    %v1743 = vadd.f32 0.0, %v1742
    %1744 = vmatmul.f32.gmra.mxu0 %v1718
    %v1745 = vpop.f32.mrf.mxu0
    %v1746 = vadd.f32 0.0, %v1745
    %1747 = vdwg.mxu0
    %v1748 = vmul.f32 %v1737, %v1737
    %v1749 = vmul.f32 %v1740, %v1740
    %v1750 = vsub.f32 %v1743, %v1748
    %v1751 = vsub.f32 %v1746, %v1749
    %1753 = vset.pattern.permute.xlu0 0
    %1754 = vperm.xlu0 %1753, %v1737
    %v1755 = vpop.permute.xlu0 %1754
    %1758 = vset.pattern.permute.xlu0 0
    %1759 = vperm.xlu0 %1758, %v1740
    %v1760 = vpop.permute.xlu0 %1759
    %v1762 = vsub.f32 %v1715, %v1755
    %v1763 = vsub.f32 %v1716, %v1760
    %v1764 = vadd.f32 %v1750, 1e-05
    %v1765 = vadd.f32 %v1751, 1e-05
    %v1766 = vrsqrt.pop %v1764
    %v1767 = vmul.f32 %v1766, %v1764
    %v1768 = vmul.f32 %v1767, %v1766
    %v1769 = vmul.f32 0.5, %v1768
    %v1770 = vsub.f32 1.5, %v1769
    %v1771 = vmul.f32 %v1766, %v1770
    %vm1772 = vweird.f32 %v1764
    %vm1773 = vweird.f32 %v1766
    %vm1774 = vmor %vm1772, %vm1773
    %v1775 = vsel %vm1774, %v1766, %v1771
    %v1776 = vrsqrt.pop %v1765
    %v1777 = vmul.f32 %v1776, %v1765
    %v1778 = vmul.f32 %v1777, %v1776
    %v1779 = vmul.f32 0.5, %v1778
    %v1780 = vsub.f32 1.5, %v1779
    %v1781 = vmul.f32 %v1776, %v1780
    %vm1782 = vweird.f32 %v1765
    %vm1783 = vweird.f32 %v1776
    %vm1784 = vmor %vm1782, %vm1783
    %v1785 = vsel %vm1784, %v1776, %v1781
    %1787 = vset.pattern.permute.xlu0 0
    %1788 = vperm.xlu0 %1787, %v1775
    %v1789 = vpop.permute.xlu0 %1788
    %1792 = vset.pattern.permute.xlu0 0
    %1793 = vperm.xlu0 %1792, %v1785
    %v1794 = vpop.permute.xlu0 %1793
    %v1796 = vmul.f32 %v1762, %v1789
    %v1797 = vmul.f32 %v1763, %v1794
    %1798 = vset.pattern.permute.xlu0 15
    %1799 = vperm.xlu0 %1798, %v228
    %v1800 = vpop.permute.xlu0 %1799
    %1802 = vset.pattern.permute.xlu0 15
    %1803 = vperm.xlu0 %1802, %v229
    %v1804 = vpop.permute.xlu0 %1803
    %v1806 = vmul.f32 %v1796, %v1800
    %v1807 = vmul.f32 %v1797, %v1804
    %1808 = vset.pattern.permute.xlu0 16
    %1809 = vperm.xlu0 %1808, %v228
    %v1810 = vpop.permute.xlu0 %1809
    %1812 = vset.pattern.permute.xlu0 16
    %1813 = vperm.xlu0 %1812, %v229
    %v1814 = vpop.permute.xlu0 %1813
    %v1816 = vadd.f32 %v1806, %v1810
    %v1817 = vadd.f32 %v1807, %v1814
    %v1818 = vld [vmem:[#allocation2 + $0x78] sm:$0xff]
    %v1819 = vld [vmem:[#allocation2 + $0x80] sm:$0xff]
    %v1820 = vld [vmem:[#allocation2 + $0x88] sm:$0xf]
    %v1821 = vld [vmem:[%s3] sm:$0xff]
    %v1822 = vld [vmem:[%s3 + $0x8] sm:$0xff]
    %v1823 = vld [vmem:[%s3 + $0x10] sm:$0xf]
    %1825 = vset.pattern.permute.xlu0 17
    %1826 = vperm.xlu0 %1825, %v1821
    %v1827 = vpop.permute.xlu0 %1826
    %1830 = vset.pattern.permute.xlu0 17
    %1831 = vperm.xlu0 %1830, %v1822
    %v1832 = vpop.permute.xlu0 %1831
    %1835 = vset.pattern.permute.xlu0 17
    %1836 = vperm.xlu0 %1835, %v1823
    %v1837 = vpop.permute.xlu0 %1836
    %v1840 = vsel %vm262, %v1818, 0
    %v1843 = vsel %vm262, %v1819, 0
    %v1846 = vsel %vm262, %v1820, 0
    %1848 = vmatpush.msra.mxu0 0.0
    %1849 = vmatpush.msra.mxu0 0.0
    %1850 = vmatpush.msra.mxu0 0.0
    %1851 = vmatpush.msra.mxu0 0.0
    %1852 = vmatpush.msra.mxu0 0.0
    %1853 = vmatpush.msra.mxu0 0.0
    %1854 = vmatpush.msra.mxu0 0.0
    %1855 = vmatpush.msra.mxu0 0.0
    %1856 = vmatpush.msra.mxu0 0.0
    %1857 = vmatpush.msra.mxu0 0.0
    %1858 = vmatpush.msra.mxu0 0.0
    %1859 = vmatpush.msra.mxu0 0.0
    %1860 = vmatpush.msra.mxu0 0.0
    %1861 = vmatpush.msra.mxu0 0.0
    %1862 = vmatpush.msra.mxu0 %v1817
    %1863 = vmatpush.msra.mxu0 %v1816
    %1864 = vmatmul.f32.gmra.mxu0 %v1840
    %v1865 = vpop.f32.mrf.mxu0
    %v1866 = vadd.f32 %v1827, %v1865
    %1867 = vmatmul.f32.gmra.mxu0 %v1843
    %v1868 = vpop.f32.mrf.mxu0
    %v1869 = vadd.f32 %v1832, %v1868
    %1870 = vmatmul.f32.gmra.mxu0 %v1846
    %v1871 = vpop.f32.mrf.mxu0
    %v1872 = vadd.f32 %v1837, %v1871
    %1873 = vdwg.mxu0
    %v1874 = vld [vmem:[#allocation6] sm:$0xff]
    %v1875 = vld [vmem:[#allocation6 + $0x8] sm:$0xff]
    %v1876 = vld [vmem:[#allocation6 + $0x10] sm:$0xff]
    %v1877 = vld [vmem:[#allocation6 + $0x18] sm:$0xff]
    %v1878 = vld [vmem:[#allocation6 + $0x20] sm:$0xff]
    %v1879 = vld [vmem:[#allocation6 + $0x28] sm:$0xff]
    %v1880 = vld [vmem:[#allocation6 + $0x30] sm:$0xff]
    %v1881 = vld [vmem:[#allocation6 + $0x38] sm:$0xff]
    %v1882 = vld [vmem:[#allocation6 + $0x40] sm:$0xff]
    %v1883 = vld [vmem:[#allocation6 + $0x48] sm:$0xff]
    %v1884 = vld [vmem:[#allocation6 + $0x50] sm:$0xff]
    %v1885 = vld [vmem:[#allocation6 + $0x58] sm:$0xff]
    %v1886 = vld [vmem:[#allocation6 + $0x60] sm:$0xff]
    %v1887 = vld [vmem:[#allocation6 + $0x68] sm:$0xff]
    %v1888 = vld [vmem:[#allocation6 + $0x70] sm:$0xff]
    %v1889 = vld [vmem:[#allocation6 + $0x78] sm:$0xff]
    %1890 = vxpose.xlu0.b32.start [1/16] %v1866, 128
    %1891 = vxpose.xlu0.b32.cont [2/16] 0.0, 128
    %1892 = vxpose.xlu0.b32.cont [3/16] 0.0, 128
    %1893 = vxpose.xlu0.b32.cont [4/16] 0.0, 128
    %1894 = vxpose.xlu0.b32.cont [5/16] 0.0, 128
    %1895 = vxpose.xlu0.b32.cont [6/16] 0.0, 128
    %1896 = vxpose.xlu0.b32.cont [7/16] 0.0, 128
    %1897 = vxpose.xlu0.b32.cont [8/16] 0.0, 128
    %1898 = vxpose.xlu0.b32.cont [9/16] 0.0, 128
    %1899 = vxpose.xlu0.b32.cont [10/16] 0.0, 128
    %1900 = vxpose.xlu0.b32.cont [11/16] 0.0, 128
    %1901 = vxpose.xlu0.b32.cont [12/16] 0.0, 128
    %1902 = vxpose.xlu0.b32.cont [13/16] 0.0, 128
    %1903 = vxpose.xlu0.b32.cont [14/16] 0.0, 128
    %1904 = vxpose.xlu0.b32.cont [15/16] 0.0, 128
    %1905 = vxpose.xlu0.b32.end [16/16] 0.0, 128
    %v1906 = vpop.trf.xlu0
    %v1907 = vpop.trf.xlu0
    %v1908 = vpop.trf.xlu0
    %v1909 = vpop.trf.xlu0
    %v1910 = vpop.trf.xlu0
    %v1911 = vpop.trf.xlu0
    %v1912 = vpop.trf.xlu0
    %v1913 = vpop.trf.xlu0
    %v1914 = vpop.trf.xlu0
    %v1915 = vpop.trf.xlu0
    %v1916 = vpop.trf.xlu0
    %v1917 = vpop.trf.xlu0
    %v1918 = vpop.trf.xlu0
    %v1919 = vpop.trf.xlu0
    %v1920 = vpop.trf.xlu0
    %v1921 = vpop.trf.xlu0
    %v1923 = vrot.slane %v1866, 2
    %v1925 = vsel %vm325, %v1906, 0
    %v1928 = vsel %vm325, %v1907, 0
    %v1931 = vsel %vm325, %v1908, 0
    %v1934 = vsel %vm325, %v1909, 0
    %v1937 = vsel %vm325, %v1910, 0
    %v1940 = vsel %vm325, %v1911, 0
    %v1943 = vsel %vm325, %v1912, 0
    %v1946 = vsel %vm325, %v1913, 0
    %v1949 = vsel %vm325, %v1914, 0
    %v1952 = vsel %vm325, %v1915, 0
    %v1955 = vsel %vm325, %v1916, 0
    %v1958 = vsel %vm325, %v1917, 0
    %v1961 = vsel %vm325, %v1918, 0
    %v1964 = vsel %vm325, %v1919, 0
    %v1967 = vsel %vm325, %v1920, 0
    %v1970 = vsel %vm325, %v1921, 0
    %v1972 = vsel %vm332, %v1923, 0
    %1974 = vmatpush.msra.mxu0 0.0
    %1975 = vmatpush.msra.mxu0 0.0
    %1976 = vmatpush.msra.mxu0 0.0
    %1977 = vmatpush.msra.mxu0 0.0
    %1978 = vmatpush.msra.mxu0 0.0
    %1979 = vmatpush.msra.mxu0 0.0
    %1980 = vmatpush.msra.mxu0 0.0
    %1981 = vmatpush.msra.mxu0 0.0
    %1982 = vmatpush.msra.mxu0 0.0
    %1983 = vmatpush.msra.mxu0 0.0
    %1984 = vmatpush.msra.mxu0 0.0
    %1985 = vmatpush.msra.mxu0 0.0
    %1986 = vmatpush.msra.mxu0 0.0
    %1987 = vmatpush.msra.mxu0 0.0
    %1988 = vmatpush.msra.mxu0 0.0
    %1989 = vmatpush.msra.mxu0 %v1972
    %1990 = vmatmul.f32.gmra.mxu0 %v1925
    %v1991 = vpop.f32.mrf.mxu0
    %v1992 = vadd.f32 %v1874, %v1991
    %1993 = vmatmul.f32.gmra.mxu0 %v1928
    %v1994 = vpop.f32.mrf.mxu0
    %v1995 = vadd.f32 %v1875, %v1994
    %1996 = vmatmul.f32.gmra.mxu0 %v1931
    %v1997 = vpop.f32.mrf.mxu0
    %v1998 = vadd.f32 %v1876, %v1997
    %1999 = vmatmul.f32.gmra.mxu0 %v1934
    %v2000 = vpop.f32.mrf.mxu0
    %v2001 = vadd.f32 %v1877, %v2000
    %2002 = vmatmul.f32.gmra.mxu0 %v1937
    %v2003 = vpop.f32.mrf.mxu0
    %v2004 = vadd.f32 %v1878, %v2003
    %2005 = vmatmul.f32.gmra.mxu0 %v1940
    %v2006 = vpop.f32.mrf.mxu0
    %v2007 = vadd.f32 %v1879, %v2006
    %2008 = vmatmul.f32.gmra.mxu0 %v1943
    %v2009 = vpop.f32.mrf.mxu0
    %v2010 = vadd.f32 %v1880, %v2009
    %2011 = vmatmul.f32.gmra.mxu0 %v1946
    %v2012 = vpop.f32.mrf.mxu0
    %v2013 = vadd.f32 %v1881, %v2012
    %2014 = vmatmul.f32.gmra.mxu0 %v1949
    %v2015 = vpop.f32.mrf.mxu0
    %v2016 = vadd.f32 %v1882, %v2015
    %2017 = vmatmul.f32.gmra.mxu0 %v1952
    %v2018 = vpop.f32.mrf.mxu0
    %v2019 = vadd.f32 %v1883, %v2018
    %2020 = vmatmul.f32.gmra.mxu0 %v1955
    %v2021 = vpop.f32.mrf.mxu0
    %v2022 = vadd.f32 %v1884, %v2021
    %2023 = vmatmul.f32.gmra.mxu0 %v1958
    %v2024 = vpop.f32.mrf.mxu0
    %v2025 = vadd.f32 %v1885, %v2024
    %2026 = vmatmul.f32.gmra.mxu0 %v1961
    %v2027 = vpop.f32.mrf.mxu0
    %v2028 = vadd.f32 %v1886, %v2027
    %2029 = vmatmul.f32.gmra.mxu0 %v1964
    %v2030 = vpop.f32.mrf.mxu0
    %v2031 = vadd.f32 %v1887, %v2030
    %2032 = vmatmul.f32.gmra.mxu0 %v1967
    %v2033 = vpop.f32.mrf.mxu0
    %v2034 = vadd.f32 %v1888, %v2033
    %2035 = vmatmul.f32.gmra.mxu0 %v1970
    %v2036 = vpop.f32.mrf.mxu0
    %v2037 = vadd.f32 %v1889, %v2036
    %2038 = vdwg.mxu0
    %2039 = vmax.xlane.f32.xlu0 %v1992
    %v2040 = vpop.xlane.xlu0 %2039
    %2041 = vmax.xlane.f32.xlu0 %v1995
    %v2042 = vpop.xlane.xlu0 %2041
    %2043 = vmax.xlane.f32.xlu0 %v1998
    %v2044 = vpop.xlane.xlu0 %2043
    %2045 = vmax.xlane.f32.xlu0 %v2001
    %v2046 = vpop.xlane.xlu0 %2045
    %2047 = vmax.xlane.f32.xlu0 %v2004
    %v2048 = vpop.xlane.xlu0 %2047
    %2049 = vmax.xlane.f32.xlu0 %v2007
    %v2050 = vpop.xlane.xlu0 %2049
    %2051 = vmax.xlane.f32.xlu0 %v2010
    %v2052 = vpop.xlane.xlu0 %2051
    %2053 = vmax.xlane.f32.xlu0 %v2013
    %v2054 = vpop.xlane.xlu0 %2053
    %2055 = vmax.xlane.f32.xlu0 %v2016
    %v2056 = vpop.xlane.xlu0 %2055
    %2057 = vmax.xlane.f32.xlu0 %v2019
    %v2058 = vpop.xlane.xlu0 %2057
    %2059 = vmax.xlane.f32.xlu0 %v2022
    %v2060 = vpop.xlane.xlu0 %2059
    %2061 = vmax.xlane.f32.xlu0 %v2025
    %v2062 = vpop.xlane.xlu0 %2061
    %2063 = vmax.xlane.f32.xlu0 %v2028
    %v2064 = vpop.xlane.xlu0 %2063
    %2065 = vmax.xlane.f32.xlu0 %v2031
    %v2066 = vpop.xlane.xlu0 %2065
    %2067 = vmax.xlane.f32.xlu0 %v2034
    %v2068 = vpop.xlane.xlu0 %2067
    %2069 = vmax.xlane.f32.xlu0 %v2037
    %v2070 = vpop.xlane.xlu0 %2069
    %v2071 = vsub.f32 %v1992, %v2040
    %v2072 = vsub.f32 %v1995, %v2042
    %v2073 = vsub.f32 %v1998, %v2044
    %v2074 = vsub.f32 %v2001, %v2046
    %v2075 = vsub.f32 %v2004, %v2048
    %v2076 = vsub.f32 %v2007, %v2050
    %v2077 = vsub.f32 %v2010, %v2052
    %v2078 = vsub.f32 %v2013, %v2054
    %v2079 = vsub.f32 %v2016, %v2056
    %v2080 = vsub.f32 %v2019, %v2058
    %v2081 = vsub.f32 %v2022, %v2060
    %v2082 = vsub.f32 %v2025, %v2062
    %v2083 = vsub.f32 %v2028, %v2064
    %v2084 = vsub.f32 %v2031, %v2066
    %v2085 = vsub.f32 %v2034, %v2068
    %v2086 = vsub.f32 %v2037, %v2070
    %v2087 = vmul.f32 %v2071, 1.442695
    %v2088 = vpow.pop %v2087
    %v2089 = vmul.f32 %v2072, 1.442695
    %v2090 = vpow.pop %v2089
    %v2091 = vmul.f32 %v2073, 1.442695
    %v2092 = vpow.pop %v2091
    %v2093 = vmul.f32 %v2074, 1.442695
    %v2094 = vpow.pop %v2093
    %v2095 = vmul.f32 %v2075, 1.442695
    %v2096 = vpow.pop %v2095
    %v2097 = vmul.f32 %v2076, 1.442695
    %v2098 = vpow.pop %v2097
    %v2099 = vmul.f32 %v2077, 1.442695
    %v2100 = vpow.pop %v2099
    %v2101 = vmul.f32 %v2078, 1.442695
    %v2102 = vpow.pop %v2101
    %v2103 = vmul.f32 %v2079, 1.442695
    %v2104 = vpow.pop %v2103
    %v2105 = vmul.f32 %v2080, 1.442695
    %v2106 = vpow.pop %v2105
    %v2107 = vmul.f32 %v2081, 1.442695
    %v2108 = vpow.pop %v2107
    %v2109 = vmul.f32 %v2082, 1.442695
    %v2110 = vpow.pop %v2109
    %v2111 = vmul.f32 %v2083, 1.442695
    %v2112 = vpow.pop %v2111
    %v2113 = vmul.f32 %v2084, 1.442695
    %v2114 = vpow.pop %v2113
    %v2115 = vmul.f32 %v2085, 1.442695
    %v2116 = vpow.pop %v2115
    %v2117 = vmul.f32 %v2086, 1.442695
    %v2118 = vpow.pop %v2117
    %2119 = vmatpush.msra.mxu0 1.0
    %2120 = vmatpush.msra.mxu0 1.0
    %2121 = vmatpush.msra.mxu0 1.0
    %2122 = vmatpush.msra.mxu0 1.0
    %2123 = vmatpush.msra.mxu0 1.0
    %2124 = vmatpush.msra.mxu0 1.0
    %2125 = vmatpush.msra.mxu0 1.0
    %2126 = vmatpush.msra.mxu0 1.0
    %2127 = vmatpush.msra.mxu0 1.0
    %2128 = vmatpush.msra.mxu0 1.0
    %2129 = vmatpush.msra.mxu0 1.0
    %2130 = vmatpush.msra.mxu0 1.0
    %2131 = vmatpush.msra.mxu0 1.0
    %2132 = vmatpush.msra.mxu0 1.0
    %2133 = vmatpush.msra.mxu0 1.0
    %2134 = vmatpush.msra.mxu0 1.0
    %2135 = vmatmul.f32.gmra.mxu0 %v2088
    %v2136 = vpop.f32.mrf.mxu0
    %v2137 = vadd.f32 0.0, %v2136
    %2138 = vmatmul.f32.gmra.mxu0 %v2090
    %v2139 = vpop.f32.mrf.mxu0
    %v2140 = vadd.f32 0.0, %v2139
    %2141 = vmatmul.f32.gmra.mxu0 %v2092
    %v2142 = vpop.f32.mrf.mxu0
    %v2143 = vadd.f32 0.0, %v2142
    %2144 = vmatmul.f32.gmra.mxu0 %v2094
    %v2145 = vpop.f32.mrf.mxu0
    %v2146 = vadd.f32 0.0, %v2145
    %2147 = vmatmul.f32.gmra.mxu0 %v2096
    %v2148 = vpop.f32.mrf.mxu0
    %v2149 = vadd.f32 0.0, %v2148
    %2150 = vmatmul.f32.gmra.mxu0 %v2098
    %v2151 = vpop.f32.mrf.mxu0
    %v2152 = vadd.f32 0.0, %v2151
    %2153 = vmatmul.f32.gmra.mxu0 %v2100
    %v2154 = vpop.f32.mrf.mxu0
    %v2155 = vadd.f32 0.0, %v2154
    %2156 = vmatmul.f32.gmra.mxu0 %v2102
    %v2157 = vpop.f32.mrf.mxu0
    %v2158 = vadd.f32 0.0, %v2157
    %2159 = vmatmul.f32.gmra.mxu0 %v2104
    %v2160 = vpop.f32.mrf.mxu0
    %v2161 = vadd.f32 0.0, %v2160
    %2162 = vmatmul.f32.gmra.mxu0 %v2106
    %v2163 = vpop.f32.mrf.mxu0
    %v2164 = vadd.f32 0.0, %v2163
    %2165 = vmatmul.f32.gmra.mxu0 %v2108
    %v2166 = vpop.f32.mrf.mxu0
    %v2167 = vadd.f32 0.0, %v2166
    %2168 = vmatmul.f32.gmra.mxu0 %v2110
    %v2169 = vpop.f32.mrf.mxu0
    %v2170 = vadd.f32 0.0, %v2169
    %2171 = vmatmul.f32.gmra.mxu0 %v2112
    %v2172 = vpop.f32.mrf.mxu0
    %v2173 = vadd.f32 0.0, %v2172
    %2174 = vmatmul.f32.gmra.mxu0 %v2114
    %v2175 = vpop.f32.mrf.mxu0
    %v2176 = vadd.f32 0.0, %v2175
    %2177 = vmatmul.f32.gmra.mxu0 %v2116
    %v2178 = vpop.f32.mrf.mxu0
    %v2179 = vadd.f32 0.0, %v2178
    %2180 = vmatmul.f32.gmra.mxu0 %v2118
    %v2181 = vpop.f32.mrf.mxu0
    %v2182 = vadd.f32 0.0, %v2181
    %2183 = vdwg.mxu0
    %v2184 = vrcp.pop %v2137
    %v2185 = vmul.f32 %v2137, %v2184
    %v2186 = vsub.f32 1.0, %v2185
    %v2187 = vmul.f32 %v2184, %v2186
    %v2188 = vadd.f32 %v2184, %v2187
    %vm2189 = vweird.f32 %v2137
    %vm2190 = vweird.f32 %v2184
    %vm2191 = vmor %vm2189, %vm2190
    %v2192 = vsel %vm2191, %v2184, %v2188
    %v2193 = vand.u32 2147483647, %v2137
    %vm2194 = vcmp.eq.f32.partialorder %v2193, 8.507059e+37
    %v2195 = vand.u32 %v2137, 2147483648
    %v2196 = vor.u32 1.1754944e-38, %v2195
    %v2197 = vsel %vm2194, %v2196, %v2192
    %v2198 = vrcp.pop %v2140
    %v2199 = vmul.f32 %v2140, %v2198
    %v2200 = vsub.f32 1.0, %v2199
    %v2201 = vmul.f32 %v2198, %v2200
    %v2202 = vadd.f32 %v2198, %v2201
    %vm2203 = vweird.f32 %v2140
    %vm2204 = vweird.f32 %v2198
    %vm2205 = vmor %vm2203, %vm2204
    %v2206 = vsel %vm2205, %v2198, %v2202
    %v2207 = vand.u32 2147483647, %v2140
    %vm2208 = vcmp.eq.f32.partialorder %v2207, 8.507059e+37
    %v2209 = vand.u32 %v2140, 2147483648
    %v2210 = vor.u32 1.1754944e-38, %v2209
    %v2211 = vsel %vm2208, %v2210, %v2206
    %v2212 = vrcp.pop %v2143
    %v2213 = vmul.f32 %v2143, %v2212
    %v2214 = vsub.f32 1.0, %v2213
    %v2215 = vmul.f32 %v2212, %v2214
    %v2216 = vadd.f32 %v2212, %v2215
    %vm2217 = vweird.f32 %v2143
    %vm2218 = vweird.f32 %v2212
    %vm2219 = vmor %vm2217, %vm2218
    %v2220 = vsel %vm2219, %v2212, %v2216
    %v2221 = vand.u32 2147483647, %v2143
    %vm2222 = vcmp.eq.f32.partialorder %v2221, 8.507059e+37
    %v2223 = vand.u32 %v2143, 2147483648
    %v2224 = vor.u32 1.1754944e-38, %v2223
    %v2225 = vsel %vm2222, %v2224, %v2220
    %v2226 = vrcp.pop %v2146
    %v2227 = vmul.f32 %v2146, %v2226
    %v2228 = vsub.f32 1.0, %v2227
    %v2229 = vmul.f32 %v2226, %v2228
    %v2230 = vadd.f32 %v2226, %v2229
    %vm2231 = vweird.f32 %v2146
    %vm2232 = vweird.f32 %v2226
    %vm2233 = vmor %vm2231, %vm2232
    %v2234 = vsel %vm2233, %v2226, %v2230
    %v2235 = vand.u32 2147483647, %v2146
    %vm2236 = vcmp.eq.f32.partialorder %v2235, 8.507059e+37
    %v2237 = vand.u32 %v2146, 2147483648
    %v2238 = vor.u32 1.1754944e-38, %v2237
    %v2239 = vsel %vm2236, %v2238, %v2234
    %v2240 = vrcp.pop %v2149
    %v2241 = vmul.f32 %v2149, %v2240
    %v2242 = vsub.f32 1.0, %v2241
    %v2243 = vmul.f32 %v2240, %v2242
    %v2244 = vadd.f32 %v2240, %v2243
    %vm2245 = vweird.f32 %v2149
    %vm2246 = vweird.f32 %v2240
    %vm2247 = vmor %vm2245, %vm2246
    %v2248 = vsel %vm2247, %v2240, %v2244
    %v2249 = vand.u32 2147483647, %v2149
    %vm2250 = vcmp.eq.f32.partialorder %v2249, 8.507059e+37
    %v2251 = vand.u32 %v2149, 2147483648
    %v2252 = vor.u32 1.1754944e-38, %v2251
    %v2253 = vsel %vm2250, %v2252, %v2248
    %v2254 = vrcp.pop %v2152
    %v2255 = vmul.f32 %v2152, %v2254
    %v2256 = vsub.f32 1.0, %v2255
    %v2257 = vmul.f32 %v2254, %v2256
    %v2258 = vadd.f32 %v2254, %v2257
    %vm2259 = vweird.f32 %v2152
    %vm2260 = vweird.f32 %v2254
    %vm2261 = vmor %vm2259, %vm2260
    %v2262 = vsel %vm2261, %v2254, %v2258
    %v2263 = vand.u32 2147483647, %v2152
    %vm2264 = vcmp.eq.f32.partialorder %v2263, 8.507059e+37
    %v2265 = vand.u32 %v2152, 2147483648
    %v2266 = vor.u32 1.1754944e-38, %v2265
    %v2267 = vsel %vm2264, %v2266, %v2262
    %v2268 = vrcp.pop %v2155
    %v2269 = vmul.f32 %v2155, %v2268
    %v2270 = vsub.f32 1.0, %v2269
    %v2271 = vmul.f32 %v2268, %v2270
    %v2272 = vadd.f32 %v2268, %v2271
    %vm2273 = vweird.f32 %v2155
    %vm2274 = vweird.f32 %v2268
    %vm2275 = vmor %vm2273, %vm2274
    %v2276 = vsel %vm2275, %v2268, %v2272
    %v2277 = vand.u32 2147483647, %v2155
    %vm2278 = vcmp.eq.f32.partialorder %v2277, 8.507059e+37
    %v2279 = vand.u32 %v2155, 2147483648
    %v2280 = vor.u32 1.1754944e-38, %v2279
    %v2281 = vsel %vm2278, %v2280, %v2276
    %v2282 = vrcp.pop %v2158
    %v2283 = vmul.f32 %v2158, %v2282
    %v2284 = vsub.f32 1.0, %v2283
    %v2285 = vmul.f32 %v2282, %v2284
    %v2286 = vadd.f32 %v2282, %v2285
    %vm2287 = vweird.f32 %v2158
    %vm2288 = vweird.f32 %v2282
    %vm2289 = vmor %vm2287, %vm2288
    %v2290 = vsel %vm2289, %v2282, %v2286
    %v2291 = vand.u32 2147483647, %v2158
    %vm2292 = vcmp.eq.f32.partialorder %v2291, 8.507059e+37
    %v2293 = vand.u32 %v2158, 2147483648
    %v2294 = vor.u32 1.1754944e-38, %v2293
    %v2295 = vsel %vm2292, %v2294, %v2290
    %v2296 = vrcp.pop %v2161
    %v2297 = vmul.f32 %v2161, %v2296
    %v2298 = vsub.f32 1.0, %v2297
    %v2299 = vmul.f32 %v2296, %v2298
    %v2300 = vadd.f32 %v2296, %v2299
    %vm2301 = vweird.f32 %v2161
    %vm2302 = vweird.f32 %v2296
    %vm2303 = vmor %vm2301, %vm2302
    %v2304 = vsel %vm2303, %v2296, %v2300
    %v2305 = vand.u32 2147483647, %v2161
    %vm2306 = vcmp.eq.f32.partialorder %v2305, 8.507059e+37
    %v2307 = vand.u32 %v2161, 2147483648
    %v2308 = vor.u32 1.1754944e-38, %v2307
    %v2309 = vsel %vm2306, %v2308, %v2304
    %v2310 = vrcp.pop %v2164
    %v2311 = vmul.f32 %v2164, %v2310
    %v2312 = vsub.f32 1.0, %v2311
    %v2313 = vmul.f32 %v2310, %v2312
    %v2314 = vadd.f32 %v2310, %v2313
    %vm2315 = vweird.f32 %v2164
    %vm2316 = vweird.f32 %v2310
    %vm2317 = vmor %vm2315, %vm2316
    %v2318 = vsel %vm2317, %v2310, %v2314
    %v2319 = vand.u32 2147483647, %v2164
    %vm2320 = vcmp.eq.f32.partialorder %v2319, 8.507059e+37
    %v2321 = vand.u32 %v2164, 2147483648
    %v2322 = vor.u32 1.1754944e-38, %v2321
    %v2323 = vsel %vm2320, %v2322, %v2318
    %v2324 = vrcp.pop %v2167
    %v2325 = vmul.f32 %v2167, %v2324
    %v2326 = vsub.f32 1.0, %v2325
    %v2327 = vmul.f32 %v2324, %v2326
    %v2328 = vadd.f32 %v2324, %v2327
    %vm2329 = vweird.f32 %v2167
    %vm2330 = vweird.f32 %v2324
    %vm2331 = vmor %vm2329, %vm2330
    %v2332 = vsel %vm2331, %v2324, %v2328
    %v2333 = vand.u32 2147483647, %v2167
    %vm2334 = vcmp.eq.f32.partialorder %v2333, 8.507059e+37
    %v2335 = vand.u32 %v2167, 2147483648
    %v2336 = vor.u32 1.1754944e-38, %v2335
    %v2337 = vsel %vm2334, %v2336, %v2332
    %v2338 = vrcp.pop %v2170
    %v2339 = vmul.f32 %v2170, %v2338
    %v2340 = vsub.f32 1.0, %v2339
    %v2341 = vmul.f32 %v2338, %v2340
    %v2342 = vadd.f32 %v2338, %v2341
    %vm2343 = vweird.f32 %v2170
    %vm2344 = vweird.f32 %v2338
    %vm2345 = vmor %vm2343, %vm2344
    %v2346 = vsel %vm2345, %v2338, %v2342
    %v2347 = vand.u32 2147483647, %v2170
    %vm2348 = vcmp.eq.f32.partialorder %v2347, 8.507059e+37
    %v2349 = vand.u32 %v2170, 2147483648
    %v2350 = vor.u32 1.1754944e-38, %v2349
    %v2351 = vsel %vm2348, %v2350, %v2346
    %v2352 = vrcp.pop %v2173
    %v2353 = vmul.f32 %v2173, %v2352
    %v2354 = vsub.f32 1.0, %v2353
    %v2355 = vmul.f32 %v2352, %v2354
    %v2356 = vadd.f32 %v2352, %v2355
    %vm2357 = vweird.f32 %v2173
    %vm2358 = vweird.f32 %v2352
    %vm2359 = vmor %vm2357, %vm2358
    %v2360 = vsel %vm2359, %v2352, %v2356
    %v2361 = vand.u32 2147483647, %v2173
    %vm2362 = vcmp.eq.f32.partialorder %v2361, 8.507059e+37
    %v2363 = vand.u32 %v2173, 2147483648
    %v2364 = vor.u32 1.1754944e-38, %v2363
    %v2365 = vsel %vm2362, %v2364, %v2360
    %v2366 = vrcp.pop %v2176
    %v2367 = vmul.f32 %v2176, %v2366
    %v2368 = vsub.f32 1.0, %v2367
    %v2369 = vmul.f32 %v2366, %v2368
    %v2370 = vadd.f32 %v2366, %v2369
    %vm2371 = vweird.f32 %v2176
    %vm2372 = vweird.f32 %v2366
    %vm2373 = vmor %vm2371, %vm2372
    %v2374 = vsel %vm2373, %v2366, %v2370
    %v2375 = vand.u32 2147483647, %v2176
    %vm2376 = vcmp.eq.f32.partialorder %v2375, 8.507059e+37
    %v2377 = vand.u32 %v2176, 2147483648
    %v2378 = vor.u32 1.1754944e-38, %v2377
    %v2379 = vsel %vm2376, %v2378, %v2374
    %v2380 = vrcp.pop %v2179
    %v2381 = vmul.f32 %v2179, %v2380
    %v2382 = vsub.f32 1.0, %v2381
    %v2383 = vmul.f32 %v2380, %v2382
    %v2384 = vadd.f32 %v2380, %v2383
    %vm2385 = vweird.f32 %v2179
    %vm2386 = vweird.f32 %v2380
    %vm2387 = vmor %vm2385, %vm2386
    %v2388 = vsel %vm2387, %v2380, %v2384
    %v2389 = vand.u32 2147483647, %v2179
    %vm2390 = vcmp.eq.f32.partialorder %v2389, 8.507059e+37
    %v2391 = vand.u32 %v2179, 2147483648
    %v2392 = vor.u32 1.1754944e-38, %v2391
    %v2393 = vsel %vm2390, %v2392, %v2388
    %v2394 = vrcp.pop %v2182
    %v2395 = vmul.f32 %v2182, %v2394
    %v2396 = vsub.f32 1.0, %v2395
    %v2397 = vmul.f32 %v2394, %v2396
    %v2398 = vadd.f32 %v2394, %v2397
    %vm2399 = vweird.f32 %v2182
    %vm2400 = vweird.f32 %v2394
    %vm2401 = vmor %vm2399, %vm2400
    %v2402 = vsel %vm2401, %v2394, %v2398
    %v2403 = vand.u32 2147483647, %v2182
    %vm2404 = vcmp.eq.f32.partialorder %v2403, 8.507059e+37
    %v2405 = vand.u32 %v2182, 2147483648
    %v2406 = vor.u32 1.1754944e-38, %v2405
    %v2407 = vsel %vm2404, %v2406, %v2402
    %2409 = vset.pattern.permute.xlu0 0
    %2410 = vperm.xlu0 %2409, %v2197
    %v2411 = vpop.permute.xlu0 %2410
    %2414 = vset.pattern.permute.xlu0 0
    %2415 = vperm.xlu0 %2414, %v2211
    %v2416 = vpop.permute.xlu0 %2415
    %2419 = vset.pattern.permute.xlu0 0
    %2420 = vperm.xlu0 %2419, %v2225
    %v2421 = vpop.permute.xlu0 %2420
    %2424 = vset.pattern.permute.xlu0 0
    %2425 = vperm.xlu0 %2424, %v2239
    %v2426 = vpop.permute.xlu0 %2425
    %2429 = vset.pattern.permute.xlu0 0
    %2430 = vperm.xlu0 %2429, %v2253
    %v2431 = vpop.permute.xlu0 %2430
    %2434 = vset.pattern.permute.xlu0 0
    %2435 = vperm.xlu0 %2434, %v2267
    %v2436 = vpop.permute.xlu0 %2435
    %2439 = vset.pattern.permute.xlu0 0
    %2440 = vperm.xlu0 %2439, %v2281
    %v2441 = vpop.permute.xlu0 %2440
    %2444 = vset.pattern.permute.xlu0 0
    %2445 = vperm.xlu0 %2444, %v2295
    %v2446 = vpop.permute.xlu0 %2445
    %2449 = vset.pattern.permute.xlu0 0
    %2450 = vperm.xlu0 %2449, %v2309
    %v2451 = vpop.permute.xlu0 %2450
    %2454 = vset.pattern.permute.xlu0 0
    %2455 = vperm.xlu0 %2454, %v2323
    %v2456 = vpop.permute.xlu0 %2455
    %2459 = vset.pattern.permute.xlu0 0
    %2460 = vperm.xlu0 %2459, %v2337
    %v2461 = vpop.permute.xlu0 %2460
    %2464 = vset.pattern.permute.xlu0 0
    %2465 = vperm.xlu0 %2464, %v2351
    %v2466 = vpop.permute.xlu0 %2465
    %2469 = vset.pattern.permute.xlu0 0
    %2470 = vperm.xlu0 %2469, %v2365
    %v2471 = vpop.permute.xlu0 %2470
    %2474 = vset.pattern.permute.xlu0 0
    %2475 = vperm.xlu0 %2474, %v2379
    %v2476 = vpop.permute.xlu0 %2475
    %2479 = vset.pattern.permute.xlu0 0
    %2480 = vperm.xlu0 %2479, %v2393
    %v2481 = vpop.permute.xlu0 %2480
    %2484 = vset.pattern.permute.xlu0 0
    %2485 = vperm.xlu0 %2484, %v2407
    %v2486 = vpop.permute.xlu0 %2485
    %v2488 = vmul.f32 %v2088, %v2411
    %v2489 = vmul.f32 %v2090, %v2416
    %v2490 = vmul.f32 %v2092, %v2421
    %v2491 = vmul.f32 %v2094, %v2426
    %v2492 = vmul.f32 %v2096, %v2431
    %v2493 = vmul.f32 %v2098, %v2436
    %v2494 = vmul.f32 %v2100, %v2441
    %v2495 = vmul.f32 %v2102, %v2446
    %v2496 = vmul.f32 %v2104, %v2451
    %v2497 = vmul.f32 %v2106, %v2456
    %v2498 = vmul.f32 %v2108, %v2461
    %v2499 = vmul.f32 %v2110, %v2466
    %v2500 = vmul.f32 %v2112, %v2471
    %v2501 = vmul.f32 %v2114, %v2476
    %v2502 = vmul.f32 %v2116, %v2481
    %v2503 = vmul.f32 %v2118, %v2486
    %vm2506 = vcmask 1043456
    %v2507 = vrot.slane %v1866, 4
    %v2508 = vrot.slane %v1869, 4
    %v2509 = vsel %vm2506, %v2507, %v2508
    %v2510 = vrot.slane %v1872, 4
    %v2511 = vsel %vm2506, %v2508, %v2510
    %2514 = vmatpush.xpose.msra.mxu0 %v2503
    %2515 = vmatpush.xpose.msra.mxu0 %v2502
    %2516 = vmatpush.xpose.msra.mxu0 %v2501
    %2517 = vmatpush.xpose.msra.mxu0 %v2500
    %2518 = vmatpush.xpose.msra.mxu0 %v2499
    %2519 = vmatpush.xpose.msra.mxu0 %v2498
    %2520 = vmatpush.xpose.msra.mxu0 %v2497
    %2521 = vmatpush.xpose.msra.mxu0 %v2496
    %2522 = vmatpush.xpose.msra.mxu0 %v2495
    %2523 = vmatpush.xpose.msra.mxu0 %v2494
    %2524 = vmatpush.xpose.msra.mxu0 %v2493
    %2525 = vmatpush.xpose.msra.mxu0 %v2492
    %2526 = vmatpush.xpose.msra.mxu0 %v2491
    %2527 = vmatpush.xpose.msra.mxu0 %v2490
    %2528 = vmatpush.xpose.msra.mxu0 %v2489
    %2529 = vmatpush.xpose.msra.mxu0 %v2488
    %2530 = vmatmul.f32.gmra.mxu0 %v2509
    %v2531 = vpop.f32.mrf.mxu0
    %v2532 = vadd.f32 0.0, %v2531
    %2533 = vmatmul.f32.gmra.mxu0 %v2511
    %v2534 = vpop.f32.mrf.mxu0
    %v2535 = vadd.f32 0.0, %v2534
    %2536 = vdwg.mxu0
    %s2537 = sld [smem:[#allocation8]]
    %v2538 = vstv %s2537
    %v2539 = vmul.f32 %v2538, %v2532
    %v2540 = vmul.f32 %v2538, %v2535
    %v2541 = vmax.f32 %v2539, 0.0
    %v2542 = vmax.f32 %v2540, 0.0
    %v2543 = vmul.f32 %v2541, %v2541
    %v2544 = vmul.f32 %v2542, %v2542
    %2545 = vmatpush.msra.mxu0 0.0078125
    %2546 = vmatpush.msra.mxu0 0.0078125
    %2547 = vmatpush.msra.mxu0 0.0078125
    %2548 = vmatpush.msra.mxu0 0.0078125
    %2549 = vmatpush.msra.mxu0 0.0078125
    %2550 = vmatpush.msra.mxu0 0.0078125
    %2551 = vmatpush.msra.mxu0 0.0078125
    %2552 = vmatpush.msra.mxu0 0.0078125
    %2553 = vmatpush.msra.mxu0 0.0078125
    %2554 = vmatpush.msra.mxu0 0.0078125
    %2555 = vmatpush.msra.mxu0 0.0078125
    %2556 = vmatpush.msra.mxu0 0.0078125
    %2557 = vmatpush.msra.mxu0 0.0078125
    %2558 = vmatpush.msra.mxu0 0.0078125
    %2559 = vmatpush.msra.mxu0 0.0078125
    %2560 = vmatpush.msra.mxu0 0.0078125
    %2561 = vmatmul.f32.gmra.mxu0 %v2541
    %v2562 = vpop.f32.mrf.mxu0
    %v2563 = vadd.f32 0.0, %v2562
    %2564 = vmatmul.f32.gmra.mxu0 %v2542
    %v2565 = vpop.f32.mrf.mxu0
    %v2566 = vadd.f32 0.0, %v2565
    %2567 = vmatmul.f32.gmra.mxu0 %v2543
    %v2568 = vpop.f32.mrf.mxu0
    %v2569 = vadd.f32 0.0, %v2568
    %2570 = vmatmul.f32.gmra.mxu0 %v2544
    %v2571 = vpop.f32.mrf.mxu0
    %v2572 = vadd.f32 0.0, %v2571
    %2573 = vdwg.mxu0
    %v2574 = vmul.f32 %v2563, %v2563
    %v2575 = vmul.f32 %v2566, %v2566
    %v2576 = vsub.f32 %v2569, %v2574
    %v2577 = vsub.f32 %v2572, %v2575
    %2579 = vset.pattern.permute.xlu0 0
    %2580 = vperm.xlu0 %2579, %v2563
    %v2581 = vpop.permute.xlu0 %2580
    %2584 = vset.pattern.permute.xlu0 0
    %2585 = vperm.xlu0 %2584, %v2566
    %v2586 = vpop.permute.xlu0 %2585
    %v2588 = vsub.f32 %v2541, %v2581
    %v2589 = vsub.f32 %v2542, %v2586
    %v2590 = vadd.f32 %v2576, 1e-05
    %v2591 = vadd.f32 %v2577, 1e-05
    %v2592 = vrsqrt.pop %v2590
    %v2593 = vmul.f32 %v2592, %v2590
    %v2594 = vmul.f32 %v2593, %v2592
    %v2595 = vmul.f32 0.5, %v2594
    %v2596 = vsub.f32 1.5, %v2595
    %v2597 = vmul.f32 %v2592, %v2596
    %vm2598 = vweird.f32 %v2590
    %vm2599 = vweird.f32 %v2592
    %vm2600 = vmor %vm2598, %vm2599
    %v2601 = vsel %vm2600, %v2592, %v2597
    %v2602 = vrsqrt.pop %v2591
    %v2603 = vmul.f32 %v2602, %v2591
    %v2604 = vmul.f32 %v2603, %v2602
    %v2605 = vmul.f32 0.5, %v2604
    %v2606 = vsub.f32 1.5, %v2605
    %v2607 = vmul.f32 %v2602, %v2606
    %vm2608 = vweird.f32 %v2591
    %vm2609 = vweird.f32 %v2602
    %vm2610 = vmor %vm2608, %vm2609
    %v2611 = vsel %vm2610, %v2602, %v2607
    %2613 = vset.pattern.permute.xlu0 0
    %2614 = vperm.xlu0 %2613, %v2601
    %v2615 = vpop.permute.xlu0 %2614
    %2618 = vset.pattern.permute.xlu0 0
    %2619 = vperm.xlu0 %2618, %v2611
    %v2620 = vpop.permute.xlu0 %2619
    %v2622 = vmul.f32 %v2588, %v2615
    %v2623 = vmul.f32 %v2589, %v2620
    %2624 = vset.pattern.permute.xlu0 18
    %2625 = vperm.xlu0 %2624, %v228
    %v2626 = vpop.permute.xlu0 %2625
    %2628 = vset.pattern.permute.xlu0 18
    %2629 = vperm.xlu0 %2628, %v229
    %v2630 = vpop.permute.xlu0 %2629
    %v2632 = vmul.f32 %v2622, %v2626
    %v2633 = vmul.f32 %v2623, %v2630
    %2634 = vset.pattern.permute.xlu0 19
    %2635 = vperm.xlu0 %2634, %v228
    %v2636 = vpop.permute.xlu0 %2635
    %2638 = vset.pattern.permute.xlu0 19
    %2639 = vperm.xlu0 %2638, %v229
    %v2640 = vpop.permute.xlu0 %2639
    %v2642 = vadd.f32 %v2632, %v2636
    %v2643 = vadd.f32 %v2633, %v2640
    %v2644 = vld [vmem:[#allocation2 + $0x90] sm:$0xff]
    %v2645 = vld [vmem:[#allocation2 + $0x98] sm:$0xff]
    %v2646 = vld [vmem:[#allocation2 + $0xa0] sm:$0xf]
    %2647 = vset.pattern.permute.xlu0 20
    %2648 = vperm.xlu0 %2647, %v1821
    %v2649 = vpop.permute.xlu0 %2648
    %2651 = vset.pattern.permute.xlu0 20
    %2652 = vperm.xlu0 %2651, %v1822
    %v2653 = vpop.permute.xlu0 %2652
    %2655 = vset.pattern.permute.xlu0 20
    %2656 = vperm.xlu0 %2655, %v1823
    %v2657 = vpop.permute.xlu0 %2656
    %v2660 = vsel %vm262, %v2644, 0
    %v2663 = vsel %vm262, %v2645, 0
    %v2666 = vsel %vm262, %v2646, 0
    %2668 = vmatpush.msra.mxu0 0.0
    %2669 = vmatpush.msra.mxu0 0.0
    %2670 = vmatpush.msra.mxu0 0.0
    %2671 = vmatpush.msra.mxu0 0.0
    %2672 = vmatpush.msra.mxu0 0.0
    %2673 = vmatpush.msra.mxu0 0.0
    %2674 = vmatpush.msra.mxu0 0.0
    %2675 = vmatpush.msra.mxu0 0.0
    %2676 = vmatpush.msra.mxu0 0.0
    %2677 = vmatpush.msra.mxu0 0.0
    %2678 = vmatpush.msra.mxu0 0.0
    %2679 = vmatpush.msra.mxu0 0.0
    %2680 = vmatpush.msra.mxu0 0.0
    %2681 = vmatpush.msra.mxu0 0.0
    %2682 = vmatpush.msra.mxu0 %v2643
    %2683 = vmatpush.msra.mxu0 %v2642
    %2684 = vmatmul.f32.gmra.mxu0 %v2660
    %v2685 = vpop.f32.mrf.mxu0
    %v2686 = vadd.f32 %v2649, %v2685
    %2687 = vmatmul.f32.gmra.mxu0 %v2663
    %v2688 = vpop.f32.mrf.mxu0
    %v2689 = vadd.f32 %v2653, %v2688
    %2690 = vmatmul.f32.gmra.mxu0 %v2666
    %v2691 = vpop.f32.mrf.mxu0
    %v2692 = vadd.f32 %v2657, %v2691
    %2693 = vdwg.mxu0
    %2694 = vxpose.xlu0.b32.start [1/16] %v2686, 128
    %2695 = vxpose.xlu0.b32.cont [2/16] 0.0, 128
    %2696 = vxpose.xlu0.b32.cont [3/16] 0.0, 128
    %2697 = vxpose.xlu0.b32.cont [4/16] 0.0, 128
    %2698 = vxpose.xlu0.b32.cont [5/16] 0.0, 128
    %2699 = vxpose.xlu0.b32.cont [6/16] 0.0, 128
    %2700 = vxpose.xlu0.b32.cont [7/16] 0.0, 128
    %2701 = vxpose.xlu0.b32.cont [8/16] 0.0, 128
    %2702 = vxpose.xlu0.b32.cont [9/16] 0.0, 128
    %2703 = vxpose.xlu0.b32.cont [10/16] 0.0, 128
    %2704 = vxpose.xlu0.b32.cont [11/16] 0.0, 128
    %2705 = vxpose.xlu0.b32.cont [12/16] 0.0, 128
    %2706 = vxpose.xlu0.b32.cont [13/16] 0.0, 128
    %2707 = vxpose.xlu0.b32.cont [14/16] 0.0, 128
    %2708 = vxpose.xlu0.b32.cont [15/16] 0.0, 128
    %2709 = vxpose.xlu0.b32.end [16/16] 0.0, 128
    %v2710 = vpop.trf.xlu0
    %v2711 = vpop.trf.xlu0
    %v2712 = vpop.trf.xlu0
    %v2713 = vpop.trf.xlu0
    %v2714 = vpop.trf.xlu0
    %v2715 = vpop.trf.xlu0
    %v2716 = vpop.trf.xlu0
    %v2717 = vpop.trf.xlu0
    %v2718 = vpop.trf.xlu0
    %v2719 = vpop.trf.xlu0
    %v2720 = vpop.trf.xlu0
    %v2721 = vpop.trf.xlu0
    %v2722 = vpop.trf.xlu0
    %v2723 = vpop.trf.xlu0
    %v2724 = vpop.trf.xlu0
    %v2725 = vpop.trf.xlu0
    %v2727 = vrot.slane %v2686, 2
    %v2729 = vsel %vm325, %v2710, 0
    %v2732 = vsel %vm325, %v2711, 0
    %v2735 = vsel %vm325, %v2712, 0
    %v2738 = vsel %vm325, %v2713, 0
    %v2741 = vsel %vm325, %v2714, 0
    %v2744 = vsel %vm325, %v2715, 0
    %v2747 = vsel %vm325, %v2716, 0
    %v2750 = vsel %vm325, %v2717, 0
    %v2753 = vsel %vm325, %v2718, 0
    %v2756 = vsel %vm325, %v2719, 0
    %v2759 = vsel %vm325, %v2720, 0
    %v2762 = vsel %vm325, %v2721, 0
    %v2765 = vsel %vm325, %v2722, 0
    %v2768 = vsel %vm325, %v2723, 0
    %v2771 = vsel %vm325, %v2724, 0
    %v2774 = vsel %vm325, %v2725, 0
    %v2776 = vsel %vm332, %v2727, 0
    %2778 = vmatpush.msra.mxu0 0.0
    %2779 = vmatpush.msra.mxu0 0.0
    %2780 = vmatpush.msra.mxu0 0.0
    %2781 = vmatpush.msra.mxu0 0.0
    %2782 = vmatpush.msra.mxu0 0.0
    %2783 = vmatpush.msra.mxu0 0.0
    %2784 = vmatpush.msra.mxu0 0.0
    %2785 = vmatpush.msra.mxu0 0.0
    %2786 = vmatpush.msra.mxu0 0.0
    %2787 = vmatpush.msra.mxu0 0.0
    %2788 = vmatpush.msra.mxu0 0.0
    %2789 = vmatpush.msra.mxu0 0.0
    %2790 = vmatpush.msra.mxu0 0.0
    %2791 = vmatpush.msra.mxu0 0.0
    %2792 = vmatpush.msra.mxu0 0.0
    %2793 = vmatpush.msra.mxu0 %v2776
    %2794 = vmatmul.f32.gmra.mxu0 %v2729
    %v2795 = vpop.f32.mrf.mxu0
    %v2796 = vadd.f32 %v1874, %v2795
    %2797 = vmatmul.f32.gmra.mxu0 %v2732
    %v2798 = vpop.f32.mrf.mxu0
    %v2799 = vadd.f32 %v1875, %v2798
    %2800 = vmatmul.f32.gmra.mxu0 %v2735
    %v2801 = vpop.f32.mrf.mxu0
    %v2802 = vadd.f32 %v1876, %v2801
    %2803 = vmatmul.f32.gmra.mxu0 %v2738
    %v2804 = vpop.f32.mrf.mxu0
    %v2805 = vadd.f32 %v1877, %v2804
    %2806 = vmatmul.f32.gmra.mxu0 %v2741
    %v2807 = vpop.f32.mrf.mxu0
    %v2808 = vadd.f32 %v1878, %v2807
    %2809 = vmatmul.f32.gmra.mxu0 %v2744
    %v2810 = vpop.f32.mrf.mxu0
    %v2811 = vadd.f32 %v1879, %v2810
    %2812 = vmatmul.f32.gmra.mxu0 %v2747
    %v2813 = vpop.f32.mrf.mxu0
    %v2814 = vadd.f32 %v1880, %v2813
    %2815 = vmatmul.f32.gmra.mxu0 %v2750
    %v2816 = vpop.f32.mrf.mxu0
    %v2817 = vadd.f32 %v1881, %v2816
    %2818 = vmatmul.f32.gmra.mxu0 %v2753
    %v2819 = vpop.f32.mrf.mxu0
    %v2820 = vadd.f32 %v1882, %v2819
    %2821 = vmatmul.f32.gmra.mxu0 %v2756
    %v2822 = vpop.f32.mrf.mxu0
    %v2823 = vadd.f32 %v1883, %v2822
    %2824 = vmatmul.f32.gmra.mxu0 %v2759
    %v2825 = vpop.f32.mrf.mxu0
    %v2826 = vadd.f32 %v1884, %v2825
    %2827 = vmatmul.f32.gmra.mxu0 %v2762
    %v2828 = vpop.f32.mrf.mxu0
    %v2829 = vadd.f32 %v1885, %v2828
    %2830 = vmatmul.f32.gmra.mxu0 %v2765
    %v2831 = vpop.f32.mrf.mxu0
    %v2832 = vadd.f32 %v1886, %v2831
    %2833 = vmatmul.f32.gmra.mxu0 %v2768
    %v2834 = vpop.f32.mrf.mxu0
    %v2835 = vadd.f32 %v1887, %v2834
    %2836 = vmatmul.f32.gmra.mxu0 %v2771
    %v2837 = vpop.f32.mrf.mxu0
    %v2838 = vadd.f32 %v1888, %v2837
    %2839 = vmatmul.f32.gmra.mxu0 %v2774
    %v2840 = vpop.f32.mrf.mxu0
    %v2841 = vadd.f32 %v1889, %v2840
    %2842 = vdwg.mxu0
    %2843 = vmax.xlane.f32.xlu0 %v2796
    %v2844 = vpop.xlane.xlu0 %2843
    %2845 = vmax.xlane.f32.xlu0 %v2799
    %v2846 = vpop.xlane.xlu0 %2845
    %2847 = vmax.xlane.f32.xlu0 %v2802
    %v2848 = vpop.xlane.xlu0 %2847
    %2849 = vmax.xlane.f32.xlu0 %v2805
    %v2850 = vpop.xlane.xlu0 %2849
    %2851 = vmax.xlane.f32.xlu0 %v2808
    %v2852 = vpop.xlane.xlu0 %2851
    %2853 = vmax.xlane.f32.xlu0 %v2811
    %v2854 = vpop.xlane.xlu0 %2853
    %2855 = vmax.xlane.f32.xlu0 %v2814
    %v2856 = vpop.xlane.xlu0 %2855
    %2857 = vmax.xlane.f32.xlu0 %v2817
    %v2858 = vpop.xlane.xlu0 %2857
    %2859 = vmax.xlane.f32.xlu0 %v2820
    %v2860 = vpop.xlane.xlu0 %2859
    %2861 = vmax.xlane.f32.xlu0 %v2823
    %v2862 = vpop.xlane.xlu0 %2861
    %2863 = vmax.xlane.f32.xlu0 %v2826
    %v2864 = vpop.xlane.xlu0 %2863
    %2865 = vmax.xlane.f32.xlu0 %v2829
    %v2866 = vpop.xlane.xlu0 %2865
    %2867 = vmax.xlane.f32.xlu0 %v2832
    %v2868 = vpop.xlane.xlu0 %2867
    %2869 = vmax.xlane.f32.xlu0 %v2835
    %v2870 = vpop.xlane.xlu0 %2869
    %2871 = vmax.xlane.f32.xlu0 %v2838
    %v2872 = vpop.xlane.xlu0 %2871
    %2873 = vmax.xlane.f32.xlu0 %v2841
    %v2874 = vpop.xlane.xlu0 %2873
    %v2875 = vsub.f32 %v2796, %v2844
    %v2876 = vsub.f32 %v2799, %v2846
    %v2877 = vsub.f32 %v2802, %v2848
    %v2878 = vsub.f32 %v2805, %v2850
    %v2879 = vsub.f32 %v2808, %v2852
    %v2880 = vsub.f32 %v2811, %v2854
    %v2881 = vsub.f32 %v2814, %v2856
    %v2882 = vsub.f32 %v2817, %v2858
    %v2883 = vsub.f32 %v2820, %v2860
    %v2884 = vsub.f32 %v2823, %v2862
    %v2885 = vsub.f32 %v2826, %v2864
    %v2886 = vsub.f32 %v2829, %v2866
    %v2887 = vsub.f32 %v2832, %v2868
    %v2888 = vsub.f32 %v2835, %v2870
    %v2889 = vsub.f32 %v2838, %v2872
    %v2890 = vsub.f32 %v2841, %v2874
    %v2891 = vmul.f32 %v2875, 1.442695
    %v2892 = vpow.pop %v2891
    %v2893 = vmul.f32 %v2876, 1.442695
    %v2894 = vpow.pop %v2893
    %v2895 = vmul.f32 %v2877, 1.442695
    %v2896 = vpow.pop %v2895
    %v2897 = vmul.f32 %v2878, 1.442695
    %v2898 = vpow.pop %v2897
    %v2899 = vmul.f32 %v2879, 1.442695
    %v2900 = vpow.pop %v2899
    %v2901 = vmul.f32 %v2880, 1.442695
    %v2902 = vpow.pop %v2901
    %v2903 = vmul.f32 %v2881, 1.442695
    %v2904 = vpow.pop %v2903
    %v2905 = vmul.f32 %v2882, 1.442695
    %v2906 = vpow.pop %v2905
    %v2907 = vmul.f32 %v2883, 1.442695
    %v2908 = vpow.pop %v2907
    %v2909 = vmul.f32 %v2884, 1.442695
    %v2910 = vpow.pop %v2909
    %v2911 = vmul.f32 %v2885, 1.442695
    %v2912 = vpow.pop %v2911
    %v2913 = vmul.f32 %v2886, 1.442695
    %v2914 = vpow.pop %v2913
    %v2915 = vmul.f32 %v2887, 1.442695
    %v2916 = vpow.pop %v2915
    %v2917 = vmul.f32 %v2888, 1.442695
    %v2918 = vpow.pop %v2917
    %v2919 = vmul.f32 %v2889, 1.442695
    %v2920 = vpow.pop %v2919
    %v2921 = vmul.f32 %v2890, 1.442695
    %v2922 = vpow.pop %v2921
    %2923 = vmatpush.msra.mxu0 1.0
    %2924 = vmatpush.msra.mxu0 1.0
    %2925 = vmatpush.msra.mxu0 1.0
    %2926 = vmatpush.msra.mxu0 1.0
    %2927 = vmatpush.msra.mxu0 1.0
    %2928 = vmatpush.msra.mxu0 1.0
    %2929 = vmatpush.msra.mxu0 1.0
    %2930 = vmatpush.msra.mxu0 1.0
    %2931 = vmatpush.msra.mxu0 1.0
    %2932 = vmatpush.msra.mxu0 1.0
    %2933 = vmatpush.msra.mxu0 1.0
    %2934 = vmatpush.msra.mxu0 1.0
    %2935 = vmatpush.msra.mxu0 1.0
    %2936 = vmatpush.msra.mxu0 1.0
    %2937 = vmatpush.msra.mxu0 1.0
    %2938 = vmatpush.msra.mxu0 1.0
    %2939 = vmatmul.f32.gmra.mxu0 %v2892
    %v2940 = vpop.f32.mrf.mxu0
    %v2941 = vadd.f32 0.0, %v2940
    %2942 = vmatmul.f32.gmra.mxu0 %v2894
    %v2943 = vpop.f32.mrf.mxu0
    %v2944 = vadd.f32 0.0, %v2943
    %2945 = vmatmul.f32.gmra.mxu0 %v2896
    %v2946 = vpop.f32.mrf.mxu0
    %v2947 = vadd.f32 0.0, %v2946
    %2948 = vmatmul.f32.gmra.mxu0 %v2898
    %v2949 = vpop.f32.mrf.mxu0
    %v2950 = vadd.f32 0.0, %v2949
    %2951 = vmatmul.f32.gmra.mxu0 %v2900
    %v2952 = vpop.f32.mrf.mxu0
    %v2953 = vadd.f32 0.0, %v2952
    %2954 = vmatmul.f32.gmra.mxu0 %v2902
    %v2955 = vpop.f32.mrf.mxu0
    %v2956 = vadd.f32 0.0, %v2955
    %2957 = vmatmul.f32.gmra.mxu0 %v2904
    %v2958 = vpop.f32.mrf.mxu0
    %v2959 = vadd.f32 0.0, %v2958
    %2960 = vmatmul.f32.gmra.mxu0 %v2906
    %v2961 = vpop.f32.mrf.mxu0
    %v2962 = vadd.f32 0.0, %v2961
    %2963 = vmatmul.f32.gmra.mxu0 %v2908
    %v2964 = vpop.f32.mrf.mxu0
    %v2965 = vadd.f32 0.0, %v2964
    %2966 = vmatmul.f32.gmra.mxu0 %v2910
    %v2967 = vpop.f32.mrf.mxu0
    %v2968 = vadd.f32 0.0, %v2967
    %2969 = vmatmul.f32.gmra.mxu0 %v2912
    %v2970 = vpop.f32.mrf.mxu0
    %v2971 = vadd.f32 0.0, %v2970
    %2972 = vmatmul.f32.gmra.mxu0 %v2914
    %v2973 = vpop.f32.mrf.mxu0
    %v2974 = vadd.f32 0.0, %v2973
    %2975 = vmatmul.f32.gmra.mxu0 %v2916
    %v2976 = vpop.f32.mrf.mxu0
    %v2977 = vadd.f32 0.0, %v2976
    %2978 = vmatmul.f32.gmra.mxu0 %v2918
    %v2979 = vpop.f32.mrf.mxu0
    %v2980 = vadd.f32 0.0, %v2979
    %2981 = vmatmul.f32.gmra.mxu0 %v2920
    %v2982 = vpop.f32.mrf.mxu0
    %v2983 = vadd.f32 0.0, %v2982
    %2984 = vmatmul.f32.gmra.mxu0 %v2922
    %v2985 = vpop.f32.mrf.mxu0
    %v2986 = vadd.f32 0.0, %v2985
    %2987 = vdwg.mxu0
    %v2988 = vrcp.pop %v2941
    %v2989 = vmul.f32 %v2941, %v2988
    %v2990 = vsub.f32 1.0, %v2989
    %v2991 = vmul.f32 %v2988, %v2990
    %v2992 = vadd.f32 %v2988, %v2991
    %vm2993 = vweird.f32 %v2941
    %vm2994 = vweird.f32 %v2988
    %vm2995 = vmor %vm2993, %vm2994
    %v2996 = vsel %vm2995, %v2988, %v2992
    %v2997 = vand.u32 2147483647, %v2941
    %vm2998 = vcmp.eq.f32.partialorder %v2997, 8.507059e+37
    %v2999 = vand.u32 %v2941, 2147483648
    %v3000 = vor.u32 1.1754944e-38, %v2999
    %v3001 = vsel %vm2998, %v3000, %v2996
    %v3002 = vrcp.pop %v2944
    %v3003 = vmul.f32 %v2944, %v3002
    %v3004 = vsub.f32 1.0, %v3003
    %v3005 = vmul.f32 %v3002, %v3004
    %v3006 = vadd.f32 %v3002, %v3005
    %vm3007 = vweird.f32 %v2944
    %vm3008 = vweird.f32 %v3002
    %vm3009 = vmor %vm3007, %vm3008
    %v3010 = vsel %vm3009, %v3002, %v3006
    %v3011 = vand.u32 2147483647, %v2944
    %vm3012 = vcmp.eq.f32.partialorder %v3011, 8.507059e+37
    %v3013 = vand.u32 %v2944, 2147483648
    %v3014 = vor.u32 1.1754944e-38, %v3013
    %v3015 = vsel %vm3012, %v3014, %v3010
    %v3016 = vrcp.pop %v2947
    %v3017 = vmul.f32 %v2947, %v3016
    %v3018 = vsub.f32 1.0, %v3017
    %v3019 = vmul.f32 %v3016, %v3018
    %v3020 = vadd.f32 %v3016, %v3019
    %vm3021 = vweird.f32 %v2947
    %vm3022 = vweird.f32 %v3016
    %vm3023 = vmor %vm3021, %vm3022
    %v3024 = vsel %vm3023, %v3016, %v3020
    %v3025 = vand.u32 2147483647, %v2947
    %vm3026 = vcmp.eq.f32.partialorder %v3025, 8.507059e+37
    %v3027 = vand.u32 %v2947, 2147483648
    %v3028 = vor.u32 1.1754944e-38, %v3027
    %v3029 = vsel %vm3026, %v3028, %v3024
    %v3030 = vrcp.pop %v2950
    %v3031 = vmul.f32 %v2950, %v3030
    %v3032 = vsub.f32 1.0, %v3031
    %v3033 = vmul.f32 %v3030, %v3032
    %v3034 = vadd.f32 %v3030, %v3033
    %vm3035 = vweird.f32 %v2950
    %vm3036 = vweird.f32 %v3030
    %vm3037 = vmor %vm3035, %vm3036
    %v3038 = vsel %vm3037, %v3030, %v3034
    %v3039 = vand.u32 2147483647, %v2950
    %vm3040 = vcmp.eq.f32.partialorder %v3039, 8.507059e+37
    %v3041 = vand.u32 %v2950, 2147483648
    %v3042 = vor.u32 1.1754944e-38, %v3041
    %v3043 = vsel %vm3040, %v3042, %v3038
    %v3044 = vrcp.pop %v2953
    %v3045 = vmul.f32 %v2953, %v3044
    %v3046 = vsub.f32 1.0, %v3045
    %v3047 = vmul.f32 %v3044, %v3046
    %v3048 = vadd.f32 %v3044, %v3047
    %vm3049 = vweird.f32 %v2953
    %vm3050 = vweird.f32 %v3044
    %vm3051 = vmor %vm3049, %vm3050
    %v3052 = vsel %vm3051, %v3044, %v3048
    %v3053 = vand.u32 2147483647, %v2953
    %vm3054 = vcmp.eq.f32.partialorder %v3053, 8.507059e+37
    %v3055 = vand.u32 %v2953, 2147483648
    %v3056 = vor.u32 1.1754944e-38, %v3055
    %v3057 = vsel %vm3054, %v3056, %v3052
    %v3058 = vrcp.pop %v2956
    %v3059 = vmul.f32 %v2956, %v3058
    %v3060 = vsub.f32 1.0, %v3059
    %v3061 = vmul.f32 %v3058, %v3060
    %v3062 = vadd.f32 %v3058, %v3061
    %vm3063 = vweird.f32 %v2956
    %vm3064 = vweird.f32 %v3058
    %vm3065 = vmor %vm3063, %vm3064
    %v3066 = vsel %vm3065, %v3058, %v3062
    %v3067 = vand.u32 2147483647, %v2956
    %vm3068 = vcmp.eq.f32.partialorder %v3067, 8.507059e+37
    %v3069 = vand.u32 %v2956, 2147483648
    %v3070 = vor.u32 1.1754944e-38, %v3069
    %v3071 = vsel %vm3068, %v3070, %v3066
    %v3072 = vrcp.pop %v2959
    %v3073 = vmul.f32 %v2959, %v3072
    %v3074 = vsub.f32 1.0, %v3073
    %v3075 = vmul.f32 %v3072, %v3074
    %v3076 = vadd.f32 %v3072, %v3075
    %vm3077 = vweird.f32 %v2959
    %vm3078 = vweird.f32 %v3072
    %vm3079 = vmor %vm3077, %vm3078
    %v3080 = vsel %vm3079, %v3072, %v3076
    %v3081 = vand.u32 2147483647, %v2959
    %vm3082 = vcmp.eq.f32.partialorder %v3081, 8.507059e+37
    %v3083 = vand.u32 %v2959, 2147483648
    %v3084 = vor.u32 1.1754944e-38, %v3083
    %v3085 = vsel %vm3082, %v3084, %v3080
    %v3086 = vrcp.pop %v2962
    %v3087 = vmul.f32 %v2962, %v3086
    %v3088 = vsub.f32 1.0, %v3087
    %v3089 = vmul.f32 %v3086, %v3088
    %v3090 = vadd.f32 %v3086, %v3089
    %vm3091 = vweird.f32 %v2962
    %vm3092 = vweird.f32 %v3086
    %vm3093 = vmor %vm3091, %vm3092
    %v3094 = vsel %vm3093, %v3086, %v3090
    %v3095 = vand.u32 2147483647, %v2962
    %vm3096 = vcmp.eq.f32.partialorder %v3095, 8.507059e+37
    %v3097 = vand.u32 %v2962, 2147483648
    %v3098 = vor.u32 1.1754944e-38, %v3097
    %v3099 = vsel %vm3096, %v3098, %v3094
    %v3100 = vrcp.pop %v2965
    %v3101 = vmul.f32 %v2965, %v3100
    %v3102 = vsub.f32 1.0, %v3101
    %v3103 = vmul.f32 %v3100, %v3102
    %v3104 = vadd.f32 %v3100, %v3103
    %vm3105 = vweird.f32 %v2965
    %vm3106 = vweird.f32 %v3100
    %vm3107 = vmor %vm3105, %vm3106
    %v3108 = vsel %vm3107, %v3100, %v3104
    %v3109 = vand.u32 2147483647, %v2965
    %vm3110 = vcmp.eq.f32.partialorder %v3109, 8.507059e+37
    %v3111 = vand.u32 %v2965, 2147483648
    %v3112 = vor.u32 1.1754944e-38, %v3111
    %v3113 = vsel %vm3110, %v3112, %v3108
    %v3114 = vrcp.pop %v2968
    %v3115 = vmul.f32 %v2968, %v3114
    %v3116 = vsub.f32 1.0, %v3115
    %v3117 = vmul.f32 %v3114, %v3116
    %v3118 = vadd.f32 %v3114, %v3117
    %vm3119 = vweird.f32 %v2968
    %vm3120 = vweird.f32 %v3114
    %vm3121 = vmor %vm3119, %vm3120
    %v3122 = vsel %vm3121, %v3114, %v3118
    %v3123 = vand.u32 2147483647, %v2968
    %vm3124 = vcmp.eq.f32.partialorder %v3123, 8.507059e+37
    %v3125 = vand.u32 %v2968, 2147483648
    %v3126 = vor.u32 1.1754944e-38, %v3125
    %v3127 = vsel %vm3124, %v3126, %v3122
    %v3128 = vrcp.pop %v2971
    %v3129 = vmul.f32 %v2971, %v3128
    %v3130 = vsub.f32 1.0, %v3129
    %v3131 = vmul.f32 %v3128, %v3130
    %v3132 = vadd.f32 %v3128, %v3131
    %vm3133 = vweird.f32 %v2971
    %vm3134 = vweird.f32 %v3128
    %vm3135 = vmor %vm3133, %vm3134
    %v3136 = vsel %vm3135, %v3128, %v3132
    %v3137 = vand.u32 2147483647, %v2971
    %vm3138 = vcmp.eq.f32.partialorder %v3137, 8.507059e+37
    %v3139 = vand.u32 %v2971, 2147483648
    %v3140 = vor.u32 1.1754944e-38, %v3139
    %v3141 = vsel %vm3138, %v3140, %v3136
    %v3142 = vrcp.pop %v2974
    %v3143 = vmul.f32 %v2974, %v3142
    %v3144 = vsub.f32 1.0, %v3143
    %v3145 = vmul.f32 %v3142, %v3144
    %v3146 = vadd.f32 %v3142, %v3145
    %vm3147 = vweird.f32 %v2974
    %vm3148 = vweird.f32 %v3142
    %vm3149 = vmor %vm3147, %vm3148
    %v3150 = vsel %vm3149, %v3142, %v3146
    %v3151 = vand.u32 2147483647, %v2974
    %vm3152 = vcmp.eq.f32.partialorder %v3151, 8.507059e+37
    %v3153 = vand.u32 %v2974, 2147483648
    %v3154 = vor.u32 1.1754944e-38, %v3153
    %v3155 = vsel %vm3152, %v3154, %v3150
    %v3156 = vrcp.pop %v2977
    %v3157 = vmul.f32 %v2977, %v3156
    %v3158 = vsub.f32 1.0, %v3157
    %v3159 = vmul.f32 %v3156, %v3158
    %v3160 = vadd.f32 %v3156, %v3159
    %vm3161 = vweird.f32 %v2977
    %vm3162 = vweird.f32 %v3156
    %vm3163 = vmor %vm3161, %vm3162
    %v3164 = vsel %vm3163, %v3156, %v3160
    %v3165 = vand.u32 2147483647, %v2977
    %vm3166 = vcmp.eq.f32.partialorder %v3165, 8.507059e+37
    %v3167 = vand.u32 %v2977, 2147483648
    %v3168 = vor.u32 1.1754944e-38, %v3167
    %v3169 = vsel %vm3166, %v3168, %v3164
    %v3170 = vrcp.pop %v2980
    %v3171 = vmul.f32 %v2980, %v3170
    %v3172 = vsub.f32 1.0, %v3171
    %v3173 = vmul.f32 %v3170, %v3172
    %v3174 = vadd.f32 %v3170, %v3173
    %vm3175 = vweird.f32 %v2980
    %vm3176 = vweird.f32 %v3170
    %vm3177 = vmor %vm3175, %vm3176
    %v3178 = vsel %vm3177, %v3170, %v3174
    %v3179 = vand.u32 2147483647, %v2980
    %vm3180 = vcmp.eq.f32.partialorder %v3179, 8.507059e+37
    %v3181 = vand.u32 %v2980, 2147483648
    %v3182 = vor.u32 1.1754944e-38, %v3181
    %v3183 = vsel %vm3180, %v3182, %v3178
    %v3184 = vrcp.pop %v2983
    %v3185 = vmul.f32 %v2983, %v3184
    %v3186 = vsub.f32 1.0, %v3185
    %v3187 = vmul.f32 %v3184, %v3186
    %v3188 = vadd.f32 %v3184, %v3187
    %vm3189 = vweird.f32 %v2983
    %vm3190 = vweird.f32 %v3184
    %vm3191 = vmor %vm3189, %vm3190
    %v3192 = vsel %vm3191, %v3184, %v3188
    %v3193 = vand.u32 2147483647, %v2983
    %vm3194 = vcmp.eq.f32.partialorder %v3193, 8.507059e+37
    %v3195 = vand.u32 %v2983, 2147483648
    %v3196 = vor.u32 1.1754944e-38, %v3195
    %v3197 = vsel %vm3194, %v3196, %v3192
    %v3198 = vrcp.pop %v2986
    %v3199 = vmul.f32 %v2986, %v3198
    %v3200 = vsub.f32 1.0, %v3199
    %v3201 = vmul.f32 %v3198, %v3200
    %v3202 = vadd.f32 %v3198, %v3201
    %vm3203 = vweird.f32 %v2986
    %vm3204 = vweird.f32 %v3198
    %vm3205 = vmor %vm3203, %vm3204
    %v3206 = vsel %vm3205, %v3198, %v3202
    %v3207 = vand.u32 2147483647, %v2986
    %vm3208 = vcmp.eq.f32.partialorder %v3207, 8.507059e+37
    %v3209 = vand.u32 %v2986, 2147483648
    %v3210 = vor.u32 1.1754944e-38, %v3209
    %v3211 = vsel %vm3208, %v3210, %v3206
    %3213 = vset.pattern.permute.xlu0 0
    %3214 = vperm.xlu0 %3213, %v3001
    %v3215 = vpop.permute.xlu0 %3214
    %3218 = vset.pattern.permute.xlu0 0
    %3219 = vperm.xlu0 %3218, %v3015
    %v3220 = vpop.permute.xlu0 %3219
    %3223 = vset.pattern.permute.xlu0 0
    %3224 = vperm.xlu0 %3223, %v3029
    %v3225 = vpop.permute.xlu0 %3224
    %3228 = vset.pattern.permute.xlu0 0
    %3229 = vperm.xlu0 %3228, %v3043
    %v3230 = vpop.permute.xlu0 %3229
    %3233 = vset.pattern.permute.xlu0 0
    %3234 = vperm.xlu0 %3233, %v3057
    %v3235 = vpop.permute.xlu0 %3234
    %3238 = vset.pattern.permute.xlu0 0
    %3239 = vperm.xlu0 %3238, %v3071
    %v3240 = vpop.permute.xlu0 %3239
    %3243 = vset.pattern.permute.xlu0 0
    %3244 = vperm.xlu0 %3243, %v3085
    %v3245 = vpop.permute.xlu0 %3244
    %3248 = vset.pattern.permute.xlu0 0
    %3249 = vperm.xlu0 %3248, %v3099
    %v3250 = vpop.permute.xlu0 %3249
    %3253 = vset.pattern.permute.xlu0 0
    %3254 = vperm.xlu0 %3253, %v3113
    %v3255 = vpop.permute.xlu0 %3254
    %3258 = vset.pattern.permute.xlu0 0
    %3259 = vperm.xlu0 %3258, %v3127
    %v3260 = vpop.permute.xlu0 %3259
    %3263 = vset.pattern.permute.xlu0 0
    %3264 = vperm.xlu0 %3263, %v3141
    %v3265 = vpop.permute.xlu0 %3264
    %3268 = vset.pattern.permute.xlu0 0
    %3269 = vperm.xlu0 %3268, %v3155
    %v3270 = vpop.permute.xlu0 %3269
    %3273 = vset.pattern.permute.xlu0 0
    %3274 = vperm.xlu0 %3273, %v3169
    %v3275 = vpop.permute.xlu0 %3274
    %3278 = vset.pattern.permute.xlu0 0
    %3279 = vperm.xlu0 %3278, %v3183
    %v3280 = vpop.permute.xlu0 %3279
    %3283 = vset.pattern.permute.xlu0 0
    %3284 = vperm.xlu0 %3283, %v3197
    %v3285 = vpop.permute.xlu0 %3284
    %3288 = vset.pattern.permute.xlu0 0
    %3289 = vperm.xlu0 %3288, %v3211
    %v3290 = vpop.permute.xlu0 %3289
    %v3292 = vmul.f32 %v2892, %v3215
    %v3293 = vmul.f32 %v2894, %v3220
    %v3294 = vmul.f32 %v2896, %v3225
    %v3295 = vmul.f32 %v2898, %v3230
    %v3296 = vmul.f32 %v2900, %v3235
    %v3297 = vmul.f32 %v2902, %v3240
    %v3298 = vmul.f32 %v2904, %v3245
    %v3299 = vmul.f32 %v2906, %v3250
    %v3300 = vmul.f32 %v2908, %v3255
    %v3301 = vmul.f32 %v2910, %v3260
    %v3302 = vmul.f32 %v2912, %v3265
    %v3303 = vmul.f32 %v2914, %v3270
    %v3304 = vmul.f32 %v2916, %v3275
    %v3305 = vmul.f32 %v2918, %v3280
    %v3306 = vmul.f32 %v2920, %v3285
    %v3307 = vmul.f32 %v2922, %v3290
    %v3310 = vrot.slane %v2686, 4
    %v3311 = vrot.slane %v2689, 4
    %v3312 = vsel %vm2506, %v3310, %v3311
    %v3313 = vrot.slane %v2692, 4
    %v3314 = vsel %vm2506, %v3311, %v3313
    %3317 = vmatpush.xpose.msra.mxu0 %v3307
    %3318 = vmatpush.xpose.msra.mxu0 %v3306
    %3319 = vmatpush.xpose.msra.mxu0 %v3305
    %3320 = vmatpush.xpose.msra.mxu0 %v3304
    %3321 = vmatpush.xpose.msra.mxu0 %v3303
    %3322 = vmatpush.xpose.msra.mxu0 %v3302
    %3323 = vmatpush.xpose.msra.mxu0 %v3301
    %3324 = vmatpush.xpose.msra.mxu0 %v3300
    %3325 = vmatpush.xpose.msra.mxu0 %v3299
    %3326 = vmatpush.xpose.msra.mxu0 %v3298
    %3327 = vmatpush.xpose.msra.mxu0 %v3297
    %3328 = vmatpush.xpose.msra.mxu0 %v3296
    %3329 = vmatpush.xpose.msra.mxu0 %v3295
    %3330 = vmatpush.xpose.msra.mxu0 %v3294
    %3331 = vmatpush.xpose.msra.mxu0 %v3293
    %3332 = vmatpush.xpose.msra.mxu0 %v3292
    %3333 = vmatmul.f32.gmra.mxu0 %v3312
    %v3334 = vpop.f32.mrf.mxu0
    %v3335 = vadd.f32 0.0, %v3334
    %3336 = vmatmul.f32.gmra.mxu0 %v3314
    %v3337 = vpop.f32.mrf.mxu0
    %v3338 = vadd.f32 0.0, %v3337
    %3339 = vdwg.mxu0
    %s3340 = sld [smem:[#allocation8 + $0x1]]
    %v3341 = vstv %s3340
    %v3342 = vmul.f32 %v3341, %v3335
    %v3343 = vmul.f32 %v3341, %v3338
    %v3344 = vmax.f32 %v3342, 0.0
    %v3345 = vmax.f32 %v3343, 0.0
    %v3346 = vmul.f32 %v3344, %v3344
    %v3347 = vmul.f32 %v3345, %v3345
    %3348 = vmatpush.msra.mxu0 0.0078125
    %3349 = vmatpush.msra.mxu0 0.0078125
    %3350 = vmatpush.msra.mxu0 0.0078125
    %3351 = vmatpush.msra.mxu0 0.0078125
    %3352 = vmatpush.msra.mxu0 0.0078125
    %3353 = vmatpush.msra.mxu0 0.0078125
    %3354 = vmatpush.msra.mxu0 0.0078125
    %3355 = vmatpush.msra.mxu0 0.0078125
    %3356 = vmatpush.msra.mxu0 0.0078125
    %3357 = vmatpush.msra.mxu0 0.0078125
    %3358 = vmatpush.msra.mxu0 0.0078125
    %3359 = vmatpush.msra.mxu0 0.0078125
    %3360 = vmatpush.msra.mxu0 0.0078125
    %3361 = vmatpush.msra.mxu0 0.0078125
    %3362 = vmatpush.msra.mxu0 0.0078125
    %3363 = vmatpush.msra.mxu0 0.0078125
    %3364 = vmatmul.f32.gmra.mxu0 %v3344
    %v3365 = vpop.f32.mrf.mxu0
    %v3366 = vadd.f32 0.0, %v3365
    %3367 = vmatmul.f32.gmra.mxu0 %v3345
    %v3368 = vpop.f32.mrf.mxu0
    %v3369 = vadd.f32 0.0, %v3368
    %3370 = vmatmul.f32.gmra.mxu0 %v3346
    %v3371 = vpop.f32.mrf.mxu0
    %v3372 = vadd.f32 0.0, %v3371
    %3373 = vmatmul.f32.gmra.mxu0 %v3347
    %v3374 = vpop.f32.mrf.mxu0
    %v3375 = vadd.f32 0.0, %v3374
    %3376 = vdwg.mxu0
    %v3377 = vmul.f32 %v3366, %v3366
    %v3378 = vmul.f32 %v3369, %v3369
    %v3379 = vsub.f32 %v3372, %v3377
    %v3380 = vsub.f32 %v3375, %v3378
    %3382 = vset.pattern.permute.xlu0 0
    %3383 = vperm.xlu0 %3382, %v3366
    %v3384 = vpop.permute.xlu0 %3383
    %3387 = vset.pattern.permute.xlu0 0
    %3388 = vperm.xlu0 %3387, %v3369
    %v3389 = vpop.permute.xlu0 %3388
    %v3391 = vsub.f32 %v3344, %v3384
    %v3392 = vsub.f32 %v3345, %v3389
    %v3393 = vadd.f32 %v3379, 1e-05
    %v3394 = vadd.f32 %v3380, 1e-05
    %v3395 = vrsqrt.pop %v3393
    %v3396 = vmul.f32 %v3395, %v3393
    %v3397 = vmul.f32 %v3396, %v3395
    %v3398 = vmul.f32 0.5, %v3397
    %v3399 = vsub.f32 1.5, %v3398
    %v3400 = vmul.f32 %v3395, %v3399
    %vm3401 = vweird.f32 %v3393
    %vm3402 = vweird.f32 %v3395
    %vm3403 = vmor %vm3401, %vm3402
    %v3404 = vsel %vm3403, %v3395, %v3400
    %v3405 = vrsqrt.pop %v3394
    %v3406 = vmul.f32 %v3405, %v3394
    %v3407 = vmul.f32 %v3406, %v3405
    %v3408 = vmul.f32 0.5, %v3407
    %v3409 = vsub.f32 1.5, %v3408
    %v3410 = vmul.f32 %v3405, %v3409
    %vm3411 = vweird.f32 %v3394
    %vm3412 = vweird.f32 %v3405
    %vm3413 = vmor %vm3411, %vm3412
    %v3414 = vsel %vm3413, %v3405, %v3410
    %3416 = vset.pattern.permute.xlu0 0
    %3417 = vperm.xlu0 %3416, %v3404
    %v3418 = vpop.permute.xlu0 %3417
    %3421 = vset.pattern.permute.xlu0 0
    %3422 = vperm.xlu0 %3421, %v3414
    %v3423 = vpop.permute.xlu0 %3422
    %v3425 = vmul.f32 %v3391, %v3418
    %v3426 = vmul.f32 %v3392, %v3423
    %3427 = vset.pattern.permute.xlu0 21
    %3428 = vperm.xlu0 %3427, %v228
    %v3429 = vpop.permute.xlu0 %3428
    %3431 = vset.pattern.permute.xlu0 21
    %3432 = vperm.xlu0 %3431, %v229
    %v3433 = vpop.permute.xlu0 %3432
    %v3435 = vmul.f32 %v3425, %v3429
    %v3436 = vmul.f32 %v3426, %v3433
    %3437 = vset.pattern.permute.xlu0 22
    %3438 = vperm.xlu0 %3437, %v228
    %v3439 = vpop.permute.xlu0 %3438
    %3441 = vset.pattern.permute.xlu0 22
    %3442 = vperm.xlu0 %3441, %v229
    %v3443 = vpop.permute.xlu0 %3442
    %v3445 = vadd.f32 %v3435, %v3439
    %v3446 = vadd.f32 %v3436, %v3443
    %v3447 = vadd.f32 %v3445, %v1816
    %v3448 = vadd.f32 %v3446, %v1817
    %v3449 = vmax.f32 %v3447, 0.0
    %v3450 = vmax.f32 %v3448, 0.0
    %v3451 = vld [vmem:[#allocation2 + $0xa8] sm:$0xff]
    %v3452 = vld [vmem:[#allocation2 + $0xb0] sm:$0xff]
    %v3453 = vld [vmem:[#allocation2 + $0xb8] sm:$0xf]
    %3454 = vset.pattern.permute.xlu0 23
    %3455 = vperm.xlu0 %3454, %v1821
    %v3456 = vpop.permute.xlu0 %3455
    %3458 = vset.pattern.permute.xlu0 23
    %3459 = vperm.xlu0 %3458, %v1822
    %v3460 = vpop.permute.xlu0 %3459
    %3462 = vset.pattern.permute.xlu0 23
    %3463 = vperm.xlu0 %3462, %v1823
    %v3464 = vpop.permute.xlu0 %3463
    %v3467 = vsel %vm262, %v3451, 0
    %v3470 = vsel %vm262, %v3452, 0
    %v3473 = vsel %vm262, %v3453, 0
    %3475 = vmatpush.msra.mxu0 0.0
    %3476 = vmatpush.msra.mxu0 0.0
    %3477 = vmatpush.msra.mxu0 0.0
    %3478 = vmatpush.msra.mxu0 0.0
    %3479 = vmatpush.msra.mxu0 0.0
    %3480 = vmatpush.msra.mxu0 0.0
    %3481 = vmatpush.msra.mxu0 0.0
    %3482 = vmatpush.msra.mxu0 0.0
    %3483 = vmatpush.msra.mxu0 0.0
    %3484 = vmatpush.msra.mxu0 0.0
    %3485 = vmatpush.msra.mxu0 0.0
    %3486 = vmatpush.msra.mxu0 0.0
    %3487 = vmatpush.msra.mxu0 0.0
    %3488 = vmatpush.msra.mxu0 0.0
    %3489 = vmatpush.msra.mxu0 %v3450
    %3490 = vmatpush.msra.mxu0 %v3449
    %3491 = vmatmul.f32.gmra.mxu0 %v3467
    %v3492 = vpop.f32.mrf.mxu0
    %v3493 = vadd.f32 %v3456, %v3492
    %3494 = vmatmul.f32.gmra.mxu0 %v3470
    %v3495 = vpop.f32.mrf.mxu0
    %v3496 = vadd.f32 %v3460, %v3495
    %3497 = vmatmul.f32.gmra.mxu0 %v3473
    %v3498 = vpop.f32.mrf.mxu0
    %v3499 = vadd.f32 %v3464, %v3498
    %3500 = vdwg.mxu0
    %3501 = vxpose.xlu0.b32.start [1/16] %v3493, 128
    %3502 = vxpose.xlu0.b32.cont [2/16] 0.0, 128
    %3503 = vxpose.xlu0.b32.cont [3/16] 0.0, 128
    %3504 = vxpose.xlu0.b32.cont [4/16] 0.0, 128
    %3505 = vxpose.xlu0.b32.cont [5/16] 0.0, 128
    %3506 = vxpose.xlu0.b32.cont [6/16] 0.0, 128
    %3507 = vxpose.xlu0.b32.cont [7/16] 0.0, 128
    %3508 = vxpose.xlu0.b32.cont [8/16] 0.0, 128
    %3509 = vxpose.xlu0.b32.cont [9/16] 0.0, 128
    %3510 = vxpose.xlu0.b32.cont [10/16] 0.0, 128
    %3511 = vxpose.xlu0.b32.cont [11/16] 0.0, 128
    %3512 = vxpose.xlu0.b32.cont [12/16] 0.0, 128
    %3513 = vxpose.xlu0.b32.cont [13/16] 0.0, 128
    %3514 = vxpose.xlu0.b32.cont [14/16] 0.0, 128
    %3515 = vxpose.xlu0.b32.cont [15/16] 0.0, 128
    %3516 = vxpose.xlu0.b32.end [16/16] 0.0, 128
    %v3517 = vpop.trf.xlu0
    %v3518 = vpop.trf.xlu0
    %v3519 = vpop.trf.xlu0
    %v3520 = vpop.trf.xlu0
    %v3521 = vpop.trf.xlu0
    %v3522 = vpop.trf.xlu0
    %v3523 = vpop.trf.xlu0
    %v3524 = vpop.trf.xlu0
    %v3525 = vpop.trf.xlu0
    %v3526 = vpop.trf.xlu0
    %v3527 = vpop.trf.xlu0
    %v3528 = vpop.trf.xlu0
    %v3529 = vpop.trf.xlu0
    %v3530 = vpop.trf.xlu0
    %v3531 = vpop.trf.xlu0
    %v3532 = vpop.trf.xlu0
    %v3534 = vrot.slane %v3493, 2
    %v3536 = vsel %vm325, %v3517, 0
    %v3539 = vsel %vm325, %v3518, 0
    %v3542 = vsel %vm325, %v3519, 0
    %v3545 = vsel %vm325, %v3520, 0
    %v3548 = vsel %vm325, %v3521, 0
    %v3551 = vsel %vm325, %v3522, 0
    %v3554 = vsel %vm325, %v3523, 0
    %v3557 = vsel %vm325, %v3524, 0
    %v3560 = vsel %vm325, %v3525, 0
    %v3563 = vsel %vm325, %v3526, 0
    %v3566 = vsel %vm325, %v3527, 0
    %v3569 = vsel %vm325, %v3528, 0
    %v3572 = vsel %vm325, %v3529, 0
    %v3575 = vsel %vm325, %v3530, 0
    %v3578 = vsel %vm325, %v3531, 0
    %v3581 = vsel %vm325, %v3532, 0
    %v3583 = vsel %vm332, %v3534, 0
    %3585 = vmatpush.msra.mxu0 0.0
    %3586 = vmatpush.msra.mxu0 0.0
    %3587 = vmatpush.msra.mxu0 0.0
    %3588 = vmatpush.msra.mxu0 0.0
    %3589 = vmatpush.msra.mxu0 0.0
    %3590 = vmatpush.msra.mxu0 0.0
    %3591 = vmatpush.msra.mxu0 0.0
    %3592 = vmatpush.msra.mxu0 0.0
    %3593 = vmatpush.msra.mxu0 0.0
    %3594 = vmatpush.msra.mxu0 0.0
    %3595 = vmatpush.msra.mxu0 0.0
    %3596 = vmatpush.msra.mxu0 0.0
    %3597 = vmatpush.msra.mxu0 0.0
    %3598 = vmatpush.msra.mxu0 0.0
    %3599 = vmatpush.msra.mxu0 0.0
    %3600 = vmatpush.msra.mxu0 %v3583
    %3601 = vmatmul.f32.gmra.mxu0 %v3536
    %v3602 = vpop.f32.mrf.mxu0
    %v3603 = vadd.f32 %v1874, %v3602
    %3604 = vmatmul.f32.gmra.mxu0 %v3539
    %v3605 = vpop.f32.mrf.mxu0
    %v3606 = vadd.f32 %v1875, %v3605
    %3607 = vmatmul.f32.gmra.mxu0 %v3542
    %v3608 = vpop.f32.mrf.mxu0
    %v3609 = vadd.f32 %v1876, %v3608
    %3610 = vmatmul.f32.gmra.mxu0 %v3545
    %v3611 = vpop.f32.mrf.mxu0
    %v3612 = vadd.f32 %v1877, %v3611
    %3613 = vmatmul.f32.gmra.mxu0 %v3548
    %v3614 = vpop.f32.mrf.mxu0
    %v3615 = vadd.f32 %v1878, %v3614
    %3616 = vmatmul.f32.gmra.mxu0 %v3551
    %v3617 = vpop.f32.mrf.mxu0
    %v3618 = vadd.f32 %v1879, %v3617
    %3619 = vmatmul.f32.gmra.mxu0 %v3554
    %v3620 = vpop.f32.mrf.mxu0
    %v3621 = vadd.f32 %v1880, %v3620
    %3622 = vmatmul.f32.gmra.mxu0 %v3557
    %v3623 = vpop.f32.mrf.mxu0
    %v3624 = vadd.f32 %v1881, %v3623
    %3625 = vmatmul.f32.gmra.mxu0 %v3560
    %v3626 = vpop.f32.mrf.mxu0
    %v3627 = vadd.f32 %v1882, %v3626
    %3628 = vmatmul.f32.gmra.mxu0 %v3563
    %v3629 = vpop.f32.mrf.mxu0
    %v3630 = vadd.f32 %v1883, %v3629
    %3631 = vmatmul.f32.gmra.mxu0 %v3566
    %v3632 = vpop.f32.mrf.mxu0
    %v3633 = vadd.f32 %v1884, %v3632
    %3634 = vmatmul.f32.gmra.mxu0 %v3569
    %v3635 = vpop.f32.mrf.mxu0
    %v3636 = vadd.f32 %v1885, %v3635
    %3637 = vmatmul.f32.gmra.mxu0 %v3572
    %v3638 = vpop.f32.mrf.mxu0
    %v3639 = vadd.f32 %v1886, %v3638
    %3640 = vmatmul.f32.gmra.mxu0 %v3575
    %v3641 = vpop.f32.mrf.mxu0
    %v3642 = vadd.f32 %v1887, %v3641
    %3643 = vmatmul.f32.gmra.mxu0 %v3578
    %v3644 = vpop.f32.mrf.mxu0
    %v3645 = vadd.f32 %v1888, %v3644
    %3646 = vmatmul.f32.gmra.mxu0 %v3581
    %v3647 = vpop.f32.mrf.mxu0
    %v3648 = vadd.f32 %v1889, %v3647
    %3649 = vdwg.mxu0
    %3650 = vmax.xlane.f32.xlu0 %v3603
    %v3651 = vpop.xlane.xlu0 %3650
    %3652 = vmax.xlane.f32.xlu0 %v3606
    %v3653 = vpop.xlane.xlu0 %3652
    %3654 = vmax.xlane.f32.xlu0 %v3609
    %v3655 = vpop.xlane.xlu0 %3654
    %3656 = vmax.xlane.f32.xlu0 %v3612
    %v3657 = vpop.xlane.xlu0 %3656
    %3658 = vmax.xlane.f32.xlu0 %v3615
    %v3659 = vpop.xlane.xlu0 %3658
    %3660 = vmax.xlane.f32.xlu0 %v3618
    %v3661 = vpop.xlane.xlu0 %3660
    %3662 = vmax.xlane.f32.xlu0 %v3621
    %v3663 = vpop.xlane.xlu0 %3662
    %3664 = vmax.xlane.f32.xlu0 %v3624
    %v3665 = vpop.xlane.xlu0 %3664
    %3666 = vmax.xlane.f32.xlu0 %v3627
    %v3667 = vpop.xlane.xlu0 %3666
    %3668 = vmax.xlane.f32.xlu0 %v3630
    %v3669 = vpop.xlane.xlu0 %3668
    %3670 = vmax.xlane.f32.xlu0 %v3633
    %v3671 = vpop.xlane.xlu0 %3670
    %3672 = vmax.xlane.f32.xlu0 %v3636
    %v3673 = vpop.xlane.xlu0 %3672
    %3674 = vmax.xlane.f32.xlu0 %v3639
    %v3675 = vpop.xlane.xlu0 %3674
    %3676 = vmax.xlane.f32.xlu0 %v3642
    %v3677 = vpop.xlane.xlu0 %3676
    %3678 = vmax.xlane.f32.xlu0 %v3645
    %v3679 = vpop.xlane.xlu0 %3678
    %3680 = vmax.xlane.f32.xlu0 %v3648
    %v3681 = vpop.xlane.xlu0 %3680
    %v3682 = vsub.f32 %v3603, %v3651
    %v3683 = vsub.f32 %v3606, %v3653
    %v3684 = vsub.f32 %v3609, %v3655
    %v3685 = vsub.f32 %v3612, %v3657
    %v3686 = vsub.f32 %v3615, %v3659
    %v3687 = vsub.f32 %v3618, %v3661
    %v3688 = vsub.f32 %v3621, %v3663
    %v3689 = vsub.f32 %v3624, %v3665
    %v3690 = vsub.f32 %v3627, %v3667
    %v3691 = vsub.f32 %v3630, %v3669
    %v3692 = vsub.f32 %v3633, %v3671
    %v3693 = vsub.f32 %v3636, %v3673
    %v3694 = vsub.f32 %v3639, %v3675
    %v3695 = vsub.f32 %v3642, %v3677
    %v3696 = vsub.f32 %v3645, %v3679
    %v3697 = vsub.f32 %v3648, %v3681
    %v3698 = vmul.f32 %v3682, 1.442695
    %v3699 = vpow.pop %v3698
    %v3700 = vmul.f32 %v3683, 1.442695
    %v3701 = vpow.pop %v3700
    %v3702 = vmul.f32 %v3684, 1.442695
    %v3703 = vpow.pop %v3702
    %v3704 = vmul.f32 %v3685, 1.442695
    %v3705 = vpow.pop %v3704
    %v3706 = vmul.f32 %v3686, 1.442695
    %v3707 = vpow.pop %v3706
    %v3708 = vmul.f32 %v3687, 1.442695
    %v3709 = vpow.pop %v3708
    %v3710 = vmul.f32 %v3688, 1.442695
    %v3711 = vpow.pop %v3710
    %v3712 = vmul.f32 %v3689, 1.442695
    %v3713 = vpow.pop %v3712
    %v3714 = vmul.f32 %v3690, 1.442695
    %v3715 = vpow.pop %v3714
    %v3716 = vmul.f32 %v3691, 1.442695
    %v3717 = vpow.pop %v3716
    %v3718 = vmul.f32 %v3692, 1.442695
    %v3719 = vpow.pop %v3718
    %v3720 = vmul.f32 %v3693, 1.442695
    %v3721 = vpow.pop %v3720
    %v3722 = vmul.f32 %v3694, 1.442695
    %v3723 = vpow.pop %v3722
    %v3724 = vmul.f32 %v3695, 1.442695
    %v3725 = vpow.pop %v3724
    %v3726 = vmul.f32 %v3696, 1.442695
    %v3727 = vpow.pop %v3726
    %v3728 = vmul.f32 %v3697, 1.442695
    %v3729 = vpow.pop %v3728
    %3730 = vmatpush.msra.mxu0 1.0
    %3731 = vmatpush.msra.mxu0 1.0
    %3732 = vmatpush.msra.mxu0 1.0
    %3733 = vmatpush.msra.mxu0 1.0
    %3734 = vmatpush.msra.mxu0 1.0
    %3735 = vmatpush.msra.mxu0 1.0
    %3736 = vmatpush.msra.mxu0 1.0
    %3737 = vmatpush.msra.mxu0 1.0
    %3738 = vmatpush.msra.mxu0 1.0
    %3739 = vmatpush.msra.mxu0 1.0
    %3740 = vmatpush.msra.mxu0 1.0
    %3741 = vmatpush.msra.mxu0 1.0
    %3742 = vmatpush.msra.mxu0 1.0
    %3743 = vmatpush.msra.mxu0 1.0
    %3744 = vmatpush.msra.mxu0 1.0
    %3745 = vmatpush.msra.mxu0 1.0
    %3746 = vmatmul.f32.gmra.mxu0 %v3699
    %v3747 = vpop.f32.mrf.mxu0
    %v3748 = vadd.f32 0.0, %v3747
    %3749 = vmatmul.f32.gmra.mxu0 %v3701
    %v3750 = vpop.f32.mrf.mxu0
    %v3751 = vadd.f32 0.0, %v3750
    %3752 = vmatmul.f32.gmra.mxu0 %v3703
    %v3753 = vpop.f32.mrf.mxu0
    %v3754 = vadd.f32 0.0, %v3753
    %3755 = vmatmul.f32.gmra.mxu0 %v3705
    %v3756 = vpop.f32.mrf.mxu0
    %v3757 = vadd.f32 0.0, %v3756
    %3758 = vmatmul.f32.gmra.mxu0 %v3707
    %v3759 = vpop.f32.mrf.mxu0
    %v3760 = vadd.f32 0.0, %v3759
    %3761 = vmatmul.f32.gmra.mxu0 %v3709
    %v3762 = vpop.f32.mrf.mxu0
    %v3763 = vadd.f32 0.0, %v3762
    %3764 = vmatmul.f32.gmra.mxu0 %v3711
    %v3765 = vpop.f32.mrf.mxu0
    %v3766 = vadd.f32 0.0, %v3765
    %3767 = vmatmul.f32.gmra.mxu0 %v3713
    %v3768 = vpop.f32.mrf.mxu0
    %v3769 = vadd.f32 0.0, %v3768
    %3770 = vmatmul.f32.gmra.mxu0 %v3715
    %v3771 = vpop.f32.mrf.mxu0
    %v3772 = vadd.f32 0.0, %v3771
    %3773 = vmatmul.f32.gmra.mxu0 %v3717
    %v3774 = vpop.f32.mrf.mxu0
    %v3775 = vadd.f32 0.0, %v3774
    %3776 = vmatmul.f32.gmra.mxu0 %v3719
    %v3777 = vpop.f32.mrf.mxu0
    %v3778 = vadd.f32 0.0, %v3777
    %3779 = vmatmul.f32.gmra.mxu0 %v3721
    %v3780 = vpop.f32.mrf.mxu0
    %v3781 = vadd.f32 0.0, %v3780
    %3782 = vmatmul.f32.gmra.mxu0 %v3723
    %v3783 = vpop.f32.mrf.mxu0
    %v3784 = vadd.f32 0.0, %v3783
    %3785 = vmatmul.f32.gmra.mxu0 %v3725
    %v3786 = vpop.f32.mrf.mxu0
    %v3787 = vadd.f32 0.0, %v3786
    %3788 = vmatmul.f32.gmra.mxu0 %v3727
    %v3789 = vpop.f32.mrf.mxu0
    %v3790 = vadd.f32 0.0, %v3789
    %3791 = vmatmul.f32.gmra.mxu0 %v3729
    %v3792 = vpop.f32.mrf.mxu0
    %v3793 = vadd.f32 0.0, %v3792
    %3794 = vdwg.mxu0
    %v3795 = vrcp.pop %v3748
    %v3796 = vmul.f32 %v3748, %v3795
    %v3797 = vsub.f32 1.0, %v3796
    %v3798 = vmul.f32 %v3795, %v3797
    %v3799 = vadd.f32 %v3795, %v3798
    %vm3800 = vweird.f32 %v3748
    %vm3801 = vweird.f32 %v3795
    %vm3802 = vmor %vm3800, %vm3801
    %v3803 = vsel %vm3802, %v3795, %v3799
    %v3804 = vand.u32 2147483647, %v3748
    %vm3805 = vcmp.eq.f32.partialorder %v3804, 8.507059e+37
    %v3806 = vand.u32 %v3748, 2147483648
    %v3807 = vor.u32 1.1754944e-38, %v3806
    %v3808 = vsel %vm3805, %v3807, %v3803
    %v3809 = vrcp.pop %v3751
    %v3810 = vmul.f32 %v3751, %v3809
    %v3811 = vsub.f32 1.0, %v3810
    %v3812 = vmul.f32 %v3809, %v3811
    %v3813 = vadd.f32 %v3809, %v3812
    %vm3814 = vweird.f32 %v3751
    %vm3815 = vweird.f32 %v3809
    %vm3816 = vmor %vm3814, %vm3815
    %v3817 = vsel %vm3816, %v3809, %v3813
    %v3818 = vand.u32 2147483647, %v3751
    %vm3819 = vcmp.eq.f32.partialorder %v3818, 8.507059e+37
    %v3820 = vand.u32 %v3751, 2147483648
    %v3821 = vor.u32 1.1754944e-38, %v3820
    %v3822 = vsel %vm3819, %v3821, %v3817
    %v3823 = vrcp.pop %v3754
    %v3824 = vmul.f32 %v3754, %v3823
    %v3825 = vsub.f32 1.0, %v3824
    %v3826 = vmul.f32 %v3823, %v3825
    %v3827 = vadd.f32 %v3823, %v3826
    %vm3828 = vweird.f32 %v3754
    %vm3829 = vweird.f32 %v3823
    %vm3830 = vmor %vm3828, %vm3829
    %v3831 = vsel %vm3830, %v3823, %v3827
    %v3832 = vand.u32 2147483647, %v3754
    %vm3833 = vcmp.eq.f32.partialorder %v3832, 8.507059e+37
    %v3834 = vand.u32 %v3754, 2147483648
    %v3835 = vor.u32 1.1754944e-38, %v3834
    %v3836 = vsel %vm3833, %v3835, %v3831
    %v3837 = vrcp.pop %v3757
    %v3838 = vmul.f32 %v3757, %v3837
    %v3839 = vsub.f32 1.0, %v3838
    %v3840 = vmul.f32 %v3837, %v3839
    %v3841 = vadd.f32 %v3837, %v3840
    %vm3842 = vweird.f32 %v3757
    %vm3843 = vweird.f32 %v3837
    %vm3844 = vmor %vm3842, %vm3843
    %v3845 = vsel %vm3844, %v3837, %v3841
    %v3846 = vand.u32 2147483647, %v3757
    %vm3847 = vcmp.eq.f32.partialorder %v3846, 8.507059e+37
    %v3848 = vand.u32 %v3757, 2147483648
    %v3849 = vor.u32 1.1754944e-38, %v3848
    %v3850 = vsel %vm3847, %v3849, %v3845
    %v3851 = vrcp.pop %v3760
    %v3852 = vmul.f32 %v3760, %v3851
    %v3853 = vsub.f32 1.0, %v3852
    %v3854 = vmul.f32 %v3851, %v3853
    %v3855 = vadd.f32 %v3851, %v3854
    %vm3856 = vweird.f32 %v3760
    %vm3857 = vweird.f32 %v3851
    %vm3858 = vmor %vm3856, %vm3857
    %v3859 = vsel %vm3858, %v3851, %v3855
    %v3860 = vand.u32 2147483647, %v3760
    %vm3861 = vcmp.eq.f32.partialorder %v3860, 8.507059e+37
    %v3862 = vand.u32 %v3760, 2147483648
    %v3863 = vor.u32 1.1754944e-38, %v3862
    %v3864 = vsel %vm3861, %v3863, %v3859
    %v3865 = vrcp.pop %v3763
    %v3866 = vmul.f32 %v3763, %v3865
    %v3867 = vsub.f32 1.0, %v3866
    %v3868 = vmul.f32 %v3865, %v3867
    %v3869 = vadd.f32 %v3865, %v3868
    %vm3870 = vweird.f32 %v3763
    %vm3871 = vweird.f32 %v3865
    %vm3872 = vmor %vm3870, %vm3871
    %v3873 = vsel %vm3872, %v3865, %v3869
    %v3874 = vand.u32 2147483647, %v3763
    %vm3875 = vcmp.eq.f32.partialorder %v3874, 8.507059e+37
    %v3876 = vand.u32 %v3763, 2147483648
    %v3877 = vor.u32 1.1754944e-38, %v3876
    %v3878 = vsel %vm3875, %v3877, %v3873
    %v3879 = vrcp.pop %v3766
    %v3880 = vmul.f32 %v3766, %v3879
    %v3881 = vsub.f32 1.0, %v3880
    %v3882 = vmul.f32 %v3879, %v3881
    %v3883 = vadd.f32 %v3879, %v3882
    %vm3884 = vweird.f32 %v3766
    %vm3885 = vweird.f32 %v3879
    %vm3886 = vmor %vm3884, %vm3885
    %v3887 = vsel %vm3886, %v3879, %v3883
    %v3888 = vand.u32 2147483647, %v3766
    %vm3889 = vcmp.eq.f32.partialorder %v3888, 8.507059e+37
    %v3890 = vand.u32 %v3766, 2147483648
    %v3891 = vor.u32 1.1754944e-38, %v3890
    %v3892 = vsel %vm3889, %v3891, %v3887
    %v3893 = vrcp.pop %v3769
    %v3894 = vmul.f32 %v3769, %v3893
    %v3895 = vsub.f32 1.0, %v3894
    %v3896 = vmul.f32 %v3893, %v3895
    %v3897 = vadd.f32 %v3893, %v3896
    %vm3898 = vweird.f32 %v3769
    %vm3899 = vweird.f32 %v3893
    %vm3900 = vmor %vm3898, %vm3899
    %v3901 = vsel %vm3900, %v3893, %v3897
    %v3902 = vand.u32 2147483647, %v3769
    %vm3903 = vcmp.eq.f32.partialorder %v3902, 8.507059e+37
    %v3904 = vand.u32 %v3769, 2147483648
    %v3905 = vor.u32 1.1754944e-38, %v3904
    %v3906 = vsel %vm3903, %v3905, %v3901
    %v3907 = vrcp.pop %v3772
    %v3908 = vmul.f32 %v3772, %v3907
    %v3909 = vsub.f32 1.0, %v3908
    %v3910 = vmul.f32 %v3907, %v3909
    %v3911 = vadd.f32 %v3907, %v3910
    %vm3912 = vweird.f32 %v3772
    %vm3913 = vweird.f32 %v3907
    %vm3914 = vmor %vm3912, %vm3913
    %v3915 = vsel %vm3914, %v3907, %v3911
    %v3916 = vand.u32 2147483647, %v3772
    %vm3917 = vcmp.eq.f32.partialorder %v3916, 8.507059e+37
    %v3918 = vand.u32 %v3772, 2147483648
    %v3919 = vor.u32 1.1754944e-38, %v3918
    %v3920 = vsel %vm3917, %v3919, %v3915
    %v3921 = vrcp.pop %v3775
    %v3922 = vmul.f32 %v3775, %v3921
    %v3923 = vsub.f32 1.0, %v3922
    %v3924 = vmul.f32 %v3921, %v3923
    %v3925 = vadd.f32 %v3921, %v3924
    %vm3926 = vweird.f32 %v3775
    %vm3927 = vweird.f32 %v3921
    %vm3928 = vmor %vm3926, %vm3927
    %v3929 = vsel %vm3928, %v3921, %v3925
    %v3930 = vand.u32 2147483647, %v3775
    %vm3931 = vcmp.eq.f32.partialorder %v3930, 8.507059e+37
    %v3932 = vand.u32 %v3775, 2147483648
    %v3933 = vor.u32 1.1754944e-38, %v3932
    %v3934 = vsel %vm3931, %v3933, %v3929
    %v3935 = vrcp.pop %v3778
    %v3936 = vmul.f32 %v3778, %v3935
    %v3937 = vsub.f32 1.0, %v3936
    %v3938 = vmul.f32 %v3935, %v3937
    %v3939 = vadd.f32 %v3935, %v3938
    %vm3940 = vweird.f32 %v3778
    %vm3941 = vweird.f32 %v3935
    %vm3942 = vmor %vm3940, %vm3941
    %v3943 = vsel %vm3942, %v3935, %v3939
    %v3944 = vand.u32 2147483647, %v3778
    %vm3945 = vcmp.eq.f32.partialorder %v3944, 8.507059e+37
    %v3946 = vand.u32 %v3778, 2147483648
    %v3947 = vor.u32 1.1754944e-38, %v3946
    %v3948 = vsel %vm3945, %v3947, %v3943
    %v3949 = vrcp.pop %v3781
    %v3950 = vmul.f32 %v3781, %v3949
    %v3951 = vsub.f32 1.0, %v3950
    %v3952 = vmul.f32 %v3949, %v3951
    %v3953 = vadd.f32 %v3949, %v3952
    %vm3954 = vweird.f32 %v3781
    %vm3955 = vweird.f32 %v3949
    %vm3956 = vmor %vm3954, %vm3955
    %v3957 = vsel %vm3956, %v3949, %v3953
    %v3958 = vand.u32 2147483647, %v3781
    %vm3959 = vcmp.eq.f32.partialorder %v3958, 8.507059e+37
    %v3960 = vand.u32 %v3781, 2147483648
    %v3961 = vor.u32 1.1754944e-38, %v3960
    %v3962 = vsel %vm3959, %v3961, %v3957
    %v3963 = vrcp.pop %v3784
    %v3964 = vmul.f32 %v3784, %v3963
    %v3965 = vsub.f32 1.0, %v3964
    %v3966 = vmul.f32 %v3963, %v3965
    %v3967 = vadd.f32 %v3963, %v3966
    %vm3968 = vweird.f32 %v3784
    %vm3969 = vweird.f32 %v3963
    %vm3970 = vmor %vm3968, %vm3969
    %v3971 = vsel %vm3970, %v3963, %v3967
    %v3972 = vand.u32 2147483647, %v3784
    %vm3973 = vcmp.eq.f32.partialorder %v3972, 8.507059e+37
    %v3974 = vand.u32 %v3784, 2147483648
    %v3975 = vor.u32 1.1754944e-38, %v3974
    %v3976 = vsel %vm3973, %v3975, %v3971
    %v3977 = vrcp.pop %v3787
    %v3978 = vmul.f32 %v3787, %v3977
    %v3979 = vsub.f32 1.0, %v3978
    %v3980 = vmul.f32 %v3977, %v3979
    %v3981 = vadd.f32 %v3977, %v3980
    %vm3982 = vweird.f32 %v3787
    %vm3983 = vweird.f32 %v3977
    %vm3984 = vmor %vm3982, %vm3983
    %v3985 = vsel %vm3984, %v3977, %v3981
    %v3986 = vand.u32 2147483647, %v3787
    %vm3987 = vcmp.eq.f32.partialorder %v3986, 8.507059e+37
    %v3988 = vand.u32 %v3787, 2147483648
    %v3989 = vor.u32 1.1754944e-38, %v3988
    %v3990 = vsel %vm3987, %v3989, %v3985
    %v3991 = vrcp.pop %v3790
    %v3992 = vmul.f32 %v3790, %v3991
    %v3993 = vsub.f32 1.0, %v3992
    %v3994 = vmul.f32 %v3991, %v3993
    %v3995 = vadd.f32 %v3991, %v3994
    %vm3996 = vweird.f32 %v3790
    %vm3997 = vweird.f32 %v3991
    %vm3998 = vmor %vm3996, %vm3997
    %v3999 = vsel %vm3998, %v3991, %v3995
    %v4000 = vand.u32 2147483647, %v3790
    %vm4001 = vcmp.eq.f32.partialorder %v4000, 8.507059e+37
    %v4002 = vand.u32 %v3790, 2147483648
    %v4003 = vor.u32 1.1754944e-38, %v4002
    %v4004 = vsel %vm4001, %v4003, %v3999
    %v4005 = vrcp.pop %v3793
    %v4006 = vmul.f32 %v3793, %v4005
    %v4007 = vsub.f32 1.0, %v4006
    %v4008 = vmul.f32 %v4005, %v4007
    %v4009 = vadd.f32 %v4005, %v4008
    %vm4010 = vweird.f32 %v3793
    %vm4011 = vweird.f32 %v4005
    %vm4012 = vmor %vm4010, %vm4011
    %v4013 = vsel %vm4012, %v4005, %v4009
    %v4014 = vand.u32 2147483647, %v3793
    %vm4015 = vcmp.eq.f32.partialorder %v4014, 8.507059e+37
    %v4016 = vand.u32 %v3793, 2147483648
    %v4017 = vor.u32 1.1754944e-38, %v4016
    %v4018 = vsel %vm4015, %v4017, %v4013
    %4020 = vset.pattern.permute.xlu0 0
    %4021 = vperm.xlu0 %4020, %v3808
    %v4022 = vpop.permute.xlu0 %4021
    %4025 = vset.pattern.permute.xlu0 0
    %4026 = vperm.xlu0 %4025, %v3822
    %v4027 = vpop.permute.xlu0 %4026
    %4030 = vset.pattern.permute.xlu0 0
    %4031 = vperm.xlu0 %4030, %v3836
    %v4032 = vpop.permute.xlu0 %4031
    %4035 = vset.pattern.permute.xlu0 0
    %4036 = vperm.xlu0 %4035, %v3850
    %v4037 = vpop.permute.xlu0 %4036
    %4040 = vset.pattern.permute.xlu0 0
    %4041 = vperm.xlu0 %4040, %v3864
    %v4042 = vpop.permute.xlu0 %4041
    %4045 = vset.pattern.permute.xlu0 0
    %4046 = vperm.xlu0 %4045, %v3878
    %v4047 = vpop.permute.xlu0 %4046
    %4050 = vset.pattern.permute.xlu0 0
    %4051 = vperm.xlu0 %4050, %v3892
    %v4052 = vpop.permute.xlu0 %4051
    %4055 = vset.pattern.permute.xlu0 0
    %4056 = vperm.xlu0 %4055, %v3906
    %v4057 = vpop.permute.xlu0 %4056
    %4060 = vset.pattern.permute.xlu0 0
    %4061 = vperm.xlu0 %4060, %v3920
    %v4062 = vpop.permute.xlu0 %4061
    %4065 = vset.pattern.permute.xlu0 0
    %4066 = vperm.xlu0 %4065, %v3934
    %v4067 = vpop.permute.xlu0 %4066
    %4070 = vset.pattern.permute.xlu0 0
    %4071 = vperm.xlu0 %4070, %v3948
    %v4072 = vpop.permute.xlu0 %4071
    %4075 = vset.pattern.permute.xlu0 0
    %4076 = vperm.xlu0 %4075, %v3962
    %v4077 = vpop.permute.xlu0 %4076
    %4080 = vset.pattern.permute.xlu0 0
    %4081 = vperm.xlu0 %4080, %v3976
    %v4082 = vpop.permute.xlu0 %4081
    %4085 = vset.pattern.permute.xlu0 0
    %4086 = vperm.xlu0 %4085, %v3990
    %v4087 = vpop.permute.xlu0 %4086
    %4090 = vset.pattern.permute.xlu0 0
    %4091 = vperm.xlu0 %4090, %v4004
    %v4092 = vpop.permute.xlu0 %4091
    %4095 = vset.pattern.permute.xlu0 0
    %4096 = vperm.xlu0 %4095, %v4018
    %v4097 = vpop.permute.xlu0 %4096
    %v4099 = vmul.f32 %v3699, %v4022
    %v4100 = vmul.f32 %v3701, %v4027
    %v4101 = vmul.f32 %v3703, %v4032
    %v4102 = vmul.f32 %v3705, %v4037
    %v4103 = vmul.f32 %v3707, %v4042
    %v4104 = vmul.f32 %v3709, %v4047
    %v4105 = vmul.f32 %v3711, %v4052
    %v4106 = vmul.f32 %v3713, %v4057
    %v4107 = vmul.f32 %v3715, %v4062
    %v4108 = vmul.f32 %v3717, %v4067
    %v4109 = vmul.f32 %v3719, %v4072
    %v4110 = vmul.f32 %v3721, %v4077
    %v4111 = vmul.f32 %v3723, %v4082
    %v4112 = vmul.f32 %v3725, %v4087
    %v4113 = vmul.f32 %v3727, %v4092
    %v4114 = vmul.f32 %v3729, %v4097
    %v4117 = vrot.slane %v3493, 4
    %v4118 = vrot.slane %v3496, 4
    %v4119 = vsel %vm2506, %v4117, %v4118
    %v4120 = vrot.slane %v3499, 4
    %v4121 = vsel %vm2506, %v4118, %v4120
    %4124 = vmatpush.xpose.msra.mxu0 %v4114
    %4125 = vmatpush.xpose.msra.mxu0 %v4113
    %4126 = vmatpush.xpose.msra.mxu0 %v4112
    %4127 = vmatpush.xpose.msra.mxu0 %v4111
    %4128 = vmatpush.xpose.msra.mxu0 %v4110
    %4129 = vmatpush.xpose.msra.mxu0 %v4109
    %4130 = vmatpush.xpose.msra.mxu0 %v4108
    %4131 = vmatpush.xpose.msra.mxu0 %v4107
    %4132 = vmatpush.xpose.msra.mxu0 %v4106
    %4133 = vmatpush.xpose.msra.mxu0 %v4105
    %4134 = vmatpush.xpose.msra.mxu0 %v4104
    %4135 = vmatpush.xpose.msra.mxu0 %v4103
    %4136 = vmatpush.xpose.msra.mxu0 %v4102
    %4137 = vmatpush.xpose.msra.mxu0 %v4101
    %4138 = vmatpush.xpose.msra.mxu0 %v4100
    %4139 = vmatpush.xpose.msra.mxu0 %v4099
    %4140 = vmatmul.f32.gmra.mxu0 %v4119
    %v4141 = vpop.f32.mrf.mxu0
    %v4142 = vadd.f32 0.0, %v4141
    %4143 = vmatmul.f32.gmra.mxu0 %v4121
    %v4144 = vpop.f32.mrf.mxu0
    %v4145 = vadd.f32 0.0, %v4144
    %4146 = vdwg.mxu0
    %s4147 = sld [smem:[#allocation8 + $0x2]]
    %v4148 = vstv %s4147
    %v4149 = vmul.f32 %v4148, %v4142
    %v4150 = vmul.f32 %v4148, %v4145
    %v4151 = vmax.f32 %v4149, 0.0
    %v4152 = vmax.f32 %v4150, 0.0
    %v4153 = vmul.f32 %v4151, %v4151
    %v4154 = vmul.f32 %v4152, %v4152
    %4155 = vmatpush.msra.mxu0 0.0078125
    %4156 = vmatpush.msra.mxu0 0.0078125
    %4157 = vmatpush.msra.mxu0 0.0078125
    %4158 = vmatpush.msra.mxu0 0.0078125
    %4159 = vmatpush.msra.mxu0 0.0078125
    %4160 = vmatpush.msra.mxu0 0.0078125
    %4161 = vmatpush.msra.mxu0 0.0078125
    %4162 = vmatpush.msra.mxu0 0.0078125
    %4163 = vmatpush.msra.mxu0 0.0078125
    %4164 = vmatpush.msra.mxu0 0.0078125
    %4165 = vmatpush.msra.mxu0 0.0078125
    %4166 = vmatpush.msra.mxu0 0.0078125
    %4167 = vmatpush.msra.mxu0 0.0078125
    %4168 = vmatpush.msra.mxu0 0.0078125
    %4169 = vmatpush.msra.mxu0 0.0078125
    %4170 = vmatpush.msra.mxu0 0.0078125
    %4171 = vmatmul.f32.gmra.mxu0 %v4151
    %v4172 = vpop.f32.mrf.mxu0
    %v4173 = vadd.f32 0.0, %v4172
    %4174 = vmatmul.f32.gmra.mxu0 %v4152
    %v4175 = vpop.f32.mrf.mxu0
    %v4176 = vadd.f32 0.0, %v4175
    %4177 = vmatmul.f32.gmra.mxu0 %v4153
    %v4178 = vpop.f32.mrf.mxu0
    %v4179 = vadd.f32 0.0, %v4178
    %4180 = vmatmul.f32.gmra.mxu0 %v4154
    %v4181 = vpop.f32.mrf.mxu0
    %v4182 = vadd.f32 0.0, %v4181
    %4183 = vdwg.mxu0
    %v4184 = vmul.f32 %v4173, %v4173
    %v4185 = vmul.f32 %v4176, %v4176
    %v4186 = vsub.f32 %v4179, %v4184
    %v4187 = vsub.f32 %v4182, %v4185
    %4189 = vset.pattern.permute.xlu0 0
    %4190 = vperm.xlu0 %4189, %v4173
    %v4191 = vpop.permute.xlu0 %4190
    %4194 = vset.pattern.permute.xlu0 0
    %4195 = vperm.xlu0 %4194, %v4176
    %v4196 = vpop.permute.xlu0 %4195
    %v4198 = vsub.f32 %v4151, %v4191
    %v4199 = vsub.f32 %v4152, %v4196
    %v4200 = vadd.f32 %v4186, 1e-05
    %v4201 = vadd.f32 %v4187, 1e-05
    %v4202 = vrsqrt.pop %v4200
    %v4203 = vmul.f32 %v4202, %v4200
    %v4204 = vmul.f32 %v4203, %v4202
    %v4205 = vmul.f32 0.5, %v4204
    %v4206 = vsub.f32 1.5, %v4205
    %v4207 = vmul.f32 %v4202, %v4206
    %vm4208 = vweird.f32 %v4200
    %vm4209 = vweird.f32 %v4202
    %vm4210 = vmor %vm4208, %vm4209
    %v4211 = vsel %vm4210, %v4202, %v4207
    %v4212 = vrsqrt.pop %v4201
    %v4213 = vmul.f32 %v4212, %v4201
    %v4214 = vmul.f32 %v4213, %v4212
    %v4215 = vmul.f32 0.5, %v4214
    %v4216 = vsub.f32 1.5, %v4215
    %v4217 = vmul.f32 %v4212, %v4216
    %vm4218 = vweird.f32 %v4201
    %vm4219 = vweird.f32 %v4212
    %vm4220 = vmor %vm4218, %vm4219
    %v4221 = vsel %vm4220, %v4212, %v4217
    %4223 = vset.pattern.permute.xlu0 0
    %4224 = vperm.xlu0 %4223, %v4211
    %v4225 = vpop.permute.xlu0 %4224
    %4228 = vset.pattern.permute.xlu0 0
    %4229 = vperm.xlu0 %4228, %v4221
    %v4230 = vpop.permute.xlu0 %4229
    %v4232 = vmul.f32 %v4198, %v4225
    %v4233 = vmul.f32 %v4199, %v4230
    %4234 = vset.pattern.permute.xlu0 24
    %4235 = vperm.xlu0 %4234, %v228
    %v4236 = vpop.permute.xlu0 %4235
    %4238 = vset.pattern.permute.xlu0 24
    %4239 = vperm.xlu0 %4238, %v229
    %v4240 = vpop.permute.xlu0 %4239
    %v4242 = vmul.f32 %v4232, %v4236
    %v4243 = vmul.f32 %v4233, %v4240
    %4244 = vset.pattern.permute.xlu0 25
    %4245 = vperm.xlu0 %4244, %v228
    %v4246 = vpop.permute.xlu0 %4245
    %4248 = vset.pattern.permute.xlu0 25
    %4249 = vperm.xlu0 %4248, %v229
    %v4250 = vpop.permute.xlu0 %4249
    %v4252 = vadd.f32 %v4242, %v4246
    %v4253 = vadd.f32 %v4243, %v4250
    %v4254 = vld [vmem:[#allocation2 + $0xc0] sm:$0xff]
    %v4255 = vld [vmem:[#allocation2 + $0xc8] sm:$0xff]
    %v4256 = vld [vmem:[#allocation2 + $0xd0] sm:$0xf]
    %4257 = vset.pattern.permute.xlu0 26
    %4258 = vperm.xlu0 %4257, %v1821
    %v4259 = vpop.permute.xlu0 %4258
    %4261 = vset.pattern.permute.xlu0 26
    %4262 = vperm.xlu0 %4261, %v1822
    %v4263 = vpop.permute.xlu0 %4262
    %4265 = vset.pattern.permute.xlu0 26
    %4266 = vperm.xlu0 %4265, %v1823
    %v4267 = vpop.permute.xlu0 %4266
    %v4270 = vsel %vm262, %v4254, 0
    %v4273 = vsel %vm262, %v4255, 0
    %v4276 = vsel %vm262, %v4256, 0
    %4278 = vmatpush.msra.mxu0 0.0
    %4279 = vmatpush.msra.mxu0 0.0
    %4280 = vmatpush.msra.mxu0 0.0
    %4281 = vmatpush.msra.mxu0 0.0
    %4282 = vmatpush.msra.mxu0 0.0
    %4283 = vmatpush.msra.mxu0 0.0
    %4284 = vmatpush.msra.mxu0 0.0
    %4285 = vmatpush.msra.mxu0 0.0
    %4286 = vmatpush.msra.mxu0 0.0
    %4287 = vmatpush.msra.mxu0 0.0
    %4288 = vmatpush.msra.mxu0 0.0
    %4289 = vmatpush.msra.mxu0 0.0
    %4290 = vmatpush.msra.mxu0 0.0
    %4291 = vmatpush.msra.mxu0 0.0
    %4292 = vmatpush.msra.mxu0 %v4253
    %4293 = vmatpush.msra.mxu0 %v4252
    %4294 = vmatmul.f32.gmra.mxu0 %v4270
    %v4295 = vpop.f32.mrf.mxu0
    %v4296 = vadd.f32 %v4259, %v4295
    %4297 = vmatmul.f32.gmra.mxu0 %v4273
    %v4298 = vpop.f32.mrf.mxu0
    %v4299 = vadd.f32 %v4263, %v4298
    %4300 = vmatmul.f32.gmra.mxu0 %v4276
    %v4301 = vpop.f32.mrf.mxu0
    %v4302 = vadd.f32 %v4267, %v4301
    %4303 = vdwg.mxu0
    %4304 = vxpose.xlu0.b32.start [1/16] %v4296, 128
    %4305 = vxpose.xlu0.b32.cont [2/16] 0.0, 128
    %4306 = vxpose.xlu0.b32.cont [3/16] 0.0, 128
    %4307 = vxpose.xlu0.b32.cont [4/16] 0.0, 128
    %4308 = vxpose.xlu0.b32.cont [5/16] 0.0, 128
    %4309 = vxpose.xlu0.b32.cont [6/16] 0.0, 128
    %4310 = vxpose.xlu0.b32.cont [7/16] 0.0, 128
    %4311 = vxpose.xlu0.b32.cont [8/16] 0.0, 128
    %4312 = vxpose.xlu0.b32.cont [9/16] 0.0, 128
    %4313 = vxpose.xlu0.b32.cont [10/16] 0.0, 128
    %4314 = vxpose.xlu0.b32.cont [11/16] 0.0, 128
    %4315 = vxpose.xlu0.b32.cont [12/16] 0.0, 128
    %4316 = vxpose.xlu0.b32.cont [13/16] 0.0, 128
    %4317 = vxpose.xlu0.b32.cont [14/16] 0.0, 128
    %4318 = vxpose.xlu0.b32.cont [15/16] 0.0, 128
    %4319 = vxpose.xlu0.b32.end [16/16] 0.0, 128
    %v4320 = vpop.trf.xlu0
    %v4321 = vpop.trf.xlu0
    %v4322 = vpop.trf.xlu0
    %v4323 = vpop.trf.xlu0
    %v4324 = vpop.trf.xlu0
    %v4325 = vpop.trf.xlu0
    %v4326 = vpop.trf.xlu0
    %v4327 = vpop.trf.xlu0
    %v4328 = vpop.trf.xlu0
    %v4329 = vpop.trf.xlu0
    %v4330 = vpop.trf.xlu0
    %v4331 = vpop.trf.xlu0
    %v4332 = vpop.trf.xlu0
    %v4333 = vpop.trf.xlu0
    %v4334 = vpop.trf.xlu0
    %v4335 = vpop.trf.xlu0
    %v4337 = vrot.slane %v4296, 2
    %v4339 = vsel %vm325, %v4320, 0
    %v4342 = vsel %vm325, %v4321, 0
    %v4345 = vsel %vm325, %v4322, 0
    %v4348 = vsel %vm325, %v4323, 0
    %v4351 = vsel %vm325, %v4324, 0
    %v4354 = vsel %vm325, %v4325, 0
    %v4357 = vsel %vm325, %v4326, 0
    %v4360 = vsel %vm325, %v4327, 0
    %v4363 = vsel %vm325, %v4328, 0
    %v4366 = vsel %vm325, %v4329, 0
    %v4369 = vsel %vm325, %v4330, 0
    %v4372 = vsel %vm325, %v4331, 0
    %v4375 = vsel %vm325, %v4332, 0
    %v4378 = vsel %vm325, %v4333, 0
    %v4381 = vsel %vm325, %v4334, 0
    %v4384 = vsel %vm325, %v4335, 0
    %v4386 = vsel %vm332, %v4337, 0
    %4388 = vmatpush.msra.mxu0 0.0
    %4389 = vmatpush.msra.mxu0 0.0
    %4390 = vmatpush.msra.mxu0 0.0
    %4391 = vmatpush.msra.mxu0 0.0
    %4392 = vmatpush.msra.mxu0 0.0
    %4393 = vmatpush.msra.mxu0 0.0
    %4394 = vmatpush.msra.mxu0 0.0
    %4395 = vmatpush.msra.mxu0 0.0
    %4396 = vmatpush.msra.mxu0 0.0
    %4397 = vmatpush.msra.mxu0 0.0
    %4398 = vmatpush.msra.mxu0 0.0
    %4399 = vmatpush.msra.mxu0 0.0
    %4400 = vmatpush.msra.mxu0 0.0
    %4401 = vmatpush.msra.mxu0 0.0
    %4402 = vmatpush.msra.mxu0 0.0
    %4403 = vmatpush.msra.mxu0 %v4386
    %4404 = vmatmul.f32.gmra.mxu0 %v4339
    %v4405 = vpop.f32.mrf.mxu0
    %v4406 = vadd.f32 %v1874, %v4405
    %4407 = vmatmul.f32.gmra.mxu0 %v4342
    %v4408 = vpop.f32.mrf.mxu0
    %v4409 = vadd.f32 %v1875, %v4408
    %4410 = vmatmul.f32.gmra.mxu0 %v4345
    %v4411 = vpop.f32.mrf.mxu0
    %v4412 = vadd.f32 %v1876, %v4411
    %4413 = vmatmul.f32.gmra.mxu0 %v4348
    %v4414 = vpop.f32.mrf.mxu0
    %v4415 = vadd.f32 %v1877, %v4414
    %4416 = vmatmul.f32.gmra.mxu0 %v4351
    %v4417 = vpop.f32.mrf.mxu0
    %v4418 = vadd.f32 %v1878, %v4417
    %4419 = vmatmul.f32.gmra.mxu0 %v4354
    %v4420 = vpop.f32.mrf.mxu0
    %v4421 = vadd.f32 %v1879, %v4420
    %4422 = vmatmul.f32.gmra.mxu0 %v4357
    %v4423 = vpop.f32.mrf.mxu0
    %v4424 = vadd.f32 %v1880, %v4423
    %4425 = vmatmul.f32.gmra.mxu0 %v4360
    %v4426 = vpop.f32.mrf.mxu0
    %v4427 = vadd.f32 %v1881, %v4426
    %4428 = vmatmul.f32.gmra.mxu0 %v4363
    %v4429 = vpop.f32.mrf.mxu0
    %v4430 = vadd.f32 %v1882, %v4429
    %4431 = vmatmul.f32.gmra.mxu0 %v4366
    %v4432 = vpop.f32.mrf.mxu0
    %v4433 = vadd.f32 %v1883, %v4432
    %4434 = vmatmul.f32.gmra.mxu0 %v4369
    %v4435 = vpop.f32.mrf.mxu0
    %v4436 = vadd.f32 %v1884, %v4435
    %4437 = vmatmul.f32.gmra.mxu0 %v4372
    %v4438 = vpop.f32.mrf.mxu0
    %v4439 = vadd.f32 %v1885, %v4438
    %4440 = vmatmul.f32.gmra.mxu0 %v4375
    %v4441 = vpop.f32.mrf.mxu0
    %v4442 = vadd.f32 %v1886, %v4441
    %4443 = vmatmul.f32.gmra.mxu0 %v4378
    %v4444 = vpop.f32.mrf.mxu0
    %v4445 = vadd.f32 %v1887, %v4444
    %4446 = vmatmul.f32.gmra.mxu0 %v4381
    %v4447 = vpop.f32.mrf.mxu0
    %v4448 = vadd.f32 %v1888, %v4447
    %4449 = vmatmul.f32.gmra.mxu0 %v4384
    %v4450 = vpop.f32.mrf.mxu0
    %v4451 = vadd.f32 %v1889, %v4450
    %4452 = vdwg.mxu0
    %4453 = vmax.xlane.f32.xlu0 %v4406
    %v4454 = vpop.xlane.xlu0 %4453
    %4455 = vmax.xlane.f32.xlu0 %v4409
    %v4456 = vpop.xlane.xlu0 %4455
    %4457 = vmax.xlane.f32.xlu0 %v4412
    %v4458 = vpop.xlane.xlu0 %4457
    %4459 = vmax.xlane.f32.xlu0 %v4415
    %v4460 = vpop.xlane.xlu0 %4459
    %4461 = vmax.xlane.f32.xlu0 %v4418
    %v4462 = vpop.xlane.xlu0 %4461
    %4463 = vmax.xlane.f32.xlu0 %v4421
    %v4464 = vpop.xlane.xlu0 %4463
    %4465 = vmax.xlane.f32.xlu0 %v4424
    %v4466 = vpop.xlane.xlu0 %4465
    %4467 = vmax.xlane.f32.xlu0 %v4427
    %v4468 = vpop.xlane.xlu0 %4467
    %4469 = vmax.xlane.f32.xlu0 %v4430
    %v4470 = vpop.xlane.xlu0 %4469
    %4471 = vmax.xlane.f32.xlu0 %v4433
    %v4472 = vpop.xlane.xlu0 %4471
    %4473 = vmax.xlane.f32.xlu0 %v4436
    %v4474 = vpop.xlane.xlu0 %4473
    %4475 = vmax.xlane.f32.xlu0 %v4439
    %v4476 = vpop.xlane.xlu0 %4475
    %4477 = vmax.xlane.f32.xlu0 %v4442
    %v4478 = vpop.xlane.xlu0 %4477
    %4479 = vmax.xlane.f32.xlu0 %v4445
    %v4480 = vpop.xlane.xlu0 %4479
    %4481 = vmax.xlane.f32.xlu0 %v4448
    %v4482 = vpop.xlane.xlu0 %4481
    %4483 = vmax.xlane.f32.xlu0 %v4451
    %v4484 = vpop.xlane.xlu0 %4483
    %v4485 = vsub.f32 %v4406, %v4454
    %v4486 = vsub.f32 %v4409, %v4456
    %v4487 = vsub.f32 %v4412, %v4458
    %v4488 = vsub.f32 %v4415, %v4460
    %v4489 = vsub.f32 %v4418, %v4462
    %v4490 = vsub.f32 %v4421, %v4464
    %v4491 = vsub.f32 %v4424, %v4466
    %v4492 = vsub.f32 %v4427, %v4468
    %v4493 = vsub.f32 %v4430, %v4470
    %v4494 = vsub.f32 %v4433, %v4472
    %v4495 = vsub.f32 %v4436, %v4474
    %v4496 = vsub.f32 %v4439, %v4476
    %v4497 = vsub.f32 %v4442, %v4478
    %v4498 = vsub.f32 %v4445, %v4480
    %v4499 = vsub.f32 %v4448, %v4482
    %v4500 = vsub.f32 %v4451, %v4484
    %v4501 = vmul.f32 %v4485, 1.442695
    %v4502 = vpow.pop %v4501
    %v4503 = vmul.f32 %v4486, 1.442695
    %v4504 = vpow.pop %v4503
    %v4505 = vmul.f32 %v4487, 1.442695
    %v4506 = vpow.pop %v4505
    %v4507 = vmul.f32 %v4488, 1.442695
    %v4508 = vpow.pop %v4507
    %v4509 = vmul.f32 %v4489, 1.442695
    %v4510 = vpow.pop %v4509
    %v4511 = vmul.f32 %v4490, 1.442695
    %v4512 = vpow.pop %v4511
    %v4513 = vmul.f32 %v4491, 1.442695
    %v4514 = vpow.pop %v4513
    %v4515 = vmul.f32 %v4492, 1.442695
    %v4516 = vpow.pop %v4515
    %v4517 = vmul.f32 %v4493, 1.442695
    %v4518 = vpow.pop %v4517
    %v4519 = vmul.f32 %v4494, 1.442695
    %v4520 = vpow.pop %v4519
    %v4521 = vmul.f32 %v4495, 1.442695
    %v4522 = vpow.pop %v4521
    %v4523 = vmul.f32 %v4496, 1.442695
    %v4524 = vpow.pop %v4523
    %v4525 = vmul.f32 %v4497, 1.442695
    %v4526 = vpow.pop %v4525
    %v4527 = vmul.f32 %v4498, 1.442695
    %v4528 = vpow.pop %v4527
    %v4529 = vmul.f32 %v4499, 1.442695
    %v4530 = vpow.pop %v4529
    %v4531 = vmul.f32 %v4500, 1.442695
    %v4532 = vpow.pop %v4531
    %4533 = vmatpush.msra.mxu0 1.0
    %4534 = vmatpush.msra.mxu0 1.0
    %4535 = vmatpush.msra.mxu0 1.0
    %4536 = vmatpush.msra.mxu0 1.0
    %4537 = vmatpush.msra.mxu0 1.0
    %4538 = vmatpush.msra.mxu0 1.0
    %4539 = vmatpush.msra.mxu0 1.0
    %4540 = vmatpush.msra.mxu0 1.0
    %4541 = vmatpush.msra.mxu0 1.0
    %4542 = vmatpush.msra.mxu0 1.0
    %4543 = vmatpush.msra.mxu0 1.0
    %4544 = vmatpush.msra.mxu0 1.0
    %4545 = vmatpush.msra.mxu0 1.0
    %4546 = vmatpush.msra.mxu0 1.0
    %4547 = vmatpush.msra.mxu0 1.0
    %4548 = vmatpush.msra.mxu0 1.0
    %4549 = vmatmul.f32.gmra.mxu0 %v4502
    %v4550 = vpop.f32.mrf.mxu0
    %v4551 = vadd.f32 0.0, %v4550
    %4552 = vmatmul.f32.gmra.mxu0 %v4504
    %v4553 = vpop.f32.mrf.mxu0
    %v4554 = vadd.f32 0.0, %v4553
    %4555 = vmatmul.f32.gmra.mxu0 %v4506
    %v4556 = vpop.f32.mrf.mxu0
    %v4557 = vadd.f32 0.0, %v4556
    %4558 = vmatmul.f32.gmra.mxu0 %v4508
    %v4559 = vpop.f32.mrf.mxu0
    %v4560 = vadd.f32 0.0, %v4559
    %4561 = vmatmul.f32.gmra.mxu0 %v4510
    %v4562 = vpop.f32.mrf.mxu0
    %v4563 = vadd.f32 0.0, %v4562
    %4564 = vmatmul.f32.gmra.mxu0 %v4512
    %v4565 = vpop.f32.mrf.mxu0
    %v4566 = vadd.f32 0.0, %v4565
    %4567 = vmatmul.f32.gmra.mxu0 %v4514
    %v4568 = vpop.f32.mrf.mxu0
    %v4569 = vadd.f32 0.0, %v4568
    %4570 = vmatmul.f32.gmra.mxu0 %v4516
    %v4571 = vpop.f32.mrf.mxu0
    %v4572 = vadd.f32 0.0, %v4571
    %4573 = vmatmul.f32.gmra.mxu0 %v4518
    %v4574 = vpop.f32.mrf.mxu0
    %v4575 = vadd.f32 0.0, %v4574
    %4576 = vmatmul.f32.gmra.mxu0 %v4520
    %v4577 = vpop.f32.mrf.mxu0
    %v4578 = vadd.f32 0.0, %v4577
    %4579 = vmatmul.f32.gmra.mxu0 %v4522
    %v4580 = vpop.f32.mrf.mxu0
    %v4581 = vadd.f32 0.0, %v4580
    %4582 = vmatmul.f32.gmra.mxu0 %v4524
    %v4583 = vpop.f32.mrf.mxu0
    %v4584 = vadd.f32 0.0, %v4583
    %4585 = vmatmul.f32.gmra.mxu0 %v4526
    %v4586 = vpop.f32.mrf.mxu0
    %v4587 = vadd.f32 0.0, %v4586
    %4588 = vmatmul.f32.gmra.mxu0 %v4528
    %v4589 = vpop.f32.mrf.mxu0
    %v4590 = vadd.f32 0.0, %v4589
    %4591 = vmatmul.f32.gmra.mxu0 %v4530
    %v4592 = vpop.f32.mrf.mxu0
    %v4593 = vadd.f32 0.0, %v4592
    %4594 = vmatmul.f32.gmra.mxu0 %v4532
    %v4595 = vpop.f32.mrf.mxu0
    %v4596 = vadd.f32 0.0, %v4595
    %4597 = vdwg.mxu0
    %v4598 = vrcp.pop %v4551
    %v4599 = vmul.f32 %v4551, %v4598
    %v4600 = vsub.f32 1.0, %v4599
    %v4601 = vmul.f32 %v4598, %v4600
    %v4602 = vadd.f32 %v4598, %v4601
    %vm4603 = vweird.f32 %v4551
    %vm4604 = vweird.f32 %v4598
    %vm4605 = vmor %vm4603, %vm4604
    %v4606 = vsel %vm4605, %v4598, %v4602
    %v4607 = vand.u32 2147483647, %v4551
    %vm4608 = vcmp.eq.f32.partialorder %v4607, 8.507059e+37
    %v4609 = vand.u32 %v4551, 2147483648
    %v4610 = vor.u32 1.1754944e-38, %v4609
    %v4611 = vsel %vm4608, %v4610, %v4606
    %v4612 = vrcp.pop %v4554
    %v4613 = vmul.f32 %v4554, %v4612
    %v4614 = vsub.f32 1.0, %v4613
    %v4615 = vmul.f32 %v4612, %v4614
    %v4616 = vadd.f32 %v4612, %v4615
    %vm4617 = vweird.f32 %v4554
    %vm4618 = vweird.f32 %v4612
    %vm4619 = vmor %vm4617, %vm4618
    %v4620 = vsel %vm4619, %v4612, %v4616
    %v4621 = vand.u32 2147483647, %v4554
    %vm4622 = vcmp.eq.f32.partialorder %v4621, 8.507059e+37
    %v4623 = vand.u32 %v4554, 2147483648
    %v4624 = vor.u32 1.1754944e-38, %v4623
    %v4625 = vsel %vm4622, %v4624, %v4620
    %v4626 = vrcp.pop %v4557
    %v4627 = vmul.f32 %v4557, %v4626
    %v4628 = vsub.f32 1.0, %v4627
    %v4629 = vmul.f32 %v4626, %v4628
    %v4630 = vadd.f32 %v4626, %v4629
    %vm4631 = vweird.f32 %v4557
    %vm4632 = vweird.f32 %v4626
    %vm4633 = vmor %vm4631, %vm4632
    %v4634 = vsel %vm4633, %v4626, %v4630
    %v4635 = vand.u32 2147483647, %v4557
    %vm4636 = vcmp.eq.f32.partialorder %v4635, 8.507059e+37
    %v4637 = vand.u32 %v4557, 2147483648
    %v4638 = vor.u32 1.1754944e-38, %v4637
    %v4639 = vsel %vm4636, %v4638, %v4634
    %v4640 = vrcp.pop %v4560
    %v4641 = vmul.f32 %v4560, %v4640
    %v4642 = vsub.f32 1.0, %v4641
    %v4643 = vmul.f32 %v4640, %v4642
    %v4644 = vadd.f32 %v4640, %v4643
    %vm4645 = vweird.f32 %v4560
    %vm4646 = vweird.f32 %v4640
    %vm4647 = vmor %vm4645, %vm4646
    %v4648 = vsel %vm4647, %v4640, %v4644
    %v4649 = vand.u32 2147483647, %v4560
    %vm4650 = vcmp.eq.f32.partialorder %v4649, 8.507059e+37
    %v4651 = vand.u32 %v4560, 2147483648
    %v4652 = vor.u32 1.1754944e-38, %v4651
    %v4653 = vsel %vm4650, %v4652, %v4648
    %v4654 = vrcp.pop %v4563
    %v4655 = vmul.f32 %v4563, %v4654
    %v4656 = vsub.f32 1.0, %v4655
    %v4657 = vmul.f32 %v4654, %v4656
    %v4658 = vadd.f32 %v4654, %v4657
    %vm4659 = vweird.f32 %v4563
    %vm4660 = vweird.f32 %v4654
    %vm4661 = vmor %vm4659, %vm4660
    %v4662 = vsel %vm4661, %v4654, %v4658
    %v4663 = vand.u32 2147483647, %v4563
    %vm4664 = vcmp.eq.f32.partialorder %v4663, 8.507059e+37
    %v4665 = vand.u32 %v4563, 2147483648
    %v4666 = vor.u32 1.1754944e-38, %v4665
    %v4667 = vsel %vm4664, %v4666, %v4662
    %v4668 = vrcp.pop %v4566
    %v4669 = vmul.f32 %v4566, %v4668
    %v4670 = vsub.f32 1.0, %v4669
    %v4671 = vmul.f32 %v4668, %v4670
    %v4672 = vadd.f32 %v4668, %v4671
    %vm4673 = vweird.f32 %v4566
    %vm4674 = vweird.f32 %v4668
    %vm4675 = vmor %vm4673, %vm4674
    %v4676 = vsel %vm4675, %v4668, %v4672
    %v4677 = vand.u32 2147483647, %v4566
    %vm4678 = vcmp.eq.f32.partialorder %v4677, 8.507059e+37
    %v4679 = vand.u32 %v4566, 2147483648
    %v4680 = vor.u32 1.1754944e-38, %v4679
    %v4681 = vsel %vm4678, %v4680, %v4676
    %v4682 = vrcp.pop %v4569
    %v4683 = vmul.f32 %v4569, %v4682
    %v4684 = vsub.f32 1.0, %v4683
    %v4685 = vmul.f32 %v4682, %v4684
    %v4686 = vadd.f32 %v4682, %v4685
    %vm4687 = vweird.f32 %v4569
    %vm4688 = vweird.f32 %v4682
    %vm4689 = vmor %vm4687, %vm4688
    %v4690 = vsel %vm4689, %v4682, %v4686
    %v4691 = vand.u32 2147483647, %v4569
    %vm4692 = vcmp.eq.f32.partialorder %v4691, 8.507059e+37
    %v4693 = vand.u32 %v4569, 2147483648
    %v4694 = vor.u32 1.1754944e-38, %v4693
    %v4695 = vsel %vm4692, %v4694, %v4690
    %v4696 = vrcp.pop %v4572
    %v4697 = vmul.f32 %v4572, %v4696
    %v4698 = vsub.f32 1.0, %v4697
    %v4699 = vmul.f32 %v4696, %v4698
    %v4700 = vadd.f32 %v4696, %v4699
    %vm4701 = vweird.f32 %v4572
    %vm4702 = vweird.f32 %v4696
    %vm4703 = vmor %vm4701, %vm4702
    %v4704 = vsel %vm4703, %v4696, %v4700
    %v4705 = vand.u32 2147483647, %v4572
    %vm4706 = vcmp.eq.f32.partialorder %v4705, 8.507059e+37
    %v4707 = vand.u32 %v4572, 2147483648
    %v4708 = vor.u32 1.1754944e-38, %v4707
    %v4709 = vsel %vm4706, %v4708, %v4704
    %v4710 = vrcp.pop %v4575
    %v4711 = vmul.f32 %v4575, %v4710
    %v4712 = vsub.f32 1.0, %v4711
    %v4713 = vmul.f32 %v4710, %v4712
    %v4714 = vadd.f32 %v4710, %v4713
    %vm4715 = vweird.f32 %v4575
    %vm4716 = vweird.f32 %v4710
    %vm4717 = vmor %vm4715, %vm4716
    %v4718 = vsel %vm4717, %v4710, %v4714
    %v4719 = vand.u32 2147483647, %v4575
    %vm4720 = vcmp.eq.f32.partialorder %v4719, 8.507059e+37
    %v4721 = vand.u32 %v4575, 2147483648
    %v4722 = vor.u32 1.1754944e-38, %v4721
    %v4723 = vsel %vm4720, %v4722, %v4718
    %v4724 = vrcp.pop %v4578
    %v4725 = vmul.f32 %v4578, %v4724
    %v4726 = vsub.f32 1.0, %v4725
    %v4727 = vmul.f32 %v4724, %v4726
    %v4728 = vadd.f32 %v4724, %v4727
    %vm4729 = vweird.f32 %v4578
    %vm4730 = vweird.f32 %v4724
    %vm4731 = vmor %vm4729, %vm4730
    %v4732 = vsel %vm4731, %v4724, %v4728
    %v4733 = vand.u32 2147483647, %v4578
    %vm4734 = vcmp.eq.f32.partialorder %v4733, 8.507059e+37
    %v4735 = vand.u32 %v4578, 2147483648
    %v4736 = vor.u32 1.1754944e-38, %v4735
    %v4737 = vsel %vm4734, %v4736, %v4732
    %v4738 = vrcp.pop %v4581
    %v4739 = vmul.f32 %v4581, %v4738
    %v4740 = vsub.f32 1.0, %v4739
    %v4741 = vmul.f32 %v4738, %v4740
    %v4742 = vadd.f32 %v4738, %v4741
    %vm4743 = vweird.f32 %v4581
    %vm4744 = vweird.f32 %v4738
    %vm4745 = vmor %vm4743, %vm4744
    %v4746 = vsel %vm4745, %v4738, %v4742
    %v4747 = vand.u32 2147483647, %v4581
    %vm4748 = vcmp.eq.f32.partialorder %v4747, 8.507059e+37
    %v4749 = vand.u32 %v4581, 2147483648
    %v4750 = vor.u32 1.1754944e-38, %v4749
    %v4751 = vsel %vm4748, %v4750, %v4746
    %v4752 = vrcp.pop %v4584
    %v4753 = vmul.f32 %v4584, %v4752
    %v4754 = vsub.f32 1.0, %v4753
    %v4755 = vmul.f32 %v4752, %v4754
    %v4756 = vadd.f32 %v4752, %v4755
    %vm4757 = vweird.f32 %v4584
    %vm4758 = vweird.f32 %v4752
    %vm4759 = vmor %vm4757, %vm4758
    %v4760 = vsel %vm4759, %v4752, %v4756
    %v4761 = vand.u32 2147483647, %v4584
    %vm4762 = vcmp.eq.f32.partialorder %v4761, 8.507059e+37
    %v4763 = vand.u32 %v4584, 2147483648
    %v4764 = vor.u32 1.1754944e-38, %v4763
    %v4765 = vsel %vm4762, %v4764, %v4760
    %v4766 = vrcp.pop %v4587
    %v4767 = vmul.f32 %v4587, %v4766
    %v4768 = vsub.f32 1.0, %v4767
    %v4769 = vmul.f32 %v4766, %v4768
    %v4770 = vadd.f32 %v4766, %v4769
    %vm4771 = vweird.f32 %v4587
    %vm4772 = vweird.f32 %v4766
    %vm4773 = vmor %vm4771, %vm4772
    %v4774 = vsel %vm4773, %v4766, %v4770
    %v4775 = vand.u32 2147483647, %v4587
    %vm4776 = vcmp.eq.f32.partialorder %v4775, 8.507059e+37
    %v4777 = vand.u32 %v4587, 2147483648
    %v4778 = vor.u32 1.1754944e-38, %v4777
    %v4779 = vsel %vm4776, %v4778, %v4774
    %v4780 = vrcp.pop %v4590
    %v4781 = vmul.f32 %v4590, %v4780
    %v4782 = vsub.f32 1.0, %v4781
    %v4783 = vmul.f32 %v4780, %v4782
    %v4784 = vadd.f32 %v4780, %v4783
    %vm4785 = vweird.f32 %v4590
    %vm4786 = vweird.f32 %v4780
    %vm4787 = vmor %vm4785, %vm4786
    %v4788 = vsel %vm4787, %v4780, %v4784
    %v4789 = vand.u32 2147483647, %v4590
    %vm4790 = vcmp.eq.f32.partialorder %v4789, 8.507059e+37
    %v4791 = vand.u32 %v4590, 2147483648
    %v4792 = vor.u32 1.1754944e-38, %v4791
    %v4793 = vsel %vm4790, %v4792, %v4788
    %v4794 = vrcp.pop %v4593
    %v4795 = vmul.f32 %v4593, %v4794
    %v4796 = vsub.f32 1.0, %v4795
    %v4797 = vmul.f32 %v4794, %v4796
    %v4798 = vadd.f32 %v4794, %v4797
    %vm4799 = vweird.f32 %v4593
    %vm4800 = vweird.f32 %v4794
    %vm4801 = vmor %vm4799, %vm4800
    %v4802 = vsel %vm4801, %v4794, %v4798
    %v4803 = vand.u32 2147483647, %v4593
    %vm4804 = vcmp.eq.f32.partialorder %v4803, 8.507059e+37
    %v4805 = vand.u32 %v4593, 2147483648
    %v4806 = vor.u32 1.1754944e-38, %v4805
    %v4807 = vsel %vm4804, %v4806, %v4802
    %v4808 = vrcp.pop %v4596
    %v4809 = vmul.f32 %v4596, %v4808
    %v4810 = vsub.f32 1.0, %v4809
    %v4811 = vmul.f32 %v4808, %v4810
    %v4812 = vadd.f32 %v4808, %v4811
    %vm4813 = vweird.f32 %v4596
    %vm4814 = vweird.f32 %v4808
    %vm4815 = vmor %vm4813, %vm4814
    %v4816 = vsel %vm4815, %v4808, %v4812
    %v4817 = vand.u32 2147483647, %v4596
    %vm4818 = vcmp.eq.f32.partialorder %v4817, 8.507059e+37
    %v4819 = vand.u32 %v4596, 2147483648
    %v4820 = vor.u32 1.1754944e-38, %v4819
    %v4821 = vsel %vm4818, %v4820, %v4816
    %4823 = vset.pattern.permute.xlu0 0
    %4824 = vperm.xlu0 %4823, %v4611
    %v4825 = vpop.permute.xlu0 %4824
    %4828 = vset.pattern.permute.xlu0 0
    %4829 = vperm.xlu0 %4828, %v4625
    %v4830 = vpop.permute.xlu0 %4829
    %4833 = vset.pattern.permute.xlu0 0
    %4834 = vperm.xlu0 %4833, %v4639
    %v4835 = vpop.permute.xlu0 %4834
    %4838 = vset.pattern.permute.xlu0 0
    %4839 = vperm.xlu0 %4838, %v4653
    %v4840 = vpop.permute.xlu0 %4839
    %4843 = vset.pattern.permute.xlu0 0
    %4844 = vperm.xlu0 %4843, %v4667
    %v4845 = vpop.permute.xlu0 %4844
    %4848 = vset.pattern.permute.xlu0 0
    %4849 = vperm.xlu0 %4848, %v4681
    %v4850 = vpop.permute.xlu0 %4849
    %4853 = vset.pattern.permute.xlu0 0
    %4854 = vperm.xlu0 %4853, %v4695
    %v4855 = vpop.permute.xlu0 %4854
    %4858 = vset.pattern.permute.xlu0 0
    %4859 = vperm.xlu0 %4858, %v4709
    %v4860 = vpop.permute.xlu0 %4859
    %4863 = vset.pattern.permute.xlu0 0
    %4864 = vperm.xlu0 %4863, %v4723
    %v4865 = vpop.permute.xlu0 %4864
    %4868 = vset.pattern.permute.xlu0 0
    %4869 = vperm.xlu0 %4868, %v4737
    %v4870 = vpop.permute.xlu0 %4869
    %4873 = vset.pattern.permute.xlu0 0
    %4874 = vperm.xlu0 %4873, %v4751
    %v4875 = vpop.permute.xlu0 %4874
    %4878 = vset.pattern.permute.xlu0 0
    %4879 = vperm.xlu0 %4878, %v4765
    %v4880 = vpop.permute.xlu0 %4879
    %4883 = vset.pattern.permute.xlu0 0
    %4884 = vperm.xlu0 %4883, %v4779
    %v4885 = vpop.permute.xlu0 %4884
    %4888 = vset.pattern.permute.xlu0 0
    %4889 = vperm.xlu0 %4888, %v4793
    %v4890 = vpop.permute.xlu0 %4889
    %4893 = vset.pattern.permute.xlu0 0
    %4894 = vperm.xlu0 %4893, %v4807
    %v4895 = vpop.permute.xlu0 %4894
    %4898 = vset.pattern.permute.xlu0 0
    %4899 = vperm.xlu0 %4898, %v4821
    %v4900 = vpop.permute.xlu0 %4899
    %v4902 = vmul.f32 %v4502, %v4825
    %v4903 = vmul.f32 %v4504, %v4830
    %v4904 = vmul.f32 %v4506, %v4835
    %v4905 = vmul.f32 %v4508, %v4840
    %v4906 = vmul.f32 %v4510, %v4845
    %v4907 = vmul.f32 %v4512, %v4850
    %v4908 = vmul.f32 %v4514, %v4855
    %v4909 = vmul.f32 %v4516, %v4860
    %v4910 = vmul.f32 %v4518, %v4865
    %v4911 = vmul.f32 %v4520, %v4870
    %v4912 = vmul.f32 %v4522, %v4875
    %v4913 = vmul.f32 %v4524, %v4880
    %v4914 = vmul.f32 %v4526, %v4885
    %v4915 = vmul.f32 %v4528, %v4890
    %v4916 = vmul.f32 %v4530, %v4895
    %v4917 = vmul.f32 %v4532, %v4900
    %v4920 = vrot.slane %v4296, 4
    %v4921 = vrot.slane %v4299, 4
    %v4922 = vsel %vm2506, %v4920, %v4921
    %v4923 = vrot.slane %v4302, 4
    %v4924 = vsel %vm2506, %v4921, %v4923
    %4927 = vmatpush.xpose.msra.mxu0 %v4917
    %4928 = vmatpush.xpose.msra.mxu0 %v4916
    %4929 = vmatpush.xpose.msra.mxu0 %v4915
    %4930 = vmatpush.xpose.msra.mxu0 %v4914
    %4931 = vmatpush.xpose.msra.mxu0 %v4913
    %4932 = vmatpush.xpose.msra.mxu0 %v4912
    %4933 = vmatpush.xpose.msra.mxu0 %v4911
    %4934 = vmatpush.xpose.msra.mxu0 %v4910
    %4935 = vmatpush.xpose.msra.mxu0 %v4909
    %4936 = vmatpush.xpose.msra.mxu0 %v4908
    %4937 = vmatpush.xpose.msra.mxu0 %v4907
    %4938 = vmatpush.xpose.msra.mxu0 %v4906
    %4939 = vmatpush.xpose.msra.mxu0 %v4905
    %4940 = vmatpush.xpose.msra.mxu0 %v4904
    %4941 = vmatpush.xpose.msra.mxu0 %v4903
    %4942 = vmatpush.xpose.msra.mxu0 %v4902
    %4943 = vmatmul.f32.gmra.mxu0 %v4922
    %v4944 = vpop.f32.mrf.mxu0
    %v4945 = vadd.f32 0.0, %v4944
    %4946 = vmatmul.f32.gmra.mxu0 %v4924
    %v4947 = vpop.f32.mrf.mxu0
    %v4948 = vadd.f32 0.0, %v4947
    %4949 = vdwg.mxu0
    %s4950 = sld [smem:[#allocation8 + $0x3]]
    %v4951 = vstv %s4950
    %v4952 = vmul.f32 %v4951, %v4945
    %v4953 = vmul.f32 %v4951, %v4948
    %v4954 = vmax.f32 %v4952, 0.0
    %v4955 = vmax.f32 %v4953, 0.0
    %v4956 = vmul.f32 %v4954, %v4954
    %v4957 = vmul.f32 %v4955, %v4955
    %4958 = vmatpush.msra.mxu0 0.0078125
    %4959 = vmatpush.msra.mxu0 0.0078125
    %4960 = vmatpush.msra.mxu0 0.0078125
    %4961 = vmatpush.msra.mxu0 0.0078125
    %4962 = vmatpush.msra.mxu0 0.0078125
    %4963 = vmatpush.msra.mxu0 0.0078125
    %4964 = vmatpush.msra.mxu0 0.0078125
    %4965 = vmatpush.msra.mxu0 0.0078125
    %4966 = vmatpush.msra.mxu0 0.0078125
    %4967 = vmatpush.msra.mxu0 0.0078125
    %4968 = vmatpush.msra.mxu0 0.0078125
    %4969 = vmatpush.msra.mxu0 0.0078125
    %4970 = vmatpush.msra.mxu0 0.0078125
    %4971 = vmatpush.msra.mxu0 0.0078125
    %4972 = vmatpush.msra.mxu0 0.0078125
    %4973 = vmatpush.msra.mxu0 0.0078125
    %4974 = vmatmul.f32.gmra.mxu0 %v4954
    %v4975 = vpop.f32.mrf.mxu0
    %v4976 = vadd.f32 0.0, %v4975
    %4977 = vmatmul.f32.gmra.mxu0 %v4955
    %v4978 = vpop.f32.mrf.mxu0
    %v4979 = vadd.f32 0.0, %v4978
    %4980 = vmatmul.f32.gmra.mxu0 %v4956
    %v4981 = vpop.f32.mrf.mxu0
    %v4982 = vadd.f32 0.0, %v4981
    %4983 = vmatmul.f32.gmra.mxu0 %v4957
    %v4984 = vpop.f32.mrf.mxu0
    %v4985 = vadd.f32 0.0, %v4984
    %4986 = vdwg.mxu0
    %v4987 = vmul.f32 %v4976, %v4976
    %v4988 = vmul.f32 %v4979, %v4979
    %v4989 = vsub.f32 %v4982, %v4987
    %v4990 = vsub.f32 %v4985, %v4988
    %4992 = vset.pattern.permute.xlu0 0
    %4993 = vperm.xlu0 %4992, %v4976
    %v4994 = vpop.permute.xlu0 %4993
    %4997 = vset.pattern.permute.xlu0 0
    %4998 = vperm.xlu0 %4997, %v4979
    %v4999 = vpop.permute.xlu0 %4998
    %v5001 = vsub.f32 %v4954, %v4994
    %v5002 = vsub.f32 %v4955, %v4999
    %v5003 = vadd.f32 %v4989, 1e-05
    %v5004 = vadd.f32 %v4990, 1e-05
    %v5005 = vrsqrt.pop %v5003
    %v5006 = vmul.f32 %v5005, %v5003
    %v5007 = vmul.f32 %v5006, %v5005
    %v5008 = vmul.f32 0.5, %v5007
    %v5009 = vsub.f32 1.5, %v5008
    %v5010 = vmul.f32 %v5005, %v5009
    %vm5011 = vweird.f32 %v5003
    %vm5012 = vweird.f32 %v5005
    %vm5013 = vmor %vm5011, %vm5012
    %v5014 = vsel %vm5013, %v5005, %v5010
    %v5015 = vrsqrt.pop %v5004
    %v5016 = vmul.f32 %v5015, %v5004
    %v5017 = vmul.f32 %v5016, %v5015
    %v5018 = vmul.f32 0.5, %v5017
    %v5019 = vsub.f32 1.5, %v5018
    %v5020 = vmul.f32 %v5015, %v5019
    %vm5021 = vweird.f32 %v5004
    %vm5022 = vweird.f32 %v5015
    %vm5023 = vmor %vm5021, %vm5022
    %v5024 = vsel %vm5023, %v5015, %v5020
    %5026 = vset.pattern.permute.xlu0 0
    %5027 = vperm.xlu0 %5026, %v5014
    %v5028 = vpop.permute.xlu0 %5027
    %5031 = vset.pattern.permute.xlu0 0
    %5032 = vperm.xlu0 %5031, %v5024
    %v5033 = vpop.permute.xlu0 %5032
    %v5035 = vmul.f32 %v5001, %v5028
    %v5036 = vmul.f32 %v5002, %v5033
    %5037 = vset.pattern.permute.xlu0 27
    %5038 = vperm.xlu0 %5037, %v228
    %v5039 = vpop.permute.xlu0 %5038
    %5041 = vset.pattern.permute.xlu0 27
    %5042 = vperm.xlu0 %5041, %v229
    %v5043 = vpop.permute.xlu0 %5042
    %v5045 = vmul.f32 %v5035, %v5039
    %v5046 = vmul.f32 %v5036, %v5043
    %5047 = vset.pattern.permute.xlu0 28
    %5048 = vperm.xlu0 %5047, %v228
    %v5049 = vpop.permute.xlu0 %5048
    %5051 = vset.pattern.permute.xlu0 28
    %5052 = vperm.xlu0 %5051, %v229
    %v5053 = vpop.permute.xlu0 %5052
    %v5055 = vadd.f32 %v5045, %v5049
    %v5056 = vadd.f32 %v5046, %v5053
    %v5057 = vadd.f32 %v5055, %v3449
    %v5058 = vadd.f32 %v5056, %v3450
    %v5059 = vmax.f32 %v5057, 0.0
    %v5060 = vmax.f32 %v5058, 0.0
    %5061 = vmatpush.msra.mxu0 %v90
    %5062 = vmatpush.msra.mxu0 %v89
    %5063 = vmatpush.msra.mxu0 %v88
    %5064 = vmatpush.msra.mxu0 %v87
    %5065 = vmatpush.msra.mxu0 %v86
    %5066 = vmatpush.msra.mxu0 %v85
    %5067 = vmatpush.msra.mxu0 %v84
    %5068 = vmatpush.msra.mxu0 %v83
    %5069 = vmatpush.msra.mxu0 %v82
    %5070 = vmatpush.msra.mxu0 %v81
    %5071 = vmatpush.msra.mxu0 %v80
    %5072 = vmatpush.msra.mxu0 %v79
    %5073 = vmatpush.msra.mxu0 %v78
    %5074 = vmatpush.msra.mxu0 %v77
    %5075 = vmatpush.msra.mxu0 %v76
    %5076 = vmatpush.msra.mxu0 %v75
    %5077 = vmatmul.f32.gmra.mxu0 %v5059
    %v5078 = vpop.f32.mrf.mxu0
    %v5079 = vadd.f32 0.0, %v5078
    %5080 = vmatmul.f32.gmra.mxu0 %v5060
    %v5081 = vpop.f32.mrf.mxu0
    %v5082 = vadd.f32 0.0, %v5081
    %5083 = vdwg.mxu0
    %v5084 = vmul.f32 %v5079, 0.015625
    %v5085 = vmul.f32 %v5082, 0.015625
    %v5086 = vld [vmem:[#allocation2 + $0xd8] sm:$0xff]
    %v5087 = vld [vmem:[#allocation2 + $0xe0] sm:$0xff]
    %v5088 = vld [vmem:[#allocation2 + $0xe8] sm:$0x1]
    %v5089 = vperm.slane %v5088, 0
    %5090 = vxpose.xlu0.b32.start [1/16] %v5084, 128
    %5091 = vxpose.xlu0.b32.cont [2/16] %v5085, 128
    %5092 = vxpose.xlu0.b32.cont [3/16] 0.0, 128
    %5093 = vxpose.xlu0.b32.cont [4/16] 0.0, 128
    %5094 = vxpose.xlu0.b32.cont [5/16] 0.0, 128
    %5095 = vxpose.xlu0.b32.cont [6/16] 0.0, 128
    %5096 = vxpose.xlu0.b32.cont [7/16] 0.0, 128
    %5097 = vxpose.xlu0.b32.cont [8/16] 0.0, 128
    %5098 = vxpose.xlu0.b32.cont [9/16] 0.0, 128
    %5099 = vxpose.xlu0.b32.cont [10/16] 0.0, 128
    %5100 = vxpose.xlu0.b32.cont [11/16] 0.0, 128
    %5101 = vxpose.xlu0.b32.cont [12/16] 0.0, 128
    %5102 = vxpose.xlu0.b32.cont [13/16] 0.0, 128
    %5103 = vxpose.xlu0.b32.cont [14/16] 0.0, 128
    %5104 = vxpose.xlu0.b32.cont [15/16] 0.0, 128
    %5105 = vxpose.xlu0.b32.end [16/16] 0.0, 128
    %v5106 = vpop.trf.xlu0
    %v5107 = vpop.trf.xlu0
    %v5108 = vpop.trf.xlu0
    %v5109 = vpop.trf.xlu0
    %v5110 = vpop.trf.xlu0
    %v5111 = vpop.trf.xlu0
    %v5112 = vpop.trf.xlu0
    %v5113 = vpop.trf.xlu0
    %v5114 = vpop.trf.xlu0
    %v5115 = vpop.trf.xlu0
    %v5116 = vpop.trf.xlu0
    %v5117 = vpop.trf.xlu0
    %v5118 = vpop.trf.xlu0
    %v5119 = vpop.trf.xlu0
    %v5120 = vpop.trf.xlu0
    %v5121 = vpop.trf.xlu0
    %v5123 = vsel %vm262, %v5106, 0
    %5125 = vmatpush.msra.mxu0 0.0
    %5126 = vmatpush.msra.mxu0 0.0
    %5127 = vmatpush.msra.mxu0 0.0
    %5128 = vmatpush.msra.mxu0 0.0
    %5129 = vmatpush.msra.mxu0 0.0
    %5130 = vmatpush.msra.mxu0 0.0
    %5131 = vmatpush.msra.mxu0 0.0
    %5132 = vmatpush.msra.mxu0 0.0
    %5133 = vmatpush.msra.mxu0 0.0
    %5134 = vmatpush.msra.mxu0 0.0
    %5135 = vmatpush.msra.mxu0 0.0
    %5136 = vmatpush.msra.mxu0 0.0
    %5137 = vmatpush.msra.mxu0 0.0
    %5138 = vmatpush.msra.mxu0 0.0
    %5139 = vmatpush.msra.mxu0 %v5087
    %5140 = vmatpush.msra.mxu0 %v5086
    %5141 = vmatmul.f32.gmra.mxu0 %v5123
    %v5142 = vpop.f32.mrf.mxu0
    %v5143 = vadd.f32 %v5089, %v5142
    %5144 = vdwg.mxu0
    %vm5145 = vcmask 41984
    %5146 = vst.msk [vmem:[#allocation9] sm:$0x3] %vm5145, %v5143
    // Predicated region
    $region46: #{forward.1} parent=1 // pred_check
      _
    $region47: #{forward.1} parent=1 // pred_check_branch
      %5148 = sbr.rel (0) target = $region49
    $region48: #{forward.1} parent=1 // pred_region
      %5150 = vsyncadd [#allocation4], 0
      %s5152 = sshll.u32 [#allocation9], 4
      %s5153 = int_to_ptr.vmem [resolvable:$true] %s5152
      %s5154 = sshll.u32 %s8, 4
      %s5155 = int_to_ptr.hbm [resolvable:$true] %s5154
      %5157 = dma.vmem_to_hbm [thread:$0]  %s5153, 32, %s5155, [#allocation4]
    $region49: #{forward.1} parent=1 // pred_fallthru
      _
    // Predicated region
    $region50: #{forward.1} parent=1 // pred_check
      _
    $region51: #{forward.1} parent=1 // pred_check_branch
      %5159 = sbr.rel (0) target = $region53
    $region52: #{forward.1} parent=1 // pred_region
      %5161 = dma.done [#allocation4], 32
    $region53: #{forward.1} parent=1 // pred_fallthru
      _
    %5162 = vsyncpa [#allocation3], 1
    %5163 = vsyncpa [#allocation7], 1
    %5164 = vsyncpa [#allocation4], 1
    %5165 = vsyncpa [#allocation5], 1

</llo_original>
